<compile_context>
chip_gen: v7x
topology: tpu7x:2x2x1
jax: 0.10.0
libtpu: 0.0.40
codegen_flags: <defaults>
</compile_context>

<pallas_src>
import math
import numpy as np
import jax
import jax.numpy as jnp
from jax import lax
from jax.experimental import pallas as pl
from jax.experimental.pallas import tpu as pltpu

# ----------------------------- configuration -------------------------------
B, T, C_M, H, C_Z = 2, 8, 32, 4, 16          # batch, time, d_model, heads, c_z
D = C_M // H                                  # head dim
T2 = 2 * T - 1                                # relative positional length
BT = B * T
SQRT_D = math.sqrt(D)
LN_EPS = 1e-5


# ------------------------------ Pallas kernel ------------------------------
def rmha_kernel(q_ref, k_ref, v_ref, pos_ref, zt_ref, maskb_ref,
                wq_ref, bq_ref, wk_ref, bk_ref, wv_ref, bv_ref, wp_ref,
                u_ref, vb_ref, gamma_ref, beta_ref, wz_ref,
                wo_ref, bo_ref, out_ref, ctx_ref):
    f32 = jnp.float32

    # ---- input projections: one MXU matmul each over all B*T rows ---------
    # (wq/bq and u/v biases are pre-scaled by 1/sqrt(d_head) in the wrapper.)
    Q = jnp.dot(q_ref[...], wq_ref[...], preferred_element_type=f32) + bq_ref[...]
    K = jnp.dot(k_ref[...], wk_ref[...], preferred_element_type=f32) + bk_ref[...]
    V = jnp.dot(v_ref[...], wv_ref[...], preferred_element_type=f32) + bv_ref[...]
    P = jnp.dot(pos_ref[...], wp_ref[...], preferred_element_type=f32)  # (T2, C_M)

    K3 = K.reshape(B, T, C_M)      # tile-boundary leading split, free
    V3 = V.reshape(B, T, C_M)

    # ---- pair-bias branch: LayerNorm over c_z + ONE batched matmul --------
    # z arrives as (B*T, c_z, T): channel on sublanes, key-time on lanes.
    zt = zt_ref[...]
    mu = jnp.mean(zt, axis=1, keepdims=True)
    var = jnp.mean((zt - mu) ** 2, axis=1, keepdims=True)
    zn = (zt - mu) * lax.rsqrt(var + LN_EPS)
    zn = zn * gamma_ref[...] + beta_ref[...]                     # (BT, C_Z, T)
    wz_b = jnp.broadcast_to(wz_ref[...][None, :, :], (BT, H, C_Z))
    # zb_all[r, h, j] = sum_c Wz[h, c] * zn[r, c, j]   -- all heads at once.
    zb_all = jnp.einsum('rhc,rcj->rhj', wz_b, zn,
                        preferred_element_type=f32)              # (BT, H, T)

    # additive mask bias (-1e4 on masked keys), added once for all heads.
    bias_all = zb_all + maskb_ref[...][:, None, :]               # (BT, H, T)

    # ---- relative-shift selector built from iota (no DMA, no extra input) -
    # sel[i, k, j] = 1  iff  k == j + (T-1) - i
    ii = lax.broadcasted_iota(jnp.int32, (T, T2, T), 0)
    kk = lax.broadcasted_iota(jnp.int32, (T, T2, T), 1)
    jj = lax.broadcasted_iota(jnp.int32, (T, T2, T), 2)
    sel_small = (kk == jj + (T - 1) - ii).astype(f32)            # (T, T2, T)
    sel = jnp.broadcast_to(sel_small[None], (B, T, T2, T)).reshape(BT, T2, T)

    # ---- positional scores for all heads + single MXU shift contraction ---
    posf = []
    for h in range(H):
        sl = slice(h * D, (h + 1) * D)
        qv_h = Q[:, sl] + vb_ref[h:h + 1, :]                     # (BT, D)
        posf.append(
            lax.dot_general(qv_h, P[:, sl], (((1,), (1,)), ((), ())),
                            preferred_element_type=f32)[:, None, :])
    posf_all = jnp.concatenate(posf, axis=1)                     # (BT, H, T2)
    # shifted[r, h, j] = posf_all[r, h, j + T-1 - (r mod T)]  (Transformer-XL)
    bias_all = bias_all + jnp.einsum('rhk,rkj->rhj', posf_all, sel,
                                     preferred_element_type=f32)

    # ---- per-head content score, softmax, context --------------------------
    for h in range(H):
        sl = slice(h * D, (h + 1) * D)
        qu_h = (Q[:, sl] + u_ref[h:h + 1, :]).reshape(B, T, D)
        content = jnp.einsum('bid,bjd->bij', qu_h, K3[:, :, sl],
                             preferred_element_type=f32)         # (B, T, T)
        score = content.reshape(BT, T) + bias_all[:, h, :]       # (BT, T)
        m = jnp.max(score, axis=-1, keepdims=True)
        e = jnp.exp(score - m)
        s = jnp.sum(e, axis=-1, keepdims=True)
        attn = e * pl.reciprocal(s, approx=True)
        # TODO(synk): attention dropout (p=0.1) omitted -- eval/inference semantics.
        ctx_h = jnp.einsum('bij,bjd->bid', attn.reshape(B, T, T), V3[:, :, sl],
                           preferred_element_type=f32)           # (B, T, D)
        ctx_ref[:, sl] = ctx_h.reshape(BT, D)                    # scratch slab write

    out_ref[...] = (jnp.dot(ctx_ref[...], wo_ref[...], preferred_element_type=f32)
                    + bo_ref[...])


# ------------------------------- wrapper ------------------------------------
def rmha_pallas(q, k, v, pos, z, mask, p):
    inv = 1.0 / SQRT_D
    # fold 1/sqrt(d_head) into the query-side parameters (free, wrapper-side).
    wq_s, bq_s = p["wq"] * inv, p["bq"] * inv
    u_s, v_s = p["u"] * inv, p["v"] * inv
    # layout plumbing (wrapper-side): batch folded into rows; z presented as
    # (B*T, c_z, T) so the pair bias is one batched matmul inside the kernel.
    qf = q.reshape(BT, C_M)
    kf = k.reshape(BT, C_M)
    vf = v.reshape(BT, C_M)
    zt = z.transpose(0, 1, 3, 2).reshape(BT, C_Z, T)
    mask_bias = jnp.broadcast_to(-10000.0 * mask.astype(jnp.float32),
                                 (B, T, T)).reshape(BT, T)
    gamma = p["gamma"].reshape(1, C_Z, 1)
    beta = p["beta"].reshape(1, C_Z, 1)

    fn = pl.pallas_call(
        rmha_kernel,
        out_shape=jax.ShapeDtypeStruct((BT, C_M), jnp.float32),
        scratch_shapes=[pltpu.VMEM((BT, C_M), jnp.float32)],
    )
    out = fn(qf, kf, vf, pos, zt, mask_bias,
             wq_s, bq_s, p["wk"], p["bk"], p["wv"], p["bv"], p["wp"],
             u_s, v_s, gamma, beta, p["wzT"], p["wo"], p["bo"])
    return out.reshape(B, T, C_M)


# --------------------------- pure-JAX reference -----------------------------
def rmha_reference(q, k, v, pos, z, mask, p):
    Q = q @ p["wq"] + p["bq"]
    K = k @ p["wk"] + p["bk"]
    V = v @ p["wv"] + p["bv"]
    P = pos @ p["wp"]                                  # (T2, C_M), batch-shared
    Qh = Q.reshape(B, T, H, D)
    Kh = K.reshape(B, T, H, D)
    Vh = V.reshape(B, T, H, D)
    Ph = P.reshape(T2, H, D)
    content = jnp.einsum("bthd,bshd->bhts", Qh + p["u"], Kh)
    pos_score = jnp.einsum("bthd,phd->bhtp", Qh + p["v"], Ph)
    idx = jnp.arange(T)[None, :] + (T - 1) - jnp.arange(T)[:, None]   # (T, T)
    pos_shift = jnp.take_along_axis(pos_score,
                                    jnp.broadcast_to(idx, (B, H, T, T)), axis=-1)
    mu = z.mean(-1, keepdims=True)
    var = ((z - mu) ** 2).mean(-1, keepdims=True)
    zn = (z - mu) * lax.rsqrt(var + LN_EPS) * p["gamma"] + p["beta"]
    zb = jnp.einsum("btsc,hc->bhts", zn, p["wzT"])
    score = (content + pos_shift) / SQRT_D + zb
    score = jnp.where(mask[:, None, :, :] != 0, -10000.0, score)
    attn = jax.nn.softmax(score, axis=-1)
    ctx = jnp.einsum("bhts,bshd->bthd", attn, Vh).reshape(B, T, C_M)
    return ctx @ p["wo"] + p["bo"]


# --------------------------------- main --------------------------------------
if __name__ == "__main__":
    key = jax.random.PRNGKey(0)
    ks = jax.random.split(key, 18)

    params = {
        "wq": 0.1 * jax.random.normal(ks[0], (C_M, C_M), jnp.float32),
        "bq": 0.05 * jax.random.normal(ks[1], (1, C_M), jnp.float32),
        "wk": 0.1 * jax.random.normal(ks[2], (C_M, C_M), jnp.float32),
        "bk": 0.05 * jax.random.normal(ks[3], (1, C_M), jnp.float32),
        "wv": 0.1 * jax.random.normal(ks[4], (C_M, C_M), jnp.float32),
        "bv": 0.05 * jax.random.normal(ks[5], (1, C_M), jnp.float32),
        "wp": 0.1 * jax.random.normal(ks[6], (C_M, C_M), jnp.float32),
        "u": 0.1 * jax.random.normal(ks[7], (H, D), jnp.float32),
        "v": 0.1 * jax.random.normal(ks[8], (H, D), jnp.float32),
        "gamma": 1.0 + 0.05 * jax.random.normal(ks[9], (1, C_Z), jnp.float32),
        "beta": 0.05 * jax.random.normal(ks[10], (1, C_Z), jnp.float32),
        "wzT": 0.1 * jax.random.normal(ks[11], (H, C_Z), jnp.float32),  # Wz^T: (H, c_z)
        "wo": 0.1 * jax.random.normal(ks[12], (C_M, C_M), jnp.float32),
        "bo": 0.05 * jax.random.normal(ks[13], (1, C_M), jnp.float32),
    }

    q = jax.random.normal(ks[14], (B, T, C_M), jnp.float32)
    k_in = jax.random.normal(ks[15], (B, T, C_M), jnp.float32)
    v_in = jax.random.normal(ks[16], (B, T, C_M), jnp.float32)
    pos = jax.random.normal(ks[17], (T2, C_M), jnp.float32)   # batch-shared rel. pos. emb.
    z = jax.random.normal(jax.random.PRNGKey(1), (B, T, T, C_Z), jnp.float32)

    lengths = jnp.array([T, T - 2])
    mask = (jnp.arange(T)[None, :] >= lengths[:, None]).astype(jnp.int32)[:, None, :]

    out = jax.block_until_ready(rmha_pallas(q, k_in, v_in, pos, z, mask, params))
    ref = jax.block_until_ready(rmha_reference(q, k_in, v_in, pos, z, mask, params))
    np.testing.assert_allclose(np.asarray(out), np.asarray(ref), rtol=2e-2, atol=2e-2)

    print("KERNEL_OK")
</pallas_src>

<mosaic_0001>
module attributes {stable_mosaic.version = 11 : i64} {
  func.func @rmha_kernel(%arg0: memref<16x32xf32, #tpu.memory_space<vmem>>, %arg1: memref<16x32xf32, #tpu.memory_space<vmem>>, %arg2: memref<16x32xf32, #tpu.memory_space<vmem>>, %arg3: memref<15x32xf32, #tpu.memory_space<vmem>>, %arg4: memref<16x16x8xf32, #tpu.memory_space<vmem>>, %arg5: memref<16x8xf32, #tpu.memory_space<vmem>>, %arg6: memref<32x32xf32, #tpu.memory_space<vmem>>, %arg7: memref<1x32xf32, #tpu.memory_space<vmem>>, %arg8: memref<32x32xf32, #tpu.memory_space<vmem>>, %arg9: memref<1x32xf32, #tpu.memory_space<vmem>>, %arg10: memref<32x32xf32, #tpu.memory_space<vmem>>, %arg11: memref<1x32xf32, #tpu.memory_space<vmem>>, %arg12: memref<32x32xf32, #tpu.memory_space<vmem>>, %arg13: memref<4x8xf32, #tpu.memory_space<vmem>>, %arg14: memref<4x8xf32, #tpu.memory_space<vmem>>, %arg15: memref<1x16x1xf32, #tpu.memory_space<vmem>>, %arg16: memref<1x16x1xf32, #tpu.memory_space<vmem>>, %arg17: memref<4x16xf32, #tpu.memory_space<vmem>>, %arg18: memref<32x32xf32, #tpu.memory_space<vmem>>, %arg19: memref<1x32xf32, #tpu.memory_space<vmem>>, %arg20: memref<16x32xf32, #tpu.memory_space<vmem>>, %arg21: memref<16x32xf32, #tpu.memory_space<vmem>>) attributes {dimension_semantics = [], scalar_prefetch = 0 : i64, scratch_operands = 1 : i64, tpu.core_type = #tpu.core_type<tc>} {
    %c0 = arith.constant 0 : index
    %c0_0 = arith.constant 0 : index
    %0 = vector.load %arg0[%c0, %c0_0] : memref<16x32xf32, #tpu.memory_space<vmem>>, vector<16x32xf32>
    %c0_1 = arith.constant 0 : index
    %c0_2 = arith.constant 0 : index
    %1 = vector.load %arg6[%c0_1, %c0_2] : memref<32x32xf32, #tpu.memory_space<vmem>>, vector<32x32xf32>
    %cst = arith.constant dense<0.000000e+00> : vector<16x32xf32>
    %2 = tpu.matmul %0, %1, %cst {dimension_numbers = #tpu.dot_dimension_numbers<[1], [0], [0], [1], [0, 0, 1, 1], [], []>} : vector<16x32xf32>, vector<32x32xf32>, vector<16x32xf32> -> vector<16x32xf32>
    %c0_3 = arith.constant 0 : index
    %c0_4 = arith.constant 0 : index
    %3 = vector.load %arg7[%c0_3, %c0_4] : memref<1x32xf32, #tpu.memory_space<vmem>>, vector<1x32xf32>
    %4 = vector.broadcast %3 : vector<1x32xf32> to vector<16x32xf32>
    %5 = arith.addf %2, %4 : vector<16x32xf32>
    %c0_5 = arith.constant 0 : index
    %c0_6 = arith.constant 0 : index
    %6 = vector.load %arg1[%c0_5, %c0_6] : memref<16x32xf32, #tpu.memory_space<vmem>>, vector<16x32xf32>
    %c0_7 = arith.constant 0 : index
    %c0_8 = arith.constant 0 : index
    %7 = vector.load %arg8[%c0_7, %c0_8] : memref<32x32xf32, #tpu.memory_space<vmem>>, vector<32x32xf32>
    %cst_9 = arith.constant dense<0.000000e+00> : vector<16x32xf32>
    %8 = tpu.matmul %6, %7, %cst_9 {dimension_numbers = #tpu.dot_dimension_numbers<[1], [0], [0], [1], [0, 0, 1, 1], [], []>} : vector<16x32xf32>, vector<32x32xf32>, vector<16x32xf32> -> vector<16x32xf32>
    %c0_10 = arith.constant 0 : index
    %c0_11 = arith.constant 0 : index
    %9 = vector.load %arg9[%c0_10, %c0_11] : memref<1x32xf32, #tpu.memory_space<vmem>>, vector<1x32xf32>
    %10 = vector.broadcast %9 : vector<1x32xf32> to vector<16x32xf32>
    %11 = arith.addf %8, %10 : vector<16x32xf32>
    %c0_12 = arith.constant 0 : index
    %c0_13 = arith.constant 0 : index
    %12 = vector.load %arg2[%c0_12, %c0_13] : memref<16x32xf32, #tpu.memory_space<vmem>>, vector<16x32xf32>
    %c0_14 = arith.constant 0 : index
    %c0_15 = arith.constant 0 : index
    %13 = vector.load %arg10[%c0_14, %c0_15] : memref<32x32xf32, #tpu.memory_space<vmem>>, vector<32x32xf32>
    %cst_16 = arith.constant dense<0.000000e+00> : vector<16x32xf32>
    %14 = tpu.matmul %12, %13, %cst_16 {dimension_numbers = #tpu.dot_dimension_numbers<[1], [0], [0], [1], [0, 0, 1, 1], [], []>} : vector<16x32xf32>, vector<32x32xf32>, vector<16x32xf32> -> vector<16x32xf32>
    %c0_17 = arith.constant 0 : index
    %c0_18 = arith.constant 0 : index
    %15 = vector.load %arg11[%c0_17, %c0_18] : memref<1x32xf32, #tpu.memory_space<vmem>>, vector<1x32xf32>
    %16 = vector.broadcast %15 : vector<1x32xf32> to vector<16x32xf32>
    %17 = arith.addf %14, %16 : vector<16x32xf32>
    %c0_19 = arith.constant 0 : index
    %c0_20 = arith.constant 0 : index
    %18 = vector.load %arg3[%c0_19, %c0_20] : memref<15x32xf32, #tpu.memory_space<vmem>>, vector<15x32xf32>
    %c0_21 = arith.constant 0 : index
    %c0_22 = arith.constant 0 : index
    %19 = vector.load %arg12[%c0_21, %c0_22] : memref<32x32xf32, #tpu.memory_space<vmem>>, vector<32x32xf32>
    %cst_23 = arith.constant dense<0.000000e+00> : vector<15x32xf32>
    %20 = tpu.matmul %18, %19, %cst_23 {dimension_numbers = #tpu.dot_dimension_numbers<[1], [0], [0], [1], [0, 0, 1, 1], [], []>} : vector<15x32xf32>, vector<32x32xf32>, vector<15x32xf32> -> vector<15x32xf32>
    %21 = vector.shape_cast %11 : vector<16x32xf32> to vector<2x8x32xf32>
    %22 = vector.shape_cast %17 : vector<16x32xf32> to vector<2x8x32xf32>
    %c0_24 = arith.constant 0 : index
    %c0_25 = arith.constant 0 : index
    %c0_26 = arith.constant 0 : index
    %23 = vector.load %arg4[%c0_24, %c0_25, %c0_26] : memref<16x16x8xf32, #tpu.memory_space<vmem>>, vector<16x16x8xf32>
    %cst_27 = arith.constant dense<0.000000e+00> : vector<16x8xf32>
    %24 = vector.multi_reduction <add>, %23, %cst_27 [1] : vector<16x16x8xf32> to vector<16x8xf32>
    %25 = vector.shape_cast %24 : vector<16x8xf32> to vector<16x1x8xf32>
    %cst_28 = arith.constant 1.600000e+01 : f32
    %26 = vector.broadcast %cst_28 : f32 to vector<16x1x8xf32>
    %27 = arith.divf %25, %26 : vector<16x1x8xf32>
    %28 = vector.broadcast %27 : vector<16x1x8xf32> to vector<16x16x8xf32>
    %29 = arith.subf %23, %28 : vector<16x16x8xf32>
    %30 = arith.mulf %29, %29 : vector<16x16x8xf32>
    %cst_29 = arith.constant dense<0.000000e+00> : vector<16x8xf32>
    %31 = vector.multi_reduction <add>, %30, %cst_29 [1] : vector<16x16x8xf32> to vector<16x8xf32>
    %32 = vector.shape_cast %31 : vector<16x8xf32> to vector<16x1x8xf32>
    %cst_30 = arith.constant 1.600000e+01 : f32
    %33 = vector.broadcast %cst_30 : f32 to vector<16x1x8xf32>
    %34 = arith.divf %32, %33 : vector<16x1x8xf32>
    %35 = vector.broadcast %27 : vector<16x1x8xf32> to vector<16x16x8xf32>
    %36 = arith.subf %23, %35 : vector<16x16x8xf32>
    %cst_31 = arith.constant 9.99999974E-6 : f32
    %37 = vector.broadcast %cst_31 : f32 to vector<16x1x8xf32>
    %38 = arith.addf %34, %37 : vector<16x1x8xf32>
    %39 = math.rsqrt %38 : vector<16x1x8xf32>
    %40 = vector.broadcast %39 : vector<16x1x8xf32> to vector<16x16x8xf32>
    %41 = arith.mulf %36, %40 : vector<16x16x8xf32>
    %c0_32 = arith.constant 0 : index
    %c0_33 = arith.constant 0 : index
    %c0_34 = arith.constant 0 : index
    %42 = vector.load %arg15[%c0_32, %c0_33, %c0_34] : memref<1x16x1xf32, #tpu.memory_space<vmem>>, vector<1x16x1xf32>
    %43 = vector.broadcast %42 : vector<1x16x1xf32> to vector<16x16x8xf32>
    %44 = arith.mulf %41, %43 : vector<16x16x8xf32>
    %c0_35 = arith.constant 0 : index
    %c0_36 = arith.constant 0 : index
    %c0_37 = arith.constant 0 : index
    %45 = vector.load %arg16[%c0_35, %c0_36, %c0_37] : memref<1x16x1xf32, #tpu.memory_space<vmem>>, vector<1x16x1xf32>
    %46 = vector.broadcast %45 : vector<1x16x1xf32> to vector<16x16x8xf32>
    %47 = arith.addf %44, %46 : vector<16x16x8xf32>
    %c0_38 = arith.constant 0 : index
    %c0_39 = arith.constant 0 : index
    %48 = vector.load %arg17[%c0_38, %c0_39] : memref<4x16xf32, #tpu.memory_space<vmem>>, vector<4x16xf32>
    %49 = vector.shape_cast %48 : vector<4x16xf32> to vector<1x4x16xf32>
    %50 = vector.shape_cast %49 : vector<1x4x16xf32> to vector<1x4x16xf32>
    %51 = vector.broadcast %50 : vector<1x4x16xf32> to vector<16x4x16xf32>
    "tpu.trace_start"() <{level = 10 : i32, message = "rhc,rcj->rhj"}> : () -> ()
    %cst_40 = arith.constant dense<0.000000e+00> : vector<16x4x8xf32>
    %52 = tpu.matmul %51, %47, %cst_40 {dimension_numbers = #tpu.dot_dimension_numbers<[2], [1], [1], [2], [0, 0, 0, 1, 1, 2], [0], [0]>} : vector<16x4x16xf32>, vector<16x16x8xf32>, vector<16x4x8xf32> -> vector<16x4x8xf32>
    "tpu.trace_stop"() : () -> ()
    %c0_41 = arith.constant 0 : index
    %c0_42 = arith.constant 0 : index
    %53 = vector.load %arg5[%c0_41, %c0_42] : memref<16x8xf32, #tpu.memory_space<vmem>>, vector<16x8xf32>
    %54 = vector.shape_cast %53 : vector<16x8xf32> to vector<16x1x8xf32>
    %55 = vector.broadcast %54 : vector<16x1x8xf32> to vector<16x4x8xf32>
    %56 = arith.addf %52, %55 : vector<16x4x8xf32>
    %57 = tpu.iota {dimensions = array<i32: 0>} : vector<8x15x8xi32>
    %58 = tpu.iota {dimensions = array<i32: 1>} : vector<8x15x8xi32>
    %59 = tpu.iota {dimensions = array<i32: 2>} : vector<8x15x8xi32>
    %c7_i32 = arith.constant 7 : i32
    %60 = vector.broadcast %c7_i32 : i32 to vector<8x15x8xi32>
    %61 = arith.addi %59, %60 : vector<8x15x8xi32>
    %62 = arith.subi %61, %57 : vector<8x15x8xi32>
    %63 = arith.cmpi eq, %58, %62 : vector<8x15x8xi32>
    %64 = arith.extui %63 : vector<8x15x8xi1> to vector<8x15x8xi32>
    %65 = arith.sitofp %64 : vector<8x15x8xi32> to vector<8x15x8xf32>
    %66 = vector.shape_cast %65 : vector<8x15x8xf32> to vector<1x8x15x8xf32>
    %67 = vector.shape_cast %66 : vector<1x8x15x8xf32> to vector<1x8x15x8xf32>
    %68 = vector.broadcast %67 : vector<1x8x15x8xf32> to vector<2x8x15x8xf32>
    %69 = vector.shape_cast %68 : vector<2x8x15x8xf32> to vector<16x15x8xf32>
    %70 = vector.extract_strided_slice %5 {offsets = [0, 0], sizes = [16, 8], strides = [1, 1]} : vector<16x32xf32> to vector<16x8xf32>
    %c0_43 = arith.constant 0 : index
    %c0_44 = arith.constant 0 : index
    %71 = vector.load %arg14[%c0_43, %c0_44] : memref<4x8xf32, #tpu.memory_space<vmem>>, vector<1x8xf32>
    %72 = vector.broadcast %71 : vector<1x8xf32> to vector<16x8xf32>
    %73 = arith.addf %70, %72 : vector<16x8xf32>
    %74 = vector.extract_strided_slice %20 {offsets = [0, 0], sizes = [15, 8], strides = [1, 1]} : vector<15x32xf32> to vector<15x8xf32>
    %cst_45 = arith.constant dense<0.000000e+00> : vector<16x15xf32>
    %75 = tpu.matmul %73, %74, %cst_45 {dimension_numbers = #tpu.dot_dimension_numbers<[1], [1], [0], [0], [0, 0, 1, 0], [], []>} : vector<16x8xf32>, vector<15x8xf32>, vector<16x15xf32> -> vector<16x15xf32>
    %76 = vector.shape_cast %75 : vector<16x15xf32> to vector<16x1x15xf32>
    %77 = vector.extract_strided_slice %5 {offsets = [0, 8], sizes = [16, 8], strides = [1, 1]} : vector<16x32xf32> to vector<16x8xf32>
    %c1 = arith.constant 1 : index
    %c0_46 = arith.constant 0 : index
    %78 = vector.load %arg14[%c1, %c0_46] : memref<4x8xf32, #tpu.memory_space<vmem>>, vector<1x8xf32>
    %79 = vector.broadcast %78 : vector<1x8xf32> to vector<16x8xf32>
    %80 = arith.addf %77, %79 : vector<16x8xf32>
    %81 = vector.extract_strided_slice %20 {offsets = [0, 8], sizes = [15, 8], strides = [1, 1]} : vector<15x32xf32> to vector<15x8xf32>
    %cst_47 = arith.constant dense<0.000000e+00> : vector<16x15xf32>
    %82 = tpu.matmul %80, %81, %cst_47 {dimension_numbers = #tpu.dot_dimension_numbers<[1], [1], [0], [0], [0, 0, 1, 0], [], []>} : vector<16x8xf32>, vector<15x8xf32>, vector<16x15xf32> -> vector<16x15xf32>
    %83 = vector.shape_cast %82 : vector<16x15xf32> to vector<16x1x15xf32>
    %84 = vector.extract_strided_slice %5 {offsets = [0, 16], sizes = [16, 8], strides = [1, 1]} : vector<16x32xf32> to vector<16x8xf32>
    %c2 = arith.constant 2 : index
    %c0_48 = arith.constant 0 : index
    %85 = vector.load %arg14[%c2, %c0_48] : memref<4x8xf32, #tpu.memory_space<vmem>>, vector<1x8xf32>
    %86 = vector.broadcast %85 : vector<1x8xf32> to vector<16x8xf32>
    %87 = arith.addf %84, %86 : vector<16x8xf32>
    %88 = vector.extract_strided_slice %20 {offsets = [0, 16], sizes = [15, 8], strides = [1, 1]} : vector<15x32xf32> to vector<15x8xf32>
    %cst_49 = arith.constant dense<0.000000e+00> : vector<16x15xf32>
    %89 = tpu.matmul %87, %88, %cst_49 {dimension_numbers = #tpu.dot_dimension_numbers<[1], [1], [0], [0], [0, 0, 1, 0], [], []>} : vector<16x8xf32>, vector<15x8xf32>, vector<16x15xf32> -> vector<16x15xf32>
    %90 = vector.shape_cast %89 : vector<16x15xf32> to vector<16x1x15xf32>
    %91 = vector.extract_strided_slice %5 {offsets = [0, 24], sizes = [16, 8], strides = [1, 1]} : vector<16x32xf32> to vector<16x8xf32>
    %c3 = arith.constant 3 : index
    %c0_50 = arith.constant 0 : index
    %92 = vector.load %arg14[%c3, %c0_50] : memref<4x8xf32, #tpu.memory_space<vmem>>, vector<1x8xf32>
    %93 = vector.broadcast %92 : vector<1x8xf32> to vector<16x8xf32>
    %94 = arith.addf %91, %93 : vector<16x8xf32>
    %95 = vector.extract_strided_slice %20 {offsets = [0, 24], sizes = [15, 8], strides = [1, 1]} : vector<15x32xf32> to vector<15x8xf32>
    %cst_51 = arith.constant dense<0.000000e+00> : vector<16x15xf32>
    %96 = tpu.matmul %94, %95, %cst_51 {dimension_numbers = #tpu.dot_dimension_numbers<[1], [1], [0], [0], [0, 0, 1, 0], [], []>} : vector<16x8xf32>, vector<15x8xf32>, vector<16x15xf32> -> vector<16x15xf32>
    %97 = vector.shape_cast %96 : vector<16x15xf32> to vector<16x1x15xf32>
    %98 = tpu.concatenate %76, %83, %90, %97 in 1 : vector<16x1x15xf32>, vector<16x1x15xf32>, vector<16x1x15xf32>, vector<16x1x15xf32> -> vector<16x4x15xf32>
    "tpu.trace_start"() <{level = 10 : i32, message = "rhk,rkj->rhj"}> : () -> ()
    %cst_52 = arith.constant dense<0.000000e+00> : vector<16x4x8xf32>
    %99 = tpu.matmul %98, %69, %cst_52 {dimension_numbers = #tpu.dot_dimension_numbers<[2], [1], [1], [2], [0, 0, 0, 1, 1, 2], [0], [0]>} : vector<16x4x15xf32>, vector<16x15x8xf32>, vector<16x4x8xf32> -> vector<16x4x8xf32>
    "tpu.trace_stop"() : () -> ()
    %100 = arith.addf %56, %99 : vector<16x4x8xf32>
    %101 = vector.extract_strided_slice %5 {offsets = [0, 0], sizes = [16, 8], strides = [1, 1]} : vector<16x32xf32> to vector<16x8xf32>
    %c0_53 = arith.constant 0 : index
    %c0_54 = arith.constant 0 : index
    %102 = vector.load %arg13[%c0_53, %c0_54] : memref<4x8xf32, #tpu.memory_space<vmem>>, vector<1x8xf32>
    %103 = vector.broadcast %102 : vector<1x8xf32> to vector<16x8xf32>
    %104 = arith.addf %101, %103 : vector<16x8xf32>
    %105 = vector.shape_cast %104 : vector<16x8xf32> to vector<2x8x8xf32>
    %106 = vector.extract_strided_slice %21 {offsets = [0, 0, 0], sizes = [2, 8, 8], strides = [1, 1, 1]} : vector<2x8x32xf32> to vector<2x8x8xf32>
    "tpu.trace_start"() <{level = 10 : i32, message = "bid,bjd->bij"}> : () -> ()
    %cst_55 = arith.constant dense<0.000000e+00> : vector<2x8x8xf32>
    %107 = tpu.matmul %105, %106, %cst_55 {dimension_numbers = #tpu.dot_dimension_numbers<[2], [2], [1], [1], [0, 0, 0, 1, 1, 1], [0], [0]>} : vector<2x8x8xf32>, vector<2x8x8xf32>, vector<2x8x8xf32> -> vector<2x8x8xf32>
    "tpu.trace_stop"() : () -> ()
    %108 = vector.shape_cast %107 : vector<2x8x8xf32> to vector<16x8xf32>
    %109 = vector.extract_strided_slice %100 {offsets = [0, 0, 0], sizes = [16, 1, 8], strides = [1, 1, 1]} : vector<16x4x8xf32> to vector<16x1x8xf32>
    %110 = vector.shape_cast %109 : vector<16x1x8xf32> to vector<16x8xf32>
    %111 = arith.addf %108, %110 : vector<16x8xf32>
    %cst_56 = arith.constant dense<0xFF800000> : vector<16xf32>
    %112 = vector.multi_reduction <maximumf>, %111, %cst_56 [1] : vector<16x8xf32> to vector<16xf32>
    %113 = vector.shape_cast %112 : vector<16xf32> to vector<16x1xf32>
    %114 = vector.broadcast %113 : vector<16x1xf32> to vector<16x8xf32>
    %115 = arith.subf %111, %114 : vector<16x8xf32>
    %116 = math.exp %115 : vector<16x8xf32>
    %cst_57 = arith.constant dense<0.000000e+00> : vector<16xf32>
    %117 = vector.multi_reduction <add>, %116, %cst_57 [1] : vector<16x8xf32> to vector<16xf32>
    %118 = vector.shape_cast %117 : vector<16xf32> to vector<16x1xf32>
    %119 = tpu.reciprocal %118 {approx = true} : vector<16x1xf32> -> vector<16x1xf32>
    %120 = vector.broadcast %119 : vector<16x1xf32> to vector<16x8xf32>
    %121 = arith.mulf %116, %120 : vector<16x8xf32>
    %122 = vector.shape_cast %121 : vector<16x8xf32> to vector<2x8x8xf32>
    %123 = vector.extract_strided_slice %22 {offsets = [0, 0, 0], sizes = [2, 8, 8], strides = [1, 1, 1]} : vector<2x8x32xf32> to vector<2x8x8xf32>
    "tpu.trace_start"() <{level = 10 : i32, message = "bij,bjd->bid"}> : () -> ()
    %cst_58 = arith.constant dense<0.000000e+00> : vector<2x8x8xf32>
    %124 = tpu.matmul %122, %123, %cst_58 {dimension_numbers = #tpu.dot_dimension_numbers<[2], [1], [1], [2], [0, 0, 0, 1, 1, 2], [0], [0]>} : vector<2x8x8xf32>, vector<2x8x8xf32>, vector<2x8x8xf32> -> vector<2x8x8xf32>
    "tpu.trace_stop"() : () -> ()
    %125 = vector.shape_cast %124 : vector<2x8x8xf32> to vector<16x8xf32>
    %c0_59 = arith.constant 0 : index
    %c0_60 = arith.constant 0 : index
    %126 = vector.load %arg21[%c0_59, %c0_60] : memref<16x32xf32, #tpu.memory_space<vmem>>, vector<16x8xf32>
    tpu.vector_store %arg21[%c0_59, %c0_60], %125 {strides = array<i32>} : memref<16x32xf32, #tpu.memory_space<vmem>>, vector<16x8xf32>,
    %127 = vector.extract_strided_slice %5 {offsets = [0, 8], sizes = [16, 8], strides = [1, 1]} : vector<16x32xf32> to vector<16x8xf32>
    %c1_61 = arith.constant 1 : index
    %c0_62 = arith.constant 0 : index
    %128 = vector.load %arg13[%c1_61, %c0_62] : memref<4x8xf32, #tpu.memory_space<vmem>>, vector<1x8xf32>
    %129 = vector.broadcast %128 : vector<1x8xf32> to vector<16x8xf32>
    %130 = arith.addf %127, %129 : vector<16x8xf32>
    %131 = vector.shape_cast %130 : vector<16x8xf32> to vector<2x8x8xf32>
    %132 = vector.extract_strided_slice %21 {offsets = [0, 0, 8], sizes = [2, 8, 8], strides = [1, 1, 1]} : vector<2x8x32xf32> to vector<2x8x8xf32>
    "tpu.trace_start"() <{level = 10 : i32, message = "bid,bjd->bij"}> : () -> ()
    %cst_63 = arith.constant dense<0.000000e+00> : vector<2x8x8xf32>
    %133 = tpu.matmul %131, %132, %cst_63 {dimension_numbers = #tpu.dot_dimension_numbers<[2], [2], [1], [1], [0, 0, 0, 1, 1, 1], [0], [0]>} : vector<2x8x8xf32>, vector<2x8x8xf32>, vector<2x8x8xf32> -> vector<2x8x8xf32>
    "tpu.trace_stop"() : () -> ()
    %134 = vector.shape_cast %133 : vector<2x8x8xf32> to vector<16x8xf32>
    %135 = vector.extract_strided_slice %100 {offsets = [0, 1, 0], sizes = [16, 1, 8], strides = [1, 1, 1]} : vector<16x4x8xf32> to vector<16x1x8xf32>
    %136 = vector.shape_cast %135 : vector<16x1x8xf32> to vector<16x8xf32>
    %137 = arith.addf %134, %136 : vector<16x8xf32>
    %cst_64 = arith.constant dense<0xFF800000> : vector<16xf32>
    %138 = vector.multi_reduction <maximumf>, %137, %cst_64 [1] : vector<16x8xf32> to vector<16xf32>
    %139 = vector.shape_cast %138 : vector<16xf32> to vector<16x1xf32>
    %140 = vector.broadcast %139 : vector<16x1xf32> to vector<16x8xf32>
    %141 = arith.subf %137, %140 : vector<16x8xf32>
    %142 = math.exp %141 : vector<16x8xf32>
    %cst_65 = arith.constant dense<0.000000e+00> : vector<16xf32>
    %143 = vector.multi_reduction <add>, %142, %cst_65 [1] : vector<16x8xf32> to vector<16xf32>
    %144 = vector.shape_cast %143 : vector<16xf32> to vector<16x1xf32>
    %145 = tpu.reciprocal %144 {approx = true} : vector<16x1xf32> -> vector<16x1xf32>
    %146 = vector.broadcast %145 : vector<16x1xf32> to vector<16x8xf32>
    %147 = arith.mulf %142, %146 : vector<16x8xf32>
    %148 = vector.shape_cast %147 : vector<16x8xf32> to vector<2x8x8xf32>
    %149 = vector.extract_strided_slice %22 {offsets = [0, 0, 8], sizes = [2, 8, 8], strides = [1, 1, 1]} : vector<2x8x32xf32> to vector<2x8x8xf32>
    "tpu.trace_start"() <{level = 10 : i32, message = "bij,bjd->bid"}> : () -> ()
    %cst_66 = arith.constant dense<0.000000e+00> : vector<2x8x8xf32>
    %150 = tpu.matmul %148, %149, %cst_66 {dimension_numbers = #tpu.dot_dimension_numbers<[2], [1], [1], [2], [0, 0, 0, 1, 1, 2], [0], [0]>} : vector<2x8x8xf32>, vector<2x8x8xf32>, vector<2x8x8xf32> -> vector<2x8x8xf32>
    "tpu.trace_stop"() : () -> ()
    %151 = vector.shape_cast %150 : vector<2x8x8xf32> to vector<16x8xf32>
    %c0_67 = arith.constant 0 : index
    %c8 = arith.constant 8 : index
    %152 = vector.load %arg21[%c0_67, %c8] : memref<16x32xf32, #tpu.memory_space<vmem>>, vector<16x8xf32>
    tpu.vector_store %arg21[%c0_67, %c8], %151 {strides = array<i32>} : memref<16x32xf32, #tpu.memory_space<vmem>>, vector<16x8xf32>,
    %153 = vector.extract_strided_slice %5 {offsets = [0, 16], sizes = [16, 8], strides = [1, 1]} : vector<16x32xf32> to vector<16x8xf32>
    %c2_68 = arith.constant 2 : index
    %c0_69 = arith.constant 0 : index
    %154 = vector.load %arg13[%c2_68, %c0_69] : memref<4x8xf32, #tpu.memory_space<vmem>>, vector<1x8xf32>
    %155 = vector.broadcast %154 : vector<1x8xf32> to vector<16x8xf32>
    %156 = arith.addf %153, %155 : vector<16x8xf32>
    %157 = vector.shape_cast %156 : vector<16x8xf32> to vector<2x8x8xf32>
    %158 = vector.extract_strided_slice %21 {offsets = [0, 0, 16], sizes = [2, 8, 8], strides = [1, 1, 1]} : vector<2x8x32xf32> to vector<2x8x8xf32>
    "tpu.trace_start"() <{level = 10 : i32, message = "bid,bjd->bij"}> : () -> ()
    %cst_70 = arith.constant dense<0.000000e+00> : vector<2x8x8xf32>
    %159 = tpu.matmul %157, %158, %cst_70 {dimension_numbers = #tpu.dot_dimension_numbers<[2], [2], [1], [1], [0, 0, 0, 1, 1, 1], [0], [0]>} : vector<2x8x8xf32>, vector<2x8x8xf32>, vector<2x8x8xf32> -> vector<2x8x8xf32>
    "tpu.trace_stop"() : () -> ()
    %160 = vector.shape_cast %159 : vector<2x8x8xf32> to vector<16x8xf32>
    %161 = vector.extract_strided_slice %100 {offsets = [0, 2, 0], sizes = [16, 1, 8], strides = [1, 1, 1]} : vector<16x4x8xf32> to vector<16x1x8xf32>
    %162 = vector.shape_cast %161 : vector<16x1x8xf32> to vector<16x8xf32>
    %163 = arith.addf %160, %162 : vector<16x8xf32>
    %cst_71 = arith.constant dense<0xFF800000> : vector<16xf32>
    %164 = vector.multi_reduction <maximumf>, %163, %cst_71 [1] : vector<16x8xf32> to vector<16xf32>
    %165 = vector.shape_cast %164 : vector<16xf32> to vector<16x1xf32>
    %166 = vector.broadcast %165 : vector<16x1xf32> to vector<16x8xf32>
    %167 = arith.subf %163, %166 : vector<16x8xf32>
    %168 = math.exp %167 : vector<16x8xf32>
    %cst_72 = arith.constant dense<0.000000e+00> : vector<16xf32>
    %169 = vector.multi_reduction <add>, %168, %cst_72 [1] : vector<16x8xf32> to vector<16xf32>
    %170 = vector.shape_cast %169 : vector<16xf32> to vector<16x1xf32>
    %171 = tpu.reciprocal %170 {approx = true} : vector<16x1xf32> -> vector<16x1xf32>
    %172 = vector.broadcast %171 : vector<16x1xf32> to vector<16x8xf32>
    %173 = arith.mulf %168, %172 : vector<16x8xf32>
    %174 = vector.shape_cast %173 : vector<16x8xf32> to vector<2x8x8xf32>
    %175 = vector.extract_strided_slice %22 {offsets = [0, 0, 16], sizes = [2, 8, 8], strides = [1, 1, 1]} : vector<2x8x32xf32> to vector<2x8x8xf32>
    "tpu.trace_start"() <{level = 10 : i32, message = "bij,bjd->bid"}> : () -> ()
    %cst_73 = arith.constant dense<0.000000e+00> : vector<2x8x8xf32>
    %176 = tpu.matmul %174, %175, %cst_73 {dimension_numbers = #tpu.dot_dimension_numbers<[2], [1], [1], [2], [0, 0, 0, 1, 1, 2], [0], [0]>} : vector<2x8x8xf32>, vector<2x8x8xf32>, vector<2x8x8xf32> -> vector<2x8x8xf32>
    "tpu.trace_stop"() : () -> ()
    %177 = vector.shape_cast %176 : vector<2x8x8xf32> to vector<16x8xf32>
    %c0_74 = arith.constant 0 : index
    %c16 = arith.constant 16 : index
    %178 = vector.load %arg21[%c0_74, %c16] : memref<16x32xf32, #tpu.memory_space<vmem>>, vector<16x8xf32>
    tpu.vector_store %arg21[%c0_74, %c16], %177 {strides = array<i32>} : memref<16x32xf32, #tpu.memory_space<vmem>>, vector<16x8xf32>,
    %179 = vector.extract_strided_slice %5 {offsets = [0, 24], sizes = [16, 8], strides = [1, 1]} : vector<16x32xf32> to vector<16x8xf32>
    %c3_75 = arith.constant 3 : index
    %c0_76 = arith.constant 0 : index
    %180 = vector.load %arg13[%c3_75, %c0_76] : memref<4x8xf32, #tpu.memory_space<vmem>>, vector<1x8xf32>
    %181 = vector.broadcast %180 : vector<1x8xf32> to vector<16x8xf32>
    %182 = arith.addf %179, %181 : vector<16x8xf32>
    %183 = vector.shape_cast %182 : vector<16x8xf32> to vector<2x8x8xf32>
    %184 = vector.extract_strided_slice %21 {offsets = [0, 0, 24], sizes = [2, 8, 8], strides = [1, 1, 1]} : vector<2x8x32xf32> to vector<2x8x8xf32>
    "tpu.trace_start"() <{level = 10 : i32, message = "bid,bjd->bij"}> : () -> ()
    %cst_77 = arith.constant dense<0.000000e+00> : vector<2x8x8xf32>
    %185 = tpu.matmul %183, %184, %cst_77 {dimension_numbers = #tpu.dot_dimension_numbers<[2], [2], [1], [1], [0, 0, 0, 1, 1, 1], [0], [0]>} : vector<2x8x8xf32>, vector<2x8x8xf32>, vector<2x8x8xf32> -> vector<2x8x8xf32>
    "tpu.trace_stop"() : () -> ()
    %186 = vector.shape_cast %185 : vector<2x8x8xf32> to vector<16x8xf32>
    %187 = vector.extract_strided_slice %100 {offsets = [0, 3, 0], sizes = [16, 1, 8], strides = [1, 1, 1]} : vector<16x4x8xf32> to vector<16x1x8xf32>
    %188 = vector.shape_cast %187 : vector<16x1x8xf32> to vector<16x8xf32>
    %189 = arith.addf %186, %188 : vector<16x8xf32>
    %cst_78 = arith.constant dense<0xFF800000> : vector<16xf32>
    %190 = vector.multi_reduction <maximumf>, %189, %cst_78 [1] : vector<16x8xf32> to vector<16xf32>
    %191 = vector.shape_cast %190 : vector<16xf32> to vector<16x1xf32>
    %192 = vector.broadcast %191 : vector<16x1xf32> to vector<16x8xf32>
    %193 = arith.subf %189, %192 : vector<16x8xf32>
    %194 = math.exp %193 : vector<16x8xf32>
    %cst_79 = arith.constant dense<0.000000e+00> : vector<16xf32>
    %195 = vector.multi_reduction <add>, %194, %cst_79 [1] : vector<16x8xf32> to vector<16xf32>
    %196 = vector.shape_cast %195 : vector<16xf32> to vector<16x1xf32>
    %197 = tpu.reciprocal %196 {approx = true} : vector<16x1xf32> -> vector<16x1xf32>
    %198 = vector.broadcast %197 : vector<16x1xf32> to vector<16x8xf32>
    %199 = arith.mulf %194, %198 : vector<16x8xf32>
    %200 = vector.shape_cast %199 : vector<16x8xf32> to vector<2x8x8xf32>
    %201 = vector.extract_strided_slice %22 {offsets = [0, 0, 24], sizes = [2, 8, 8], strides = [1, 1, 1]} : vector<2x8x32xf32> to vector<2x8x8xf32>
    "tpu.trace_start"() <{level = 10 : i32, message = "bij,bjd->bid"}> : () -> ()
    %cst_80 = arith.constant dense<0.000000e+00> : vector<2x8x8xf32>
    %202 = tpu.matmul %200, %201, %cst_80 {dimension_numbers = #tpu.dot_dimension_numbers<[2], [1], [1], [2], [0, 0, 0, 1, 1, 2], [0], [0]>} : vector<2x8x8xf32>, vector<2x8x8xf32>, vector<2x8x8xf32> -> vector<2x8x8xf32>
    "tpu.trace_stop"() : () -> ()
    %203 = vector.shape_cast %202 : vector<2x8x8xf32> to vector<16x8xf32>
    %c0_81 = arith.constant 0 : index
    %c24 = arith.constant 24 : index
    %204 = vector.load %arg21[%c0_81, %c24] : memref<16x32xf32, #tpu.memory_space<vmem>>, vector<16x8xf32>
    tpu.vector_store %arg21[%c0_81, %c24], %203 {strides = array<i32>} : memref<16x32xf32, #tpu.memory_space<vmem>>, vector<16x8xf32>,
    %c0_82 = arith.constant 0 : index
    %c0_83 = arith.constant 0 : index
    %205 = vector.load %arg21[%c0_82, %c0_83] : memref<16x32xf32, #tpu.memory_space<vmem>>, vector<16x32xf32>
    %c0_84 = arith.constant 0 : index
    %c0_85 = arith.constant 0 : index
    %206 = vector.load %arg18[%c0_84, %c0_85] : memref<32x32xf32, #tpu.memory_space<vmem>>, vector<32x32xf32>
    %cst_86 = arith.constant dense<0.000000e+00> : vector<16x32xf32>
    %207 = tpu.matmul %205, %206, %cst_86 {dimension_numbers = #tpu.dot_dimension_numbers<[1], [0], [0], [1], [0, 0, 1, 1], [], []>} : vector<16x32xf32>, vector<32x32xf32>, vector<16x32xf32> -> vector<16x32xf32>
    %c0_87 = arith.constant 0 : index
    %c0_88 = arith.constant 0 : index
    %208 = vector.load %arg19[%c0_87, %c0_88] : memref<1x32xf32, #tpu.memory_space<vmem>>, vector<1x32xf32>
    %209 = vector.broadcast %208 : vector<1x32xf32> to vector<16x32xf32>
    %210 = arith.addf %207, %209 : vector<16x32xf32>
    %c0_89 = arith.constant 0 : index
    %c0_90 = arith.constant 0 : index
    %211 = vector.load %arg20[%c0_89, %c0_90] : memref<16x32xf32, #tpu.memory_space<vmem>>, vector<16x32xf32>
    tpu.vector_store %arg20[%c0_89, %c0_90], %210 {strides = array<i32>} : memref<16x32xf32, #tpu.memory_space<vmem>>, vector<16x32xf32>,
    return
  }
}

</mosaic_0001>

<llo_original>
// kernel: tpu_custom_call.1
$region0: #{tpu_custom_call.1}
  #allocation0 [shape = 'u32[]', space=smem, size = 0x4, offset = 0x4, fixed_abs, tag = 'smem constant byte address 0x4 - core index']
  #allocation1 [shape = 'u32[144,128]{1,0:T(1,128)}', space=vmem, size = 0x12000, scoped, tag = 'internal scratch']
  #allocation2 [shape = 'f32[16,32]{1,0:T(8,128)}', space=vmem, size = 0x2000, scoped, tag = 'scratch operand']
  %s0 = inlined_call_operand.vmem [shape: f32[16,32], index: 0, kind: input, shape index: {}]
  %s1 = inlined_call_operand.vmem [shape: f32[16,32], index: 1, kind: input, shape index: {}]
  %s2 = inlined_call_operand.vmem [shape: f32[16,32], index: 2, kind: input, shape index: {}]
  %s3 = inlined_call_operand.vmem [shape: f32[15,32], index: 3, kind: input, shape index: {}]
  %s4 = inlined_call_operand.vmem [shape: f32[16,16,8], index: 4, kind: input, shape index: {}]
  %s5 = inlined_call_operand.vmem [shape: f32[16,8], index: 5, kind: input, shape index: {}]
  %s6 = inlined_call_operand.vmem [shape: f32[32,32], index: 6, kind: input, shape index: {}]
  %s7 = inlined_call_operand.vmem [shape: f32[1,32], index: 7, kind: input, shape index: {}]
  %s8 = inlined_call_operand.vmem [shape: f32[32,32], index: 8, kind: input, shape index: {}]
  %s9 = inlined_call_operand.vmem [shape: f32[1,32], index: 9, kind: input, shape index: {}]
  %s10 = inlined_call_operand.vmem [shape: f32[32,32], index: 10, kind: input, shape index: {}]
  %s11 = inlined_call_operand.vmem [shape: f32[1,32], index: 11, kind: input, shape index: {}]
  %s12 = inlined_call_operand.vmem [shape: f32[32,32], index: 12, kind: input, shape index: {}]
  %s13 = inlined_call_operand.vmem [shape: f32[4,8], index: 13, kind: input, shape index: {}]
  %s14 = inlined_call_operand.vmem [shape: f32[4,8], index: 14, kind: input, shape index: {}]
  %s15 = inlined_call_operand.vmem [shape: f32[1,16,1], index: 15, kind: input, shape index: {}]
  %s16 = inlined_call_operand.vmem [shape: f32[1,16,1], index: 16, kind: input, shape index: {}]
  %s17 = inlined_call_operand.vmem [shape: f32[4,16], index: 17, kind: input, shape index: {}]
  %s18 = inlined_call_operand.vmem [shape: f32[32,32], index: 18, kind: input, shape index: {}]
  %s19 = inlined_call_operand.vmem [shape: f32[1,32], index: 19, kind: input, shape index: {}]
  %s20 = inlined_call_operand.hbm [shape: f32[16,32], index: 20, kind: output, shape index: {}]
  %s21 = sld [smem:[#allocation0]]
  $region90: #{tpu_custom_call.1} parent=0
    _
  %s23 = ssub.s32 1, %s21
  %s24 = scalar_select 0, %s23, %s21
  $region1: #{tpu_custom_call.1} parent=0
    #allocation3 [shape = 'u8[8192]{0}', space=vmem, size = 0x2000, scoped, tag = 'output window, operand 0, single buffered']
    #allocation4 [shape = 's32[1]{0}', space=sflag, size = 0x4, scoped, tag = 'scoped memory for tpu_custom_call.1']
    %25 = vsyncpa [#allocation4], 0
    // Predicated region
    $region2: #{tpu_custom_call.1} parent=1 // pred_check
      _
    $region3: #{tpu_custom_call.1} parent=1 // pred_check_branch
      %27 = sbr.rel (0) target = $region5
    $region4: #{tpu_custom_call.1} parent=1 // pred_region
      _
    $region5: #{tpu_custom_call.1} parent=1 // pred_fallthru
      _
    // Predicated region
    $region6: #{tpu_custom_call.1} parent=1 // pred_check
      _
    $region7: #{tpu_custom_call.1} parent=1 // pred_check_branch
      %29 = sbr.rel (0) target = $region9
    $region8: #{tpu_custom_call.1} parent=1 // pred_region
      _
    $region9: #{tpu_custom_call.1} parent=1 // pred_fallthru
      _
    // Predicated region
    $region10: #{tpu_custom_call.1} parent=1 // pred_check
      _
    $region11: #{tpu_custom_call.1} parent=1 // pred_check_branch
      %31 = sbr.rel (0) target = $region13
    $region12: #{tpu_custom_call.1} parent=1 // pred_region
      _
    $region13: #{tpu_custom_call.1} parent=1 // pred_fallthru
      _
    // Predicated region
    $region14: #{tpu_custom_call.1} parent=1 // pred_check
      _
    $region15: #{tpu_custom_call.1} parent=1 // pred_check_branch
      %33 = sbr.rel (0) target = $region17
    $region16: #{tpu_custom_call.1} parent=1 // pred_region
      _
    $region17: #{tpu_custom_call.1} parent=1 // pred_fallthru
      _
    // Predicated region
    $region18: #{tpu_custom_call.1} parent=1 // pred_check
      _
    $region19: #{tpu_custom_call.1} parent=1 // pred_check_branch
      %35 = sbr.rel (0) target = $region21
    $region20: #{tpu_custom_call.1} parent=1 // pred_region
      _
    $region21: #{tpu_custom_call.1} parent=1 // pred_fallthru
      _
    // Predicated region
    $region22: #{tpu_custom_call.1} parent=1 // pred_check
      _
    $region23: #{tpu_custom_call.1} parent=1 // pred_check_branch
      %37 = sbr.rel (0) target = $region25
    $region24: #{tpu_custom_call.1} parent=1 // pred_region
      _
    $region25: #{tpu_custom_call.1} parent=1 // pred_fallthru
      _
    // Predicated region
    $region26: #{tpu_custom_call.1} parent=1 // pred_check
      _
    $region27: #{tpu_custom_call.1} parent=1 // pred_check_branch
      %39 = sbr.rel (0) target = $region29
    $region28: #{tpu_custom_call.1} parent=1 // pred_region
      _
    $region29: #{tpu_custom_call.1} parent=1 // pred_fallthru
      _
    // Predicated region
    $region30: #{tpu_custom_call.1} parent=1 // pred_check
      _
    $region31: #{tpu_custom_call.1} parent=1 // pred_check_branch
      %41 = sbr.rel (0) target = $region33
    $region32: #{tpu_custom_call.1} parent=1 // pred_region
      _
    $region33: #{tpu_custom_call.1} parent=1 // pred_fallthru
      _
    // Predicated region
    $region34: #{tpu_custom_call.1} parent=1 // pred_check
      _
    $region35: #{tpu_custom_call.1} parent=1 // pred_check_branch
      %43 = sbr.rel (0) target = $region37
    $region36: #{tpu_custom_call.1} parent=1 // pred_region
      _
    $region37: #{tpu_custom_call.1} parent=1 // pred_fallthru
      _
    // Predicated region
    $region38: #{tpu_custom_call.1} parent=1 // pred_check
      _
    $region39: #{tpu_custom_call.1} parent=1 // pred_check_branch
      %45 = sbr.rel (0) target = $region41
    $region40: #{tpu_custom_call.1} parent=1 // pred_region
      _
    $region41: #{tpu_custom_call.1} parent=1 // pred_fallthru
      _
    // Predicated region
    $region42: #{tpu_custom_call.1} parent=1 // pred_check
      _
    $region43: #{tpu_custom_call.1} parent=1 // pred_check_branch
      %47 = sbr.rel (0) target = $region45
    $region44: #{tpu_custom_call.1} parent=1 // pred_region
      _
    $region45: #{tpu_custom_call.1} parent=1 // pred_fallthru
      _
    // Predicated region
    $region46: #{tpu_custom_call.1} parent=1 // pred_check
      _
    $region47: #{tpu_custom_call.1} parent=1 // pred_check_branch
      %49 = sbr.rel (0) target = $region49
    $region48: #{tpu_custom_call.1} parent=1 // pred_region
      _
    $region49: #{tpu_custom_call.1} parent=1 // pred_fallthru
      _
    // Predicated region
    $region50: #{tpu_custom_call.1} parent=1 // pred_check
      _
    $region51: #{tpu_custom_call.1} parent=1 // pred_check_branch
      %51 = sbr.rel (0) target = $region53
    $region52: #{tpu_custom_call.1} parent=1 // pred_region
      _
    $region53: #{tpu_custom_call.1} parent=1 // pred_fallthru
      _
    // Predicated region
    $region54: #{tpu_custom_call.1} parent=1 // pred_check
      _
    $region55: #{tpu_custom_call.1} parent=1 // pred_check_branch
      %53 = sbr.rel (0) target = $region57
    $region56: #{tpu_custom_call.1} parent=1 // pred_region
      _
    $region57: #{tpu_custom_call.1} parent=1 // pred_fallthru
      _
    // Predicated region
    $region58: #{tpu_custom_call.1} parent=1 // pred_check
      _
    $region59: #{tpu_custom_call.1} parent=1 // pred_check_branch
      %55 = sbr.rel (0) target = $region61
    $region60: #{tpu_custom_call.1} parent=1 // pred_region
      _
    $region61: #{tpu_custom_call.1} parent=1 // pred_fallthru
      _
    // Predicated region
    $region62: #{tpu_custom_call.1} parent=1 // pred_check
      _
    $region63: #{tpu_custom_call.1} parent=1 // pred_check_branch
      %57 = sbr.rel (0) target = $region65
    $region64: #{tpu_custom_call.1} parent=1 // pred_region
      _
    $region65: #{tpu_custom_call.1} parent=1 // pred_fallthru
      _
    // Predicated region
    $region66: #{tpu_custom_call.1} parent=1 // pred_check
      _
    $region67: #{tpu_custom_call.1} parent=1 // pred_check_branch
      %59 = sbr.rel (0) target = $region69
    $region68: #{tpu_custom_call.1} parent=1 // pred_region
      _
    $region69: #{tpu_custom_call.1} parent=1 // pred_fallthru
      _
    // Predicated region
    $region70: #{tpu_custom_call.1} parent=1 // pred_check
      _
    $region71: #{tpu_custom_call.1} parent=1 // pred_check_branch
      %61 = sbr.rel (0) target = $region73
    $region72: #{tpu_custom_call.1} parent=1 // pred_region
      _
    $region73: #{tpu_custom_call.1} parent=1 // pred_fallthru
      _
    // Predicated region
    $region74: #{tpu_custom_call.1} parent=1 // pred_check
      _
    $region75: #{tpu_custom_call.1} parent=1 // pred_check_branch
      %63 = sbr.rel (0) target = $region77
    $region76: #{tpu_custom_call.1} parent=1 // pred_region
      _
    $region77: #{tpu_custom_call.1} parent=1 // pred_fallthru
      _
    // Predicated region
    $region78: #{tpu_custom_call.1} parent=1 // pred_check
      _
    $region79: #{tpu_custom_call.1} parent=1 // pred_check_branch
      %65 = sbr.rel (0) target = $region81
    $region80: #{tpu_custom_call.1} parent=1 // pred_region
      _
    $region81: #{tpu_custom_call.1} parent=1 // pred_fallthru
      _
    %v66 = vld [vmem:[%s0] sm:$0xff]
    %v67 = vld [vmem:[%s0 + $0x8] sm:$0xff]
    %v68 = vld [vmem:[%s6] sm:$0xff]
    %v69 = vld [vmem:[%s6 + $0x8] sm:$0xff]
    %v70 = vld [vmem:[%s6 + $0x10] sm:$0xff]
    %v71 = vld [vmem:[%s6 + $0x18] sm:$0xff]
    %v72 = vld [vmem:[%s7] sm:$0x1]
    %v74 = vlaneseq
    %v75 = vshrl.u32 %v74, 7
    %v76 = vsub.s32 0, %v75
    %v77 = vrot.slane %v72, %v76
    %vm79 = vcmask 261120
    %v81 = vsel %vm79, %v66, 0
    %v84 = vsel %vm79, %v67, 0
    %86 = vmatprep.subr.mxu0 0.0
    %87 = vmatpush1.msra.mxu0 %v68
    %88 = vmatprep.subr.mxu0 0.0
    %89 = vmatpush1.msra.mxu0 %v69
    %90 = vmatprep.subr.mxu0 0.0
    %91 = vmatpush1.msra.mxu0 %v70
    %92 = vmatprep.subr.mxu0 0.0
    %93 = vmatpush1.msra.mxu0 %v71
    %94 = vmatprep.subr.mxu0 0.0
    %95 = vmatpush1.msra.mxu0 0.0
    %96 = vmatprep.subr.mxu0 0.0
    %97 = vmatpush1.msra.mxu0 0.0
    %98 = vmatprep.subr.mxu0 0.0
    %99 = vmatpush1.msra.mxu0 0.0
    %100 = vmatprep.subr.mxu0 0.0
    %101 = vmatpush1.msra.mxu0 0.0
    %102 = vmatprep.subr.mxu0 0.0
    %103 = vmatpush1.msra.mxu0 0.0
    %104 = vmatprep.subr.mxu0 0.0
    %105 = vmatpush1.msra.mxu0 0.0
    %106 = vmatprep.subr.mxu0 0.0
    %107 = vmatpush1.msra.mxu0 0.0
    %108 = vmatprep.subr.mxu0 0.0
    %109 = vmatpush1.msra.mxu0 0.0
    %110 = vmatprep.subr.mxu0 0.0
    %111 = vmatpush1.msra.mxu0 0.0
    %112 = vmatprep.subr.mxu0 0.0
    %113 = vmatpush1.msra.mxu0 0.0
    %114 = vmatprep.subr.mxu0 0.0
    %115 = vmatpush1.msra.mxu0 0.0
    %116 = vmatprep.subr.mxu0 0.0
    %117 = vmatpush1.msra.mxu0 0.0
    %118 = vmatprep.subr.mxu0 0.0
    %119 = vmatpush1.msra.mxu0 0.0
    %120 = vmatprep.subr.mxu0 0.0
    %121 = vmatpush1.msra.mxu0 0.0
    %122 = vmatprep.subr.mxu0 0.0
    %123 = vmatpush1.msra.mxu0 0.0
    %124 = vmatprep.subr.mxu0 0.0
    %125 = vmatpush1.msra.mxu0 0.0
    %126 = vmatprep.subr.mxu0 0.0
    %127 = vmatpush1.msra.mxu0 0.0
    %128 = vmatprep.subr.mxu0 0.0
    %129 = vmatpush1.msra.mxu0 0.0
    %130 = vmatprep.subr.mxu0 0.0
    %131 = vmatpush1.msra.mxu0 0.0
    %132 = vmatprep.subr.mxu0 0.0
    %133 = vmatpush1.msra.mxu0 0.0
    %134 = vmatprep.subr.mxu0 0.0
    %135 = vmatpush1.msra.mxu0 0.0
    %136 = vmatprep.subr.mxu0 0.0
    %137 = vmatpush1.msra.mxu0 0.0
    %138 = vmatprep.subr.mxu0 0.0
    %139 = vmatpush1.msra.mxu0 0.0
    %140 = vmatprep.subr.mxu0 0.0
    %141 = vmatpush1.msra.mxu0 0.0
    %142 = vmatprep.subr.mxu0 0.0
    %143 = vmatpush1.msra.mxu0 0.0
    %144 = vmatprep.subr.mxu0 0.0
    %145 = vmatpush1.msra.mxu0 0.0
    %146 = vmatprep.subr.mxu0 0.0
    %147 = vmatpush1.msra.mxu0 0.0
    %148 = vmatprep.subr.mxu0 0.0
    %149 = vmatpush1.msra.mxu0 0.0
    %150 = vmatprep.mubr.f32.mxu0 0.0
    %151 = vmatmul.mubr.f32.gmra.mrb[0].mxu0 %v81
    %v152 = vpop.f32.mrb[0].mxu0
    %v153 = vadd.f32 %v77, %v152
    %v154 = vpop.f32.mrb[0].mxu0
    %155 = vmatprep.mubr.f32.mxu0 0.0
    %156 = vmatmul.mubr.f32.gmra.mrb[0].mxu0 %v84
    %v157 = vpop.f32.mrb[0].mxu0
    %v158 = vadd.f32 %v77, %v157
    %v159 = vpop.f32.mrb[0].mxu0
    %160 = vdwg.mxu0
    %v161 = vld [vmem:[%s1] sm:$0xff]
    %v162 = vld [vmem:[%s1 + $0x8] sm:$0xff]
    %v163 = vld [vmem:[%s8] sm:$0xff]
    %v164 = vld [vmem:[%s8 + $0x8] sm:$0xff]
    %v165 = vld [vmem:[%s8 + $0x10] sm:$0xff]
    %v166 = vld [vmem:[%s8 + $0x18] sm:$0xff]
    %v167 = vld [vmem:[%s9] sm:$0x1]
    %v169 = vlaneseq
    %v170 = vshrl.u32 %v169, 7
    %v171 = vsub.s32 0, %v170
    %v172 = vrot.slane %v167, %v171
    %v175 = vsel %vm79, %v161, 0
    %v178 = vsel %vm79, %v162, 0
    %180 = vmatprep.subr.mxu0 0.0
    %181 = vmatpush1.msra.mxu0 %v163
    %182 = vmatprep.subr.mxu0 0.0
    %183 = vmatpush1.msra.mxu0 %v164
    %184 = vmatprep.subr.mxu0 0.0
    %185 = vmatpush1.msra.mxu0 %v165
    %186 = vmatprep.subr.mxu0 0.0
    %187 = vmatpush1.msra.mxu0 %v166
    %188 = vmatprep.subr.mxu0 0.0
    %189 = vmatpush1.msra.mxu0 0.0
    %190 = vmatprep.subr.mxu0 0.0
    %191 = vmatpush1.msra.mxu0 0.0
    %192 = vmatprep.subr.mxu0 0.0
    %193 = vmatpush1.msra.mxu0 0.0
    %194 = vmatprep.subr.mxu0 0.0
    %195 = vmatpush1.msra.mxu0 0.0
    %196 = vmatprep.subr.mxu0 0.0
    %197 = vmatpush1.msra.mxu0 0.0
    %198 = vmatprep.subr.mxu0 0.0
    %199 = vmatpush1.msra.mxu0 0.0
    %200 = vmatprep.subr.mxu0 0.0
    %201 = vmatpush1.msra.mxu0 0.0
    %202 = vmatprep.subr.mxu0 0.0
    %203 = vmatpush1.msra.mxu0 0.0
    %204 = vmatprep.subr.mxu0 0.0
    %205 = vmatpush1.msra.mxu0 0.0
    %206 = vmatprep.subr.mxu0 0.0
    %207 = vmatpush1.msra.mxu0 0.0
    %208 = vmatprep.subr.mxu0 0.0
    %209 = vmatpush1.msra.mxu0 0.0
    %210 = vmatprep.subr.mxu0 0.0
    %211 = vmatpush1.msra.mxu0 0.0
    %212 = vmatprep.subr.mxu0 0.0
    %213 = vmatpush1.msra.mxu0 0.0
    %214 = vmatprep.subr.mxu0 0.0
    %215 = vmatpush1.msra.mxu0 0.0
    %216 = vmatprep.subr.mxu0 0.0
    %217 = vmatpush1.msra.mxu0 0.0
    %218 = vmatprep.subr.mxu0 0.0
    %219 = vmatpush1.msra.mxu0 0.0
    %220 = vmatprep.subr.mxu0 0.0
    %221 = vmatpush1.msra.mxu0 0.0
    %222 = vmatprep.subr.mxu0 0.0
    %223 = vmatpush1.msra.mxu0 0.0
    %224 = vmatprep.subr.mxu0 0.0
    %225 = vmatpush1.msra.mxu0 0.0
    %226 = vmatprep.subr.mxu0 0.0
    %227 = vmatpush1.msra.mxu0 0.0
    %228 = vmatprep.subr.mxu0 0.0
    %229 = vmatpush1.msra.mxu0 0.0
    %230 = vmatprep.subr.mxu0 0.0
    %231 = vmatpush1.msra.mxu0 0.0
    %232 = vmatprep.subr.mxu0 0.0
    %233 = vmatpush1.msra.mxu0 0.0
    %234 = vmatprep.subr.mxu0 0.0
    %235 = vmatpush1.msra.mxu0 0.0
    %236 = vmatprep.subr.mxu0 0.0
    %237 = vmatpush1.msra.mxu0 0.0
    %238 = vmatprep.subr.mxu0 0.0
    %239 = vmatpush1.msra.mxu0 0.0
    %240 = vmatprep.subr.mxu0 0.0
    %241 = vmatpush1.msra.mxu0 0.0
    %242 = vmatprep.subr.mxu0 0.0
    %243 = vmatpush1.msra.mxu0 0.0
    %244 = vmatprep.mubr.f32.mxu0 0.0
    %245 = vmatmul.mubr.f32.gmra.mrb[0].mxu0 %v175
    %v246 = vpop.f32.mrb[0].mxu0
    %v247 = vadd.f32 %v172, %v246
    %v248 = vpop.f32.mrb[0].mxu0
    %249 = vmatprep.mubr.f32.mxu0 0.0
    %250 = vmatmul.mubr.f32.gmra.mrb[0].mxu0 %v178
    %v251 = vpop.f32.mrb[0].mxu0
    %v252 = vadd.f32 %v172, %v251
    %v253 = vpop.f32.mrb[0].mxu0
    %254 = vdwg.mxu0
    %v255 = vld [vmem:[%s2] sm:$0xff]
    %v256 = vld [vmem:[%s2 + $0x8] sm:$0xff]
    %v257 = vld [vmem:[%s10] sm:$0xff]
    %v258 = vld [vmem:[%s10 + $0x8] sm:$0xff]
    %v259 = vld [vmem:[%s10 + $0x10] sm:$0xff]
    %v260 = vld [vmem:[%s10 + $0x18] sm:$0xff]
    %v261 = vld [vmem:[%s11] sm:$0x1]
    %v263 = vlaneseq
    %v264 = vshrl.u32 %v263, 7
    %v265 = vsub.s32 0, %v264
    %v266 = vrot.slane %v261, %v265
    %v269 = vsel %vm79, %v255, 0
    %v272 = vsel %vm79, %v256, 0
    %274 = vmatprep.subr.mxu0 0.0
    %275 = vmatpush1.msra.mxu0 %v257
    %276 = vmatprep.subr.mxu0 0.0
    %277 = vmatpush1.msra.mxu0 %v258
    %278 = vmatprep.subr.mxu0 0.0
    %279 = vmatpush1.msra.mxu0 %v259
    %280 = vmatprep.subr.mxu0 0.0
    %281 = vmatpush1.msra.mxu0 %v260
    %282 = vmatprep.subr.mxu0 0.0
    %283 = vmatpush1.msra.mxu0 0.0
    %284 = vmatprep.subr.mxu0 0.0
    %285 = vmatpush1.msra.mxu0 0.0
    %286 = vmatprep.subr.mxu0 0.0
    %287 = vmatpush1.msra.mxu0 0.0
    %288 = vmatprep.subr.mxu0 0.0
    %289 = vmatpush1.msra.mxu0 0.0
    %290 = vmatprep.subr.mxu0 0.0
    %291 = vmatpush1.msra.mxu0 0.0
    %292 = vmatprep.subr.mxu0 0.0
    %293 = vmatpush1.msra.mxu0 0.0
    %294 = vmatprep.subr.mxu0 0.0
    %295 = vmatpush1.msra.mxu0 0.0
    %296 = vmatprep.subr.mxu0 0.0
    %297 = vmatpush1.msra.mxu0 0.0
    %298 = vmatprep.subr.mxu0 0.0
    %299 = vmatpush1.msra.mxu0 0.0
    %300 = vmatprep.subr.mxu0 0.0
    %301 = vmatpush1.msra.mxu0 0.0
    %302 = vmatprep.subr.mxu0 0.0
    %303 = vmatpush1.msra.mxu0 0.0
    %304 = vmatprep.subr.mxu0 0.0
    %305 = vmatpush1.msra.mxu0 0.0
    %306 = vmatprep.subr.mxu0 0.0
    %307 = vmatpush1.msra.mxu0 0.0
    %308 = vmatprep.subr.mxu0 0.0
    %309 = vmatpush1.msra.mxu0 0.0
    %310 = vmatprep.subr.mxu0 0.0
    %311 = vmatpush1.msra.mxu0 0.0
    %312 = vmatprep.subr.mxu0 0.0
    %313 = vmatpush1.msra.mxu0 0.0
    %314 = vmatprep.subr.mxu0 0.0
    %315 = vmatpush1.msra.mxu0 0.0
    %316 = vmatprep.subr.mxu0 0.0
    %317 = vmatpush1.msra.mxu0 0.0
    %318 = vmatprep.subr.mxu0 0.0
    %319 = vmatpush1.msra.mxu0 0.0
    %320 = vmatprep.subr.mxu0 0.0
    %321 = vmatpush1.msra.mxu0 0.0
    %322 = vmatprep.subr.mxu0 0.0
    %323 = vmatpush1.msra.mxu0 0.0
    %324 = vmatprep.subr.mxu0 0.0
    %325 = vmatpush1.msra.mxu0 0.0
    %326 = vmatprep.subr.mxu0 0.0
    %327 = vmatpush1.msra.mxu0 0.0
    %328 = vmatprep.subr.mxu0 0.0
    %329 = vmatpush1.msra.mxu0 0.0
    %330 = vmatprep.subr.mxu0 0.0
    %331 = vmatpush1.msra.mxu0 0.0
    %332 = vmatprep.subr.mxu0 0.0
    %333 = vmatpush1.msra.mxu0 0.0
    %334 = vmatprep.subr.mxu0 0.0
    %335 = vmatpush1.msra.mxu0 0.0
    %336 = vmatprep.subr.mxu0 0.0
    %337 = vmatpush1.msra.mxu0 0.0
    %338 = vmatprep.mubr.f32.mxu0 0.0
    %339 = vmatmul.mubr.f32.gmra.mrb[0].mxu0 %v269
    %v340 = vpop.f32.mrb[0].mxu0
    %v341 = vadd.f32 %v266, %v340
    %v342 = vpop.f32.mrb[0].mxu0
    %343 = vmatprep.mubr.f32.mxu0 0.0
    %344 = vmatmul.mubr.f32.gmra.mrb[0].mxu0 %v272
    %v345 = vpop.f32.mrb[0].mxu0
    %v346 = vadd.f32 %v266, %v345
    %v347 = vpop.f32.mrb[0].mxu0
    %348 = vdwg.mxu0
    %v349 = vld [vmem:[%s3] sm:$0xff]
    %v350 = vld [vmem:[%s3 + $0x8] sm:$0x7f]
    %v351 = vld [vmem:[%s12] sm:$0xff]
    %v352 = vld [vmem:[%s12 + $0x8] sm:$0xff]
    %v353 = vld [vmem:[%s12 + $0x10] sm:$0xff]
    %v354 = vld [vmem:[%s12 + $0x18] sm:$0xff]
    %v356 = vsel %vm79, %v349, 0
    %v359 = vsel %vm79, %v350, 0
    %361 = vmatprep.subr.mxu0 0.0
    %362 = vmatpush1.msra.mxu0 %v351
    %363 = vmatprep.subr.mxu0 0.0
    %364 = vmatpush1.msra.mxu0 %v352
    %365 = vmatprep.subr.mxu0 0.0
    %366 = vmatpush1.msra.mxu0 %v353
    %367 = vmatprep.subr.mxu0 0.0
    %368 = vmatpush1.msra.mxu0 %v354
    %369 = vmatprep.subr.mxu0 0.0
    %370 = vmatpush1.msra.mxu0 0.0
    %371 = vmatprep.subr.mxu0 0.0
    %372 = vmatpush1.msra.mxu0 0.0
    %373 = vmatprep.subr.mxu0 0.0
    %374 = vmatpush1.msra.mxu0 0.0
    %375 = vmatprep.subr.mxu0 0.0
    %376 = vmatpush1.msra.mxu0 0.0
    %377 = vmatprep.subr.mxu0 0.0
    %378 = vmatpush1.msra.mxu0 0.0
    %379 = vmatprep.subr.mxu0 0.0
    %380 = vmatpush1.msra.mxu0 0.0
    %381 = vmatprep.subr.mxu0 0.0
    %382 = vmatpush1.msra.mxu0 0.0
    %383 = vmatprep.subr.mxu0 0.0
    %384 = vmatpush1.msra.mxu0 0.0
    %385 = vmatprep.subr.mxu0 0.0
    %386 = vmatpush1.msra.mxu0 0.0
    %387 = vmatprep.subr.mxu0 0.0
    %388 = vmatpush1.msra.mxu0 0.0
    %389 = vmatprep.subr.mxu0 0.0
    %390 = vmatpush1.msra.mxu0 0.0
    %391 = vmatprep.subr.mxu0 0.0
    %392 = vmatpush1.msra.mxu0 0.0
    %393 = vmatprep.subr.mxu0 0.0
    %394 = vmatpush1.msra.mxu0 0.0
    %395 = vmatprep.subr.mxu0 0.0
    %396 = vmatpush1.msra.mxu0 0.0
    %397 = vmatprep.subr.mxu0 0.0
    %398 = vmatpush1.msra.mxu0 0.0
    %399 = vmatprep.subr.mxu0 0.0
    %400 = vmatpush1.msra.mxu0 0.0
    %401 = vmatprep.subr.mxu0 0.0
    %402 = vmatpush1.msra.mxu0 0.0
    %403 = vmatprep.subr.mxu0 0.0
    %404 = vmatpush1.msra.mxu0 0.0
    %405 = vmatprep.subr.mxu0 0.0
    %406 = vmatpush1.msra.mxu0 0.0
    %407 = vmatprep.subr.mxu0 0.0
    %408 = vmatpush1.msra.mxu0 0.0
    %409 = vmatprep.subr.mxu0 0.0
    %410 = vmatpush1.msra.mxu0 0.0
    %411 = vmatprep.subr.mxu0 0.0
    %412 = vmatpush1.msra.mxu0 0.0
    %413 = vmatprep.subr.mxu0 0.0
    %414 = vmatpush1.msra.mxu0 0.0
    %415 = vmatprep.subr.mxu0 0.0
    %416 = vmatpush1.msra.mxu0 0.0
    %417 = vmatprep.subr.mxu0 0.0
    %418 = vmatpush1.msra.mxu0 0.0
    %419 = vmatprep.subr.mxu0 0.0
    %420 = vmatpush1.msra.mxu0 0.0
    %421 = vmatprep.subr.mxu0 0.0
    %422 = vmatpush1.msra.mxu0 0.0
    %423 = vmatprep.subr.mxu0 0.0
    %424 = vmatpush1.msra.mxu0 0.0
    %425 = vmatprep.mubr.f32.mxu0 0.0
    %426 = vmatmul.mubr.f32.gmra.mrb[0].mxu0 %v356
    %v427 = vpop.f32.mrb[0].mxu0
    %v428 = vadd.f32 0.0, %v427
    %v429 = vpop.f32.mrb[0].mxu0
    %430 = vmatprep.mubr.f32.mxu0 0.0
    %431 = vmatmul.mubr.f32.gmra.mrb[0].mxu0 %v359
    %v432 = vpop.f32.mrb[0].mxu0
    %v433 = vadd.f32 0.0, %v432
    %v434 = vpop.f32.mrb[0].mxu0
    %435 = vdwg.mxu0
    %v436 = vld [vmem:[%s4] sm:$0xff]
    %v437 = vld [vmem:[%s4 + $0x8] sm:$0xff]
    %v438 = vld [vmem:[%s4 + $0x10] sm:$0xff]
    %v439 = vld [vmem:[%s4 + $0x18] sm:$0xff]
    %v440 = vld [vmem:[%s4 + $0x20] sm:$0xff]
    %v441 = vld [vmem:[%s4 + $0x28] sm:$0xff]
    %v442 = vld [vmem:[%s4 + $0x30] sm:$0xff]
    %v443 = vld [vmem:[%s4 + $0x38] sm:$0xff]
    %v444 = vld [vmem:[%s4 + $0x40] sm:$0xff]
    %v445 = vld [vmem:[%s4 + $0x48] sm:$0xff]
    %v446 = vld [vmem:[%s4 + $0x50] sm:$0xff]
    %v447 = vld [vmem:[%s4 + $0x58] sm:$0xff]
    %v448 = vld [vmem:[%s4 + $0x60] sm:$0xff]
    %v449 = vld [vmem:[%s4 + $0x68] sm:$0xff]
    %v450 = vld [vmem:[%s4 + $0x70] sm:$0xff]
    %v451 = vld [vmem:[%s4 + $0x78] sm:$0xff]
    %v452 = vld [vmem:[%s4 + $0x80] sm:$0xff]
    %v453 = vld [vmem:[%s4 + $0x88] sm:$0xff]
    %v454 = vld [vmem:[%s4 + $0x90] sm:$0xff]
    %v455 = vld [vmem:[%s4 + $0x98] sm:$0xff]
    %v456 = vld [vmem:[%s4 + $0xa0] sm:$0xff]
    %v457 = vld [vmem:[%s4 + $0xa8] sm:$0xff]
    %v458 = vld [vmem:[%s4 + $0xb0] sm:$0xff]
    %v459 = vld [vmem:[%s4 + $0xb8] sm:$0xff]
    %v460 = vld [vmem:[%s4 + $0xc0] sm:$0xff]
    %v461 = vld [vmem:[%s4 + $0xc8] sm:$0xff]
    %v462 = vld [vmem:[%s4 + $0xd0] sm:$0xff]
    %v463 = vld [vmem:[%s4 + $0xd8] sm:$0xff]
    %v464 = vld [vmem:[%s4 + $0xe0] sm:$0xff]
    %v465 = vld [vmem:[%s4 + $0xe8] sm:$0xff]
    %v466 = vld [vmem:[%s4 + $0xf0] sm:$0xff]
    %v467 = vld [vmem:[%s4 + $0xf8] sm:$0xff]
    %vm468 = vcmask 64512
    %v469 = vsel %vm468, %v436, 0.0
    %v470 = vsel %vm468, %v437, 0.0
    %v471 = vadd.f32 %v469, %v470
    %v472 = vrot.slane %v471, 4
    %v473 = vadd.f32 %v471, %v472
    %v474 = vrot.slane %v473, 2
    %v475 = vadd.f32 %v473, %v474
    %v476 = vrot.slane %v475, 1
    %v477 = vadd.f32 %v475, %v476
    %v478 = vsel %vm468, %v438, 0.0
    %v479 = vsel %vm468, %v439, 0.0
    %v480 = vadd.f32 %v478, %v479
    %v481 = vrot.slane %v480, 4
    %v482 = vadd.f32 %v480, %v481
    %v483 = vrot.slane %v482, 2
    %v484 = vadd.f32 %v482, %v483
    %v485 = vrot.slane %v484, 1
    %v486 = vadd.f32 %v484, %v485
    %v487 = vsel %vm468, %v440, 0.0
    %v488 = vsel %vm468, %v441, 0.0
    %v489 = vadd.f32 %v487, %v488
    %v490 = vrot.slane %v489, 4
    %v491 = vadd.f32 %v489, %v490
    %v492 = vrot.slane %v491, 2
    %v493 = vadd.f32 %v491, %v492
    %v494 = vrot.slane %v493, 1
    %v495 = vadd.f32 %v493, %v494
    %v496 = vsel %vm468, %v442, 0.0
    %v497 = vsel %vm468, %v443, 0.0
    %v498 = vadd.f32 %v496, %v497
    %v499 = vrot.slane %v498, 4
    %v500 = vadd.f32 %v498, %v499
    %v501 = vrot.slane %v500, 2
    %v502 = vadd.f32 %v500, %v501
    %v503 = vrot.slane %v502, 1
    %v504 = vadd.f32 %v502, %v503
    %v505 = vsel %vm468, %v444, 0.0
    %v506 = vsel %vm468, %v445, 0.0
    %v507 = vadd.f32 %v505, %v506
    %v508 = vrot.slane %v507, 4
    %v509 = vadd.f32 %v507, %v508
    %v510 = vrot.slane %v509, 2
    %v511 = vadd.f32 %v509, %v510
    %v512 = vrot.slane %v511, 1
    %v513 = vadd.f32 %v511, %v512
    %v514 = vsel %vm468, %v446, 0.0
    %v515 = vsel %vm468, %v447, 0.0
    %v516 = vadd.f32 %v514, %v515
    %v517 = vrot.slane %v516, 4
    %v518 = vadd.f32 %v516, %v517
    %v519 = vrot.slane %v518, 2
    %v520 = vadd.f32 %v518, %v519
    %v521 = vrot.slane %v520, 1
    %v522 = vadd.f32 %v520, %v521
    %v523 = vsel %vm468, %v448, 0.0
    %v524 = vsel %vm468, %v449, 0.0
    %v525 = vadd.f32 %v523, %v524
    %v526 = vrot.slane %v525, 4
    %v527 = vadd.f32 %v525, %v526
    %v528 = vrot.slane %v527, 2
    %v529 = vadd.f32 %v527, %v528
    %v530 = vrot.slane %v529, 1
    %v531 = vadd.f32 %v529, %v530
    %v532 = vsel %vm468, %v450, 0.0
    %v533 = vsel %vm468, %v451, 0.0
    %v534 = vadd.f32 %v532, %v533
    %v535 = vrot.slane %v534, 4
    %v536 = vadd.f32 %v534, %v535
    %v537 = vrot.slane %v536, 2
    %v538 = vadd.f32 %v536, %v537
    %v539 = vrot.slane %v538, 1
    %v540 = vadd.f32 %v538, %v539
    %v541 = vsel %vm468, %v452, 0.0
    %v542 = vsel %vm468, %v453, 0.0
    %v543 = vadd.f32 %v541, %v542
    %v544 = vrot.slane %v543, 4
    %v545 = vadd.f32 %v543, %v544
    %v546 = vrot.slane %v545, 2
    %v547 = vadd.f32 %v545, %v546
    %v548 = vrot.slane %v547, 1
    %v549 = vadd.f32 %v547, %v548
    %v550 = vsel %vm468, %v454, 0.0
    %v551 = vsel %vm468, %v455, 0.0
    %v552 = vadd.f32 %v550, %v551
    %v553 = vrot.slane %v552, 4
    %v554 = vadd.f32 %v552, %v553
    %v555 = vrot.slane %v554, 2
    %v556 = vadd.f32 %v554, %v555
    %v557 = vrot.slane %v556, 1
    %v558 = vadd.f32 %v556, %v557
    %v559 = vsel %vm468, %v456, 0.0
    %v560 = vsel %vm468, %v457, 0.0
    %v561 = vadd.f32 %v559, %v560
    %v562 = vrot.slane %v561, 4
    %v563 = vadd.f32 %v561, %v562
    %v564 = vrot.slane %v563, 2
    %v565 = vadd.f32 %v563, %v564
    %v566 = vrot.slane %v565, 1
    %v567 = vadd.f32 %v565, %v566
    %v568 = vsel %vm468, %v458, 0.0
    %v569 = vsel %vm468, %v459, 0.0
    %v570 = vadd.f32 %v568, %v569
    %v571 = vrot.slane %v570, 4
    %v572 = vadd.f32 %v570, %v571
    %v573 = vrot.slane %v572, 2
    %v574 = vadd.f32 %v572, %v573
    %v575 = vrot.slane %v574, 1
    %v576 = vadd.f32 %v574, %v575
    %v577 = vsel %vm468, %v460, 0.0
    %v578 = vsel %vm468, %v461, 0.0
    %v579 = vadd.f32 %v577, %v578
    %v580 = vrot.slane %v579, 4
    %v581 = vadd.f32 %v579, %v580
    %v582 = vrot.slane %v581, 2
    %v583 = vadd.f32 %v581, %v582
    %v584 = vrot.slane %v583, 1
    %v585 = vadd.f32 %v583, %v584
    %v586 = vsel %vm468, %v462, 0.0
    %v587 = vsel %vm468, %v463, 0.0
    %v588 = vadd.f32 %v586, %v587
    %v589 = vrot.slane %v588, 4
    %v590 = vadd.f32 %v588, %v589
    %v591 = vrot.slane %v590, 2
    %v592 = vadd.f32 %v590, %v591
    %v593 = vrot.slane %v592, 1
    %v594 = vadd.f32 %v592, %v593
    %v595 = vsel %vm468, %v464, 0.0
    %v596 = vsel %vm468, %v465, 0.0
    %v597 = vadd.f32 %v595, %v596
    %v598 = vrot.slane %v597, 4
    %v599 = vadd.f32 %v597, %v598
    %v600 = vrot.slane %v599, 2
    %v601 = vadd.f32 %v599, %v600
    %v602 = vrot.slane %v601, 1
    %v603 = vadd.f32 %v601, %v602
    %v604 = vsel %vm468, %v466, 0.0
    %v605 = vsel %vm468, %v467, 0.0
    %v606 = vadd.f32 %v604, %v605
    %v607 = vrot.slane %v606, 4
    %v608 = vadd.f32 %v606, %v607
    %v609 = vrot.slane %v608, 2
    %v610 = vadd.f32 %v608, %v609
    %v611 = vrot.slane %v610, 1
    %v612 = vadd.f32 %v610, %v611
    %v613 = vrcp.pop 16.0
    %v614 = vmul.f32 %v477, %v613
    %v615 = vmul.f32 %v486, %v613
    %v616 = vmul.f32 %v495, %v613
    %v617 = vmul.f32 %v504, %v613
    %v618 = vmul.f32 %v513, %v613
    %v619 = vmul.f32 %v522, %v613
    %v620 = vmul.f32 %v531, %v613
    %v621 = vmul.f32 %v540, %v613
    %v622 = vmul.f32 %v549, %v613
    %v623 = vmul.f32 %v558, %v613
    %v624 = vmul.f32 %v567, %v613
    %v625 = vmul.f32 %v576, %v613
    %v626 = vmul.f32 %v585, %v613
    %v627 = vmul.f32 %v594, %v613
    %v628 = vmul.f32 %v603, %v613
    %v629 = vmul.f32 %v612, %v613
    %v630 = vsub.f32 %v436, %v614
    %v631 = vsub.f32 %v437, %v614
    %v632 = vsub.f32 %v438, %v615
    %v633 = vsub.f32 %v439, %v615
    %v634 = vsub.f32 %v440, %v616
    %v635 = vsub.f32 %v441, %v616
    %v636 = vsub.f32 %v442, %v617
    %v637 = vsub.f32 %v443, %v617
    %v638 = vsub.f32 %v444, %v618
    %v639 = vsub.f32 %v445, %v618
    %v640 = vsub.f32 %v446, %v619
    %v641 = vsub.f32 %v447, %v619
    %v642 = vsub.f32 %v448, %v620
    %v643 = vsub.f32 %v449, %v620
    %v644 = vsub.f32 %v450, %v621
    %v645 = vsub.f32 %v451, %v621
    %v646 = vsub.f32 %v452, %v622
    %v647 = vsub.f32 %v453, %v622
    %v648 = vsub.f32 %v454, %v623
    %v649 = vsub.f32 %v455, %v623
    %v650 = vsub.f32 %v456, %v624
    %v651 = vsub.f32 %v457, %v624
    %v652 = vsub.f32 %v458, %v625
    %v653 = vsub.f32 %v459, %v625
    %v654 = vsub.f32 %v460, %v626
    %v655 = vsub.f32 %v461, %v626
    %v656 = vsub.f32 %v462, %v627
    %v657 = vsub.f32 %v463, %v627
    %v658 = vsub.f32 %v464, %v628
    %v659 = vsub.f32 %v465, %v628
    %v660 = vsub.f32 %v466, %v629
    %v661 = vsub.f32 %v467, %v629
    %v662 = vmul.f32 %v630, %v630
    %v663 = vmul.f32 %v631, %v631
    %v664 = vmul.f32 %v632, %v632
    %v665 = vmul.f32 %v633, %v633
    %v666 = vmul.f32 %v634, %v634
    %v667 = vmul.f32 %v635, %v635
    %v668 = vmul.f32 %v636, %v636
    %v669 = vmul.f32 %v637, %v637
    %v670 = vmul.f32 %v638, %v638
    %v671 = vmul.f32 %v639, %v639
    %v672 = vmul.f32 %v640, %v640
    %v673 = vmul.f32 %v641, %v641
    %v674 = vmul.f32 %v642, %v642
    %v675 = vmul.f32 %v643, %v643
    %v676 = vmul.f32 %v644, %v644
    %v677 = vmul.f32 %v645, %v645
    %v678 = vmul.f32 %v646, %v646
    %v679 = vmul.f32 %v647, %v647
    %v680 = vmul.f32 %v648, %v648
    %v681 = vmul.f32 %v649, %v649
    %v682 = vmul.f32 %v650, %v650
    %v683 = vmul.f32 %v651, %v651
    %v684 = vmul.f32 %v652, %v652
    %v685 = vmul.f32 %v653, %v653
    %v686 = vmul.f32 %v654, %v654
    %v687 = vmul.f32 %v655, %v655
    %v688 = vmul.f32 %v656, %v656
    %v689 = vmul.f32 %v657, %v657
    %v690 = vmul.f32 %v658, %v658
    %v691 = vmul.f32 %v659, %v659
    %v692 = vmul.f32 %v660, %v660
    %v693 = vmul.f32 %v661, %v661
    %v694 = vsel %vm468, %v662, 0.0
    %v695 = vsel %vm468, %v663, 0.0
    %v696 = vadd.f32 %v694, %v695
    %v697 = vrot.slane %v696, 4
    %v698 = vadd.f32 %v696, %v697
    %v699 = vrot.slane %v698, 2
    %v700 = vadd.f32 %v698, %v699
    %v701 = vrot.slane %v700, 1
    %v702 = vadd.f32 %v700, %v701
    %v703 = vsel %vm468, %v664, 0.0
    %v704 = vsel %vm468, %v665, 0.0
    %v705 = vadd.f32 %v703, %v704
    %v706 = vrot.slane %v705, 4
    %v707 = vadd.f32 %v705, %v706
    %v708 = vrot.slane %v707, 2
    %v709 = vadd.f32 %v707, %v708
    %v710 = vrot.slane %v709, 1
    %v711 = vadd.f32 %v709, %v710
    %v712 = vsel %vm468, %v666, 0.0
    %v713 = vsel %vm468, %v667, 0.0
    %v714 = vadd.f32 %v712, %v713
    %v715 = vrot.slane %v714, 4
    %v716 = vadd.f32 %v714, %v715
    %v717 = vrot.slane %v716, 2
    %v718 = vadd.f32 %v716, %v717
    %v719 = vrot.slane %v718, 1
    %v720 = vadd.f32 %v718, %v719
    %v721 = vsel %vm468, %v668, 0.0
    %v722 = vsel %vm468, %v669, 0.0
    %v723 = vadd.f32 %v721, %v722
    %v724 = vrot.slane %v723, 4
    %v725 = vadd.f32 %v723, %v724
    %v726 = vrot.slane %v725, 2
    %v727 = vadd.f32 %v725, %v726
    %v728 = vrot.slane %v727, 1
    %v729 = vadd.f32 %v727, %v728
    %v730 = vsel %vm468, %v670, 0.0
    %v731 = vsel %vm468, %v671, 0.0
    %v732 = vadd.f32 %v730, %v731
    %v733 = vrot.slane %v732, 4
    %v734 = vadd.f32 %v732, %v733
    %v735 = vrot.slane %v734, 2
    %v736 = vadd.f32 %v734, %v735
    %v737 = vrot.slane %v736, 1
    %v738 = vadd.f32 %v736, %v737
    %v739 = vsel %vm468, %v672, 0.0
    %v740 = vsel %vm468, %v673, 0.0
    %v741 = vadd.f32 %v739, %v740
    %v742 = vrot.slane %v741, 4
    %v743 = vadd.f32 %v741, %v742
    %v744 = vrot.slane %v743, 2
    %v745 = vadd.f32 %v743, %v744
    %v746 = vrot.slane %v745, 1
    %v747 = vadd.f32 %v745, %v746
    %v748 = vsel %vm468, %v674, 0.0
    %v749 = vsel %vm468, %v675, 0.0
    %v750 = vadd.f32 %v748, %v749
    %v751 = vrot.slane %v750, 4
    %v752 = vadd.f32 %v750, %v751
    %v753 = vrot.slane %v752, 2
    %v754 = vadd.f32 %v752, %v753
    %v755 = vrot.slane %v754, 1
    %v756 = vadd.f32 %v754, %v755
    %v757 = vsel %vm468, %v676, 0.0
    %v758 = vsel %vm468, %v677, 0.0
    %v759 = vadd.f32 %v757, %v758
    %v760 = vrot.slane %v759, 4
    %v761 = vadd.f32 %v759, %v760
    %v762 = vrot.slane %v761, 2
    %v763 = vadd.f32 %v761, %v762
    %v764 = vrot.slane %v763, 1
    %v765 = vadd.f32 %v763, %v764
    %v766 = vsel %vm468, %v678, 0.0
    %v767 = vsel %vm468, %v679, 0.0
    %v768 = vadd.f32 %v766, %v767
    %v769 = vrot.slane %v768, 4
    %v770 = vadd.f32 %v768, %v769
    %v771 = vrot.slane %v770, 2
    %v772 = vadd.f32 %v770, %v771
    %v773 = vrot.slane %v772, 1
    %v774 = vadd.f32 %v772, %v773
    %v775 = vsel %vm468, %v680, 0.0
    %v776 = vsel %vm468, %v681, 0.0
    %v777 = vadd.f32 %v775, %v776
    %v778 = vrot.slane %v777, 4
    %v779 = vadd.f32 %v777, %v778
    %v780 = vrot.slane %v779, 2
    %v781 = vadd.f32 %v779, %v780
    %v782 = vrot.slane %v781, 1
    %v783 = vadd.f32 %v781, %v782
    %v784 = vsel %vm468, %v682, 0.0
    %v785 = vsel %vm468, %v683, 0.0
    %v786 = vadd.f32 %v784, %v785
    %v787 = vrot.slane %v786, 4
    %v788 = vadd.f32 %v786, %v787
    %v789 = vrot.slane %v788, 2
    %v790 = vadd.f32 %v788, %v789
    %v791 = vrot.slane %v790, 1
    %v792 = vadd.f32 %v790, %v791
    %v793 = vsel %vm468, %v684, 0.0
    %v794 = vsel %vm468, %v685, 0.0
    %v795 = vadd.f32 %v793, %v794
    %v796 = vrot.slane %v795, 4
    %v797 = vadd.f32 %v795, %v796
    %v798 = vrot.slane %v797, 2
    %v799 = vadd.f32 %v797, %v798
    %v800 = vrot.slane %v799, 1
    %v801 = vadd.f32 %v799, %v800
    %v802 = vsel %vm468, %v686, 0.0
    %v803 = vsel %vm468, %v687, 0.0
    %v804 = vadd.f32 %v802, %v803
    %v805 = vrot.slane %v804, 4
    %v806 = vadd.f32 %v804, %v805
    %v807 = vrot.slane %v806, 2
    %v808 = vadd.f32 %v806, %v807
    %v809 = vrot.slane %v808, 1
    %v810 = vadd.f32 %v808, %v809
    %v811 = vsel %vm468, %v688, 0.0
    %v812 = vsel %vm468, %v689, 0.0
    %v813 = vadd.f32 %v811, %v812
    %v814 = vrot.slane %v813, 4
    %v815 = vadd.f32 %v813, %v814
    %v816 = vrot.slane %v815, 2
    %v817 = vadd.f32 %v815, %v816
    %v818 = vrot.slane %v817, 1
    %v819 = vadd.f32 %v817, %v818
    %v820 = vsel %vm468, %v690, 0.0
    %v821 = vsel %vm468, %v691, 0.0
    %v822 = vadd.f32 %v820, %v821
    %v823 = vrot.slane %v822, 4
    %v824 = vadd.f32 %v822, %v823
    %v825 = vrot.slane %v824, 2
    %v826 = vadd.f32 %v824, %v825
    %v827 = vrot.slane %v826, 1
    %v828 = vadd.f32 %v826, %v827
    %v829 = vsel %vm468, %v692, 0.0
    %v830 = vsel %vm468, %v693, 0.0
    %v831 = vadd.f32 %v829, %v830
    %v832 = vrot.slane %v831, 4
    %v833 = vadd.f32 %v831, %v832
    %v834 = vrot.slane %v833, 2
    %v835 = vadd.f32 %v833, %v834
    %v836 = vrot.slane %v835, 1
    %v837 = vadd.f32 %v835, %v836
    %v838 = vmul.f32 %v702, %v613
    %v839 = vmul.f32 %v711, %v613
    %v840 = vmul.f32 %v720, %v613
    %v841 = vmul.f32 %v729, %v613
    %v842 = vmul.f32 %v738, %v613
    %v843 = vmul.f32 %v747, %v613
    %v844 = vmul.f32 %v756, %v613
    %v845 = vmul.f32 %v765, %v613
    %v846 = vmul.f32 %v774, %v613
    %v847 = vmul.f32 %v783, %v613
    %v848 = vmul.f32 %v792, %v613
    %v849 = vmul.f32 %v801, %v613
    %v850 = vmul.f32 %v810, %v613
    %v851 = vmul.f32 %v819, %v613
    %v852 = vmul.f32 %v828, %v613
    %v853 = vmul.f32 %v837, %v613
    %v854 = vadd.f32 %v838, 1e-05
    %v855 = vadd.f32 %v839, 1e-05
    %v856 = vadd.f32 %v840, 1e-05
    %v857 = vadd.f32 %v841, 1e-05
    %v858 = vadd.f32 %v842, 1e-05
    %v859 = vadd.f32 %v843, 1e-05
    %v860 = vadd.f32 %v844, 1e-05
    %v861 = vadd.f32 %v845, 1e-05
    %v862 = vadd.f32 %v846, 1e-05
    %v863 = vadd.f32 %v847, 1e-05
    %v864 = vadd.f32 %v848, 1e-05
    %v865 = vadd.f32 %v849, 1e-05
    %v866 = vadd.f32 %v850, 1e-05
    %v867 = vadd.f32 %v851, 1e-05
    %v868 = vadd.f32 %v852, 1e-05
    %v869 = vadd.f32 %v853, 1e-05
    %v870 = vrsqrt.pop %v854
    %v871 = vrsqrt.pop %v855
    %v872 = vrsqrt.pop %v856
    %v873 = vrsqrt.pop %v857
    %v874 = vrsqrt.pop %v858
    %v875 = vrsqrt.pop %v859
    %v876 = vrsqrt.pop %v860
    %v877 = vrsqrt.pop %v861
    %v878 = vrsqrt.pop %v862
    %v879 = vrsqrt.pop %v863
    %v880 = vrsqrt.pop %v864
    %v881 = vrsqrt.pop %v865
    %v882 = vrsqrt.pop %v866
    %v883 = vrsqrt.pop %v867
    %v884 = vrsqrt.pop %v868
    %v885 = vrsqrt.pop %v869
    %v886 = vmul.f32 %v630, %v870
    %v887 = vmul.f32 %v631, %v870
    %v888 = vmul.f32 %v632, %v871
    %v889 = vmul.f32 %v633, %v871
    %v890 = vmul.f32 %v634, %v872
    %v891 = vmul.f32 %v635, %v872
    %v892 = vmul.f32 %v636, %v873
    %v893 = vmul.f32 %v637, %v873
    %v894 = vmul.f32 %v638, %v874
    %v895 = vmul.f32 %v639, %v874
    %v896 = vmul.f32 %v640, %v875
    %v897 = vmul.f32 %v641, %v875
    %v898 = vmul.f32 %v642, %v876
    %v899 = vmul.f32 %v643, %v876
    %v900 = vmul.f32 %v644, %v877
    %v901 = vmul.f32 %v645, %v877
    %v902 = vmul.f32 %v646, %v878
    %v903 = vmul.f32 %v647, %v878
    %v904 = vmul.f32 %v648, %v879
    %v905 = vmul.f32 %v649, %v879
    %v906 = vmul.f32 %v650, %v880
    %v907 = vmul.f32 %v651, %v880
    %v908 = vmul.f32 %v652, %v881
    %v909 = vmul.f32 %v653, %v881
    %v910 = vmul.f32 %v654, %v882
    %v911 = vmul.f32 %v655, %v882
    %v912 = vmul.f32 %v656, %v883
    %v913 = vmul.f32 %v657, %v883
    %v914 = vmul.f32 %v658, %v884
    %v915 = vmul.f32 %v659, %v884
    %v916 = vmul.f32 %v660, %v885
    %v917 = vmul.f32 %v661, %v885
    %v918 = vld [vmem:[%s15] sm:$0xff]
    %v919 = vld [vmem:[%s15 + $0x8] sm:$0xff]
    %921 = vset.pattern.permute.xlu0 0
    %922 = vperm.xlu0 %921, %v918
    %v923 = vpop.permute.xlu0 %922
    %926 = vset.pattern.permute.xlu0 0
    %927 = vperm.xlu0 %926, %v919
    %v928 = vpop.permute.xlu0 %927
    %v930 = vmul.f32 %v886, %v923
    %v931 = vmul.f32 %v887, %v928
    %v932 = vmul.f32 %v888, %v923
    %v933 = vmul.f32 %v889, %v928
    %v934 = vmul.f32 %v890, %v923
    %v935 = vmul.f32 %v891, %v928
    %v936 = vmul.f32 %v892, %v923
    %v937 = vmul.f32 %v893, %v928
    %v938 = vmul.f32 %v894, %v923
    %v939 = vmul.f32 %v895, %v928
    %v940 = vmul.f32 %v896, %v923
    %v941 = vmul.f32 %v897, %v928
    %v942 = vmul.f32 %v898, %v923
    %v943 = vmul.f32 %v899, %v928
    %v944 = vmul.f32 %v900, %v923
    %v945 = vmul.f32 %v901, %v928
    %v946 = vmul.f32 %v902, %v923
    %v947 = vmul.f32 %v903, %v928
    %v948 = vmul.f32 %v904, %v923
    %v949 = vmul.f32 %v905, %v928
    %v950 = vmul.f32 %v906, %v923
    %v951 = vmul.f32 %v907, %v928
    %v952 = vmul.f32 %v908, %v923
    %v953 = vmul.f32 %v909, %v928
    %v954 = vmul.f32 %v910, %v923
    %v955 = vmul.f32 %v911, %v928
    %v956 = vmul.f32 %v912, %v923
    %v957 = vmul.f32 %v913, %v928
    %v958 = vmul.f32 %v914, %v923
    %v959 = vmul.f32 %v915, %v928
    %v960 = vmul.f32 %v916, %v923
    %v961 = vmul.f32 %v917, %v928
    %v962 = vld [vmem:[%s16] sm:$0xff]
    %v963 = vld [vmem:[%s16 + $0x8] sm:$0xff]
    %965 = vset.pattern.permute.xlu0 0
    %966 = vperm.xlu0 %965, %v962
    %v967 = vpop.permute.xlu0 %966
    %970 = vset.pattern.permute.xlu0 0
    %971 = vperm.xlu0 %970, %v963
    %v972 = vpop.permute.xlu0 %971
    %v974 = vadd.f32 %v930, %v967
    %v975 = vadd.f32 %v931, %v972
    %v976 = vadd.f32 %v932, %v967
    %v977 = vadd.f32 %v933, %v972
    %v978 = vadd.f32 %v934, %v967
    %v979 = vadd.f32 %v935, %v972
    %v980 = vadd.f32 %v936, %v967
    %v981 = vadd.f32 %v937, %v972
    %v982 = vadd.f32 %v938, %v967
    %v983 = vadd.f32 %v939, %v972
    %v984 = vadd.f32 %v940, %v967
    %v985 = vadd.f32 %v941, %v972
    %v986 = vadd.f32 %v942, %v967
    %v987 = vadd.f32 %v943, %v972
    %v988 = vadd.f32 %v944, %v967
    %v989 = vadd.f32 %v945, %v972
    %v990 = vadd.f32 %v946, %v967
    %v991 = vadd.f32 %v947, %v972
    %v992 = vadd.f32 %v948, %v967
    %v993 = vadd.f32 %v949, %v972
    %v994 = vadd.f32 %v950, %v967
    %v995 = vadd.f32 %v951, %v972
    %v996 = vadd.f32 %v952, %v967
    %v997 = vadd.f32 %v953, %v972
    %v998 = vadd.f32 %v954, %v967
    %v999 = vadd.f32 %v955, %v972
    %v1000 = vadd.f32 %v956, %v967
    %v1001 = vadd.f32 %v957, %v972
    %v1002 = vadd.f32 %v958, %v967
    %v1003 = vadd.f32 %v959, %v972
    %v1004 = vadd.f32 %v960, %v967
    %v1005 = vadd.f32 %v961, %v972
    %v1006 = vld [vmem:[%s17] sm:$0xf]
    %v1007 = vld [vmem:[%s5] sm:$0xff]
    %v1008 = vld [vmem:[%s5 + $0x8] sm:$0xff]
    %v1011 = vcombine.high %v1007, %v1007
    %v1013 = vunpack.c.l.s4 1966171168
    %v1014 = vunpack.c.0.s8 %v1013
    %v1015 = vlaneseq
    %v1016 = vshrl.u32 %v1015, 7
    %v1017 = vsub.s32 %v1014, %v1016
    %v1018 = vrot.slane %v1007, %v1017
    %v1020 = vunpack.c.l.s4 1966171168
    %v1021 = vunpack.c.0.s8 %v1020
    %v1022 = vlaneseq
    %v1023 = vshrl.u32 %v1022, 7
    %v1024 = vsub.s32 %v1021, %v1023
    %v1025 = vrot.slane %v1011, %v1024
    %v1026 = vcombine.high %v1018, %v1018
    %v1027 = vcombine.high %v1025, %v1025
    %v1029 = vunpack.c.l.s4 1966171168
    %v1030 = vunpack.c.0.s8 %v1029
    %v1031 = vlaneseq
    %v1032 = vshrl.u32 %v1031, 7
    %v1033 = vsub.s32 %v1030, %v1032
    %v1034 = vrot.slane %v1018, %v1033
    %v1036 = vunpack.c.l.s4 1966171168
    %v1037 = vunpack.c.0.s8 %v1036
    %v1038 = vlaneseq
    %v1039 = vshrl.u32 %v1038, 7
    %v1040 = vsub.s32 %v1037, %v1039
    %v1041 = vrot.slane %v1025, %v1040
    %v1043 = vunpack.c.l.s4 1966171168
    %v1044 = vunpack.c.0.s8 %v1043
    %v1045 = vlaneseq
    %v1046 = vshrl.u32 %v1045, 7
    %v1047 = vsub.s32 %v1044, %v1046
    %v1048 = vrot.slane %v1026, %v1047
    %v1050 = vunpack.c.l.s4 1966171168
    %v1051 = vunpack.c.0.s8 %v1050
    %v1052 = vlaneseq
    %v1053 = vshrl.u32 %v1052, 7
    %v1054 = vsub.s32 %v1051, %v1053
    %v1055 = vrot.slane %v1027, %v1054
    %v1056 = vcombine.high %v1034, %v1034
    %v1057 = vcombine.high %v1041, %v1041
    %v1058 = vcombine.high %v1048, %v1048
    %v1059 = vcombine.high %v1055, %v1055
    %v1060 = vcombine.high %v1008, %v1008
    %v1062 = vunpack.c.l.s4 1966171168
    %v1063 = vunpack.c.0.s8 %v1062
    %v1064 = vlaneseq
    %v1065 = vshrl.u32 %v1064, 7
    %v1066 = vsub.s32 %v1063, %v1065
    %v1067 = vrot.slane %v1008, %v1066
    %v1069 = vunpack.c.l.s4 1966171168
    %v1070 = vunpack.c.0.s8 %v1069
    %v1071 = vlaneseq
    %v1072 = vshrl.u32 %v1071, 7
    %v1073 = vsub.s32 %v1070, %v1072
    %v1074 = vrot.slane %v1060, %v1073
    %v1075 = vcombine.high %v1067, %v1067
    %v1076 = vcombine.high %v1074, %v1074
    %v1078 = vunpack.c.l.s4 1966171168
    %v1079 = vunpack.c.0.s8 %v1078
    %v1080 = vlaneseq
    %v1081 = vshrl.u32 %v1080, 7
    %v1082 = vsub.s32 %v1079, %v1081
    %v1083 = vrot.slane %v1067, %v1082
    %v1085 = vunpack.c.l.s4 1966171168
    %v1086 = vunpack.c.0.s8 %v1085
    %v1087 = vlaneseq
    %v1088 = vshrl.u32 %v1087, 7
    %v1089 = vsub.s32 %v1086, %v1088
    %v1090 = vrot.slane %v1074, %v1089
    %v1092 = vunpack.c.l.s4 1966171168
    %v1093 = vunpack.c.0.s8 %v1092
    %v1094 = vlaneseq
    %v1095 = vshrl.u32 %v1094, 7
    %v1096 = vsub.s32 %v1093, %v1095
    %v1097 = vrot.slane %v1075, %v1096
    %v1099 = vunpack.c.l.s4 1966171168
    %v1100 = vunpack.c.0.s8 %v1099
    %v1101 = vlaneseq
    %v1102 = vshrl.u32 %v1101, 7
    %v1103 = vsub.s32 %v1100, %v1102
    %v1104 = vrot.slane %v1076, %v1103
    %v1105 = vcombine.high %v1083, %v1083
    %v1106 = vcombine.high %v1090, %v1090
    %v1107 = vcombine.high %v1097, %v1097
    %v1108 = vcombine.high %v1104, %v1104
    %v1109 = vlaneseq
    %v1110 = vshrl.u32 %v1109, 7
    %v1111 = vsub.s32 0, %v1110
    %v1112 = vrot.slane %v1034, %v1111
    %v1113 = vlaneseq
    %v1114 = vshrl.u32 %v1113, 7
    %v1115 = vsub.s32 0, %v1114
    %v1116 = vrot.slane %v1048, %v1115
    %v1117 = vlaneseq
    %v1118 = vshrl.u32 %v1117, 7
    %v1119 = vsub.s32 0, %v1118
    %v1120 = vrot.slane %v1056, %v1119
    %v1121 = vlaneseq
    %v1122 = vshrl.u32 %v1121, 7
    %v1123 = vsub.s32 0, %v1122
    %v1124 = vrot.slane %v1058, %v1123
    %v1125 = vlaneseq
    %v1126 = vshrl.u32 %v1125, 7
    %v1127 = vsub.s32 0, %v1126
    %v1128 = vrot.slane %v1041, %v1127
    %v1129 = vlaneseq
    %v1130 = vshrl.u32 %v1129, 7
    %v1131 = vsub.s32 0, %v1130
    %v1132 = vrot.slane %v1055, %v1131
    %v1133 = vlaneseq
    %v1134 = vshrl.u32 %v1133, 7
    %v1135 = vsub.s32 0, %v1134
    %v1136 = vrot.slane %v1057, %v1135
    %v1137 = vlaneseq
    %v1138 = vshrl.u32 %v1137, 7
    %v1139 = vsub.s32 0, %v1138
    %v1140 = vrot.slane %v1059, %v1139
    %v1141 = vlaneseq
    %v1142 = vshrl.u32 %v1141, 7
    %v1143 = vsub.s32 0, %v1142
    %v1144 = vrot.slane %v1083, %v1143
    %v1145 = vlaneseq
    %v1146 = vshrl.u32 %v1145, 7
    %v1147 = vsub.s32 0, %v1146
    %v1148 = vrot.slane %v1097, %v1147
    %v1149 = vlaneseq
    %v1150 = vshrl.u32 %v1149, 7
    %v1151 = vsub.s32 0, %v1150
    %v1152 = vrot.slane %v1105, %v1151
    %v1153 = vlaneseq
    %v1154 = vshrl.u32 %v1153, 7
    %v1155 = vsub.s32 0, %v1154
    %v1156 = vrot.slane %v1107, %v1155
    %v1157 = vlaneseq
    %v1158 = vshrl.u32 %v1157, 7
    %v1159 = vsub.s32 0, %v1158
    %v1160 = vrot.slane %v1090, %v1159
    %v1161 = vlaneseq
    %v1162 = vshrl.u32 %v1161, 7
    %v1163 = vsub.s32 0, %v1162
    %v1164 = vrot.slane %v1104, %v1163
    %v1165 = vlaneseq
    %v1166 = vshrl.u32 %v1165, 7
    %v1167 = vsub.s32 0, %v1166
    %v1168 = vrot.slane %v1106, %v1167
    %v1169 = vlaneseq
    %v1170 = vshrl.u32 %v1169, 7
    %v1171 = vsub.s32 0, %v1170
    %v1172 = vrot.slane %v1108, %v1171
    %vm1189 = vcmask 130048
    %v1191 = vsel %vm1189, %v1006, 0
    %1193 = vmatprep.subr.mxu0 0.0
    %1194 = vmatpush1.msra.mxu0 %v974
    %1195 = vmatprep.subr.mxu0 0.0
    %1196 = vmatpush1.msra.mxu0 %v975
    %1197 = vmatprep.subr.mxu0 0.0
    %1198 = vmatpush1.msra.mxu0 0.0
    %1199 = vmatprep.subr.mxu0 0.0
    %1200 = vmatpush1.msra.mxu0 0.0
    %1201 = vmatprep.subr.mxu0 0.0
    %1202 = vmatpush1.msra.mxu0 0.0
    %1203 = vmatprep.subr.mxu0 0.0
    %1204 = vmatpush1.msra.mxu0 0.0
    %1205 = vmatprep.subr.mxu0 0.0
    %1206 = vmatpush1.msra.mxu0 0.0
    %1207 = vmatprep.subr.mxu0 0.0
    %1208 = vmatpush1.msra.mxu0 0.0
    %1209 = vmatprep.subr.mxu0 0.0
    %1210 = vmatpush1.msra.mxu0 0.0
    %1211 = vmatprep.subr.mxu0 0.0
    %1212 = vmatpush1.msra.mxu0 0.0
    %1213 = vmatprep.subr.mxu0 0.0
    %1214 = vmatpush1.msra.mxu0 0.0
    %1215 = vmatprep.subr.mxu0 0.0
    %1216 = vmatpush1.msra.mxu0 0.0
    %1217 = vmatprep.subr.mxu0 0.0
    %1218 = vmatpush1.msra.mxu0 0.0
    %1219 = vmatprep.subr.mxu0 0.0
    %1220 = vmatpush1.msra.mxu0 0.0
    %1221 = vmatprep.subr.mxu0 0.0
    %1222 = vmatpush1.msra.mxu0 0.0
    %1223 = vmatprep.subr.mxu0 0.0
    %1224 = vmatpush1.msra.mxu0 0.0
    %1225 = vmatprep.subr.mxu0 0.0
    %1226 = vmatpush1.msra.mxu0 0.0
    %1227 = vmatprep.subr.mxu0 0.0
    %1228 = vmatpush1.msra.mxu0 0.0
    %1229 = vmatprep.subr.mxu0 0.0
    %1230 = vmatpush1.msra.mxu0 0.0
    %1231 = vmatprep.subr.mxu0 0.0
    %1232 = vmatpush1.msra.mxu0 0.0
    %1233 = vmatprep.subr.mxu0 0.0
    %1234 = vmatpush1.msra.mxu0 0.0
    %1235 = vmatprep.subr.mxu0 0.0
    %1236 = vmatpush1.msra.mxu0 0.0
    %1237 = vmatprep.subr.mxu0 0.0
    %1238 = vmatpush1.msra.mxu0 0.0
    %1239 = vmatprep.subr.mxu0 0.0
    %1240 = vmatpush1.msra.mxu0 0.0
    %1241 = vmatprep.subr.mxu0 0.0
    %1242 = vmatpush1.msra.mxu0 0.0
    %1243 = vmatprep.subr.mxu0 0.0
    %1244 = vmatpush1.msra.mxu0 0.0
    %1245 = vmatprep.subr.mxu0 0.0
    %1246 = vmatpush1.msra.mxu0 0.0
    %1247 = vmatprep.subr.mxu0 0.0
    %1248 = vmatpush1.msra.mxu0 0.0
    %1249 = vmatprep.subr.mxu0 0.0
    %1250 = vmatpush1.msra.mxu0 0.0
    %1251 = vmatprep.subr.mxu0 0.0
    %1252 = vmatpush1.msra.mxu0 0.0
    %1253 = vmatprep.subr.mxu0 0.0
    %1254 = vmatpush1.msra.mxu0 0.0
    %1255 = vmatprep.subr.mxu0 0.0
    %1256 = vmatpush1.msra.mxu0 0.0
    %1257 = vmatprep.mubr.f32.mxu0 0.0
    %1258 = vmatmul.mubr.f32.gmra.mrb[0].mxu0 %v1191
    %v1259 = vpop.f32.mrb[0].mxu0
    %v1260 = vadd.f32 %v1112, %v1259
    %v1261 = vpop.f32.mrb[0].mxu0
    %1262 = vdwg.mxu0
    %1263 = vmatprep.subr.mxu0 0.0
    %1264 = vmatpush1.msra.mxu0 %v976
    %1265 = vmatprep.subr.mxu0 0.0
    %1266 = vmatpush1.msra.mxu0 %v977
    %1267 = vmatprep.subr.mxu0 0.0
    %1268 = vmatpush1.msra.mxu0 0.0
    %1269 = vmatprep.subr.mxu0 0.0
    %1270 = vmatpush1.msra.mxu0 0.0
    %1271 = vmatprep.subr.mxu0 0.0
    %1272 = vmatpush1.msra.mxu0 0.0
    %1273 = vmatprep.subr.mxu0 0.0
    %1274 = vmatpush1.msra.mxu0 0.0
    %1275 = vmatprep.subr.mxu0 0.0
    %1276 = vmatpush1.msra.mxu0 0.0
    %1277 = vmatprep.subr.mxu0 0.0
    %1278 = vmatpush1.msra.mxu0 0.0
    %1279 = vmatprep.subr.mxu0 0.0
    %1280 = vmatpush1.msra.mxu0 0.0
    %1281 = vmatprep.subr.mxu0 0.0
    %1282 = vmatpush1.msra.mxu0 0.0
    %1283 = vmatprep.subr.mxu0 0.0
    %1284 = vmatpush1.msra.mxu0 0.0
    %1285 = vmatprep.subr.mxu0 0.0
    %1286 = vmatpush1.msra.mxu0 0.0
    %1287 = vmatprep.subr.mxu0 0.0
    %1288 = vmatpush1.msra.mxu0 0.0
    %1289 = vmatprep.subr.mxu0 0.0
    %1290 = vmatpush1.msra.mxu0 0.0
    %1291 = vmatprep.subr.mxu0 0.0
    %1292 = vmatpush1.msra.mxu0 0.0
    %1293 = vmatprep.subr.mxu0 0.0
    %1294 = vmatpush1.msra.mxu0 0.0
    %1295 = vmatprep.subr.mxu0 0.0
    %1296 = vmatpush1.msra.mxu0 0.0
    %1297 = vmatprep.subr.mxu0 0.0
    %1298 = vmatpush1.msra.mxu0 0.0
    %1299 = vmatprep.subr.mxu0 0.0
    %1300 = vmatpush1.msra.mxu0 0.0
    %1301 = vmatprep.subr.mxu0 0.0
    %1302 = vmatpush1.msra.mxu0 0.0
    %1303 = vmatprep.subr.mxu0 0.0
    %1304 = vmatpush1.msra.mxu0 0.0
    %1305 = vmatprep.subr.mxu0 0.0
    %1306 = vmatpush1.msra.mxu0 0.0
    %1307 = vmatprep.subr.mxu0 0.0
    %1308 = vmatpush1.msra.mxu0 0.0
    %1309 = vmatprep.subr.mxu0 0.0
    %1310 = vmatpush1.msra.mxu0 0.0
    %1311 = vmatprep.subr.mxu0 0.0
    %1312 = vmatpush1.msra.mxu0 0.0
    %1313 = vmatprep.subr.mxu0 0.0
    %1314 = vmatpush1.msra.mxu0 0.0
    %1315 = vmatprep.subr.mxu0 0.0
    %1316 = vmatpush1.msra.mxu0 0.0
    %1317 = vmatprep.subr.mxu0 0.0
    %1318 = vmatpush1.msra.mxu0 0.0
    %1319 = vmatprep.subr.mxu0 0.0
    %1320 = vmatpush1.msra.mxu0 0.0
    %1321 = vmatprep.subr.mxu0 0.0
    %1322 = vmatpush1.msra.mxu0 0.0
    %1323 = vmatprep.subr.mxu0 0.0
    %1324 = vmatpush1.msra.mxu0 0.0
    %1325 = vmatprep.subr.mxu0 0.0
    %1326 = vmatpush1.msra.mxu0 0.0
    %1327 = vmatprep.mubr.f32.mxu0 0.0
    %1328 = vmatmul.mubr.f32.gmra.mrb[0].mxu0 %v1191
    %v1329 = vpop.f32.mrb[0].mxu0
    %v1330 = vadd.f32 %v1116, %v1329
    %v1331 = vpop.f32.mrb[0].mxu0
    %1332 = vdwg.mxu0
    %1333 = vmatprep.subr.mxu0 0.0
    %1334 = vmatpush1.msra.mxu0 %v978
    %1335 = vmatprep.subr.mxu0 0.0
    %1336 = vmatpush1.msra.mxu0 %v979
    %1337 = vmatprep.subr.mxu0 0.0
    %1338 = vmatpush1.msra.mxu0 0.0
    %1339 = vmatprep.subr.mxu0 0.0
    %1340 = vmatpush1.msra.mxu0 0.0
    %1341 = vmatprep.subr.mxu0 0.0
    %1342 = vmatpush1.msra.mxu0 0.0
    %1343 = vmatprep.subr.mxu0 0.0
    %1344 = vmatpush1.msra.mxu0 0.0
    %1345 = vmatprep.subr.mxu0 0.0
    %1346 = vmatpush1.msra.mxu0 0.0
    %1347 = vmatprep.subr.mxu0 0.0
    %1348 = vmatpush1.msra.mxu0 0.0
    %1349 = vmatprep.subr.mxu0 0.0
    %1350 = vmatpush1.msra.mxu0 0.0
    %1351 = vmatprep.subr.mxu0 0.0
    %1352 = vmatpush1.msra.mxu0 0.0
    %1353 = vmatprep.subr.mxu0 0.0
    %1354 = vmatpush1.msra.mxu0 0.0
    %1355 = vmatprep.subr.mxu0 0.0
    %1356 = vmatpush1.msra.mxu0 0.0
    %1357 = vmatprep.subr.mxu0 0.0
    %1358 = vmatpush1.msra.mxu0 0.0
    %1359 = vmatprep.subr.mxu0 0.0
    %1360 = vmatpush1.msra.mxu0 0.0
    %1361 = vmatprep.subr.mxu0 0.0
    %1362 = vmatpush1.msra.mxu0 0.0
    %1363 = vmatprep.subr.mxu0 0.0
    %1364 = vmatpush1.msra.mxu0 0.0
    %1365 = vmatprep.subr.mxu0 0.0
    %1366 = vmatpush1.msra.mxu0 0.0
    %1367 = vmatprep.subr.mxu0 0.0
    %1368 = vmatpush1.msra.mxu0 0.0
    %1369 = vmatprep.subr.mxu0 0.0
    %1370 = vmatpush1.msra.mxu0 0.0
    %1371 = vmatprep.subr.mxu0 0.0
    %1372 = vmatpush1.msra.mxu0 0.0
    %1373 = vmatprep.subr.mxu0 0.0
    %1374 = vmatpush1.msra.mxu0 0.0
    %1375 = vmatprep.subr.mxu0 0.0
    %1376 = vmatpush1.msra.mxu0 0.0
    %1377 = vmatprep.subr.mxu0 0.0
    %1378 = vmatpush1.msra.mxu0 0.0
    %1379 = vmatprep.subr.mxu0 0.0
    %1380 = vmatpush1.msra.mxu0 0.0
    %1381 = vmatprep.subr.mxu0 0.0
    %1382 = vmatpush1.msra.mxu0 0.0
    %1383 = vmatprep.subr.mxu0 0.0
    %1384 = vmatpush1.msra.mxu0 0.0
    %1385 = vmatprep.subr.mxu0 0.0
    %1386 = vmatpush1.msra.mxu0 0.0
    %1387 = vmatprep.subr.mxu0 0.0
    %1388 = vmatpush1.msra.mxu0 0.0
    %1389 = vmatprep.subr.mxu0 0.0
    %1390 = vmatpush1.msra.mxu0 0.0
    %1391 = vmatprep.subr.mxu0 0.0
    %1392 = vmatpush1.msra.mxu0 0.0
    %1393 = vmatprep.subr.mxu0 0.0
    %1394 = vmatpush1.msra.mxu0 0.0
    %1395 = vmatprep.subr.mxu0 0.0
    %1396 = vmatpush1.msra.mxu0 0.0
    %1397 = vmatprep.mubr.f32.mxu0 0.0
    %1398 = vmatmul.mubr.f32.gmra.mrb[0].mxu0 %v1191
    %v1399 = vpop.f32.mrb[0].mxu0
    %v1400 = vadd.f32 %v1120, %v1399
    %v1401 = vpop.f32.mrb[0].mxu0
    %1402 = vdwg.mxu0
    %1403 = vmatprep.subr.mxu0 0.0
    %1404 = vmatpush1.msra.mxu0 %v980
    %1405 = vmatprep.subr.mxu0 0.0
    %1406 = vmatpush1.msra.mxu0 %v981
    %1407 = vmatprep.subr.mxu0 0.0
    %1408 = vmatpush1.msra.mxu0 0.0
    %1409 = vmatprep.subr.mxu0 0.0
    %1410 = vmatpush1.msra.mxu0 0.0
    %1411 = vmatprep.subr.mxu0 0.0
    %1412 = vmatpush1.msra.mxu0 0.0
    %1413 = vmatprep.subr.mxu0 0.0
    %1414 = vmatpush1.msra.mxu0 0.0
    %1415 = vmatprep.subr.mxu0 0.0
    %1416 = vmatpush1.msra.mxu0 0.0
    %1417 = vmatprep.subr.mxu0 0.0
    %1418 = vmatpush1.msra.mxu0 0.0
    %1419 = vmatprep.subr.mxu0 0.0
    %1420 = vmatpush1.msra.mxu0 0.0
    %1421 = vmatprep.subr.mxu0 0.0
    %1422 = vmatpush1.msra.mxu0 0.0
    %1423 = vmatprep.subr.mxu0 0.0
    %1424 = vmatpush1.msra.mxu0 0.0
    %1425 = vmatprep.subr.mxu0 0.0
    %1426 = vmatpush1.msra.mxu0 0.0
    %1427 = vmatprep.subr.mxu0 0.0
    %1428 = vmatpush1.msra.mxu0 0.0
    %1429 = vmatprep.subr.mxu0 0.0
    %1430 = vmatpush1.msra.mxu0 0.0
    %1431 = vmatprep.subr.mxu0 0.0
    %1432 = vmatpush1.msra.mxu0 0.0
    %1433 = vmatprep.subr.mxu0 0.0
    %1434 = vmatpush1.msra.mxu0 0.0
    %1435 = vmatprep.subr.mxu0 0.0
    %1436 = vmatpush1.msra.mxu0 0.0
    %1437 = vmatprep.subr.mxu0 0.0
    %1438 = vmatpush1.msra.mxu0 0.0
    %1439 = vmatprep.subr.mxu0 0.0
    %1440 = vmatpush1.msra.mxu0 0.0
    %1441 = vmatprep.subr.mxu0 0.0
    %1442 = vmatpush1.msra.mxu0 0.0
    %1443 = vmatprep.subr.mxu0 0.0
    %1444 = vmatpush1.msra.mxu0 0.0
    %1445 = vmatprep.subr.mxu0 0.0
    %1446 = vmatpush1.msra.mxu0 0.0
    %1447 = vmatprep.subr.mxu0 0.0
    %1448 = vmatpush1.msra.mxu0 0.0
    %1449 = vmatprep.subr.mxu0 0.0
    %1450 = vmatpush1.msra.mxu0 0.0
    %1451 = vmatprep.subr.mxu0 0.0
    %1452 = vmatpush1.msra.mxu0 0.0
    %1453 = vmatprep.subr.mxu0 0.0
    %1454 = vmatpush1.msra.mxu0 0.0
    %1455 = vmatprep.subr.mxu0 0.0
    %1456 = vmatpush1.msra.mxu0 0.0
    %1457 = vmatprep.subr.mxu0 0.0
    %1458 = vmatpush1.msra.mxu0 0.0
    %1459 = vmatprep.subr.mxu0 0.0
    %1460 = vmatpush1.msra.mxu0 0.0
    %1461 = vmatprep.subr.mxu0 0.0
    %1462 = vmatpush1.msra.mxu0 0.0
    %1463 = vmatprep.subr.mxu0 0.0
    %1464 = vmatpush1.msra.mxu0 0.0
    %1465 = vmatprep.subr.mxu0 0.0
    %1466 = vmatpush1.msra.mxu0 0.0
    %1467 = vmatprep.mubr.f32.mxu0 0.0
    %1468 = vmatmul.mubr.f32.gmra.mrb[0].mxu0 %v1191
    %v1469 = vpop.f32.mrb[0].mxu0
    %v1470 = vadd.f32 %v1124, %v1469
    %v1471 = vpop.f32.mrb[0].mxu0
    %1472 = vdwg.mxu0
    %1473 = vmatprep.subr.mxu0 0.0
    %1474 = vmatpush1.msra.mxu0 %v982
    %1475 = vmatprep.subr.mxu0 0.0
    %1476 = vmatpush1.msra.mxu0 %v983
    %1477 = vmatprep.subr.mxu0 0.0
    %1478 = vmatpush1.msra.mxu0 0.0
    %1479 = vmatprep.subr.mxu0 0.0
    %1480 = vmatpush1.msra.mxu0 0.0
    %1481 = vmatprep.subr.mxu0 0.0
    %1482 = vmatpush1.msra.mxu0 0.0
    %1483 = vmatprep.subr.mxu0 0.0
    %1484 = vmatpush1.msra.mxu0 0.0
    %1485 = vmatprep.subr.mxu0 0.0
    %1486 = vmatpush1.msra.mxu0 0.0
    %1487 = vmatprep.subr.mxu0 0.0
    %1488 = vmatpush1.msra.mxu0 0.0
    %1489 = vmatprep.subr.mxu0 0.0
    %1490 = vmatpush1.msra.mxu0 0.0
    %1491 = vmatprep.subr.mxu0 0.0
    %1492 = vmatpush1.msra.mxu0 0.0
    %1493 = vmatprep.subr.mxu0 0.0
    %1494 = vmatpush1.msra.mxu0 0.0
    %1495 = vmatprep.subr.mxu0 0.0
    %1496 = vmatpush1.msra.mxu0 0.0
    %1497 = vmatprep.subr.mxu0 0.0
    %1498 = vmatpush1.msra.mxu0 0.0
    %1499 = vmatprep.subr.mxu0 0.0
    %1500 = vmatpush1.msra.mxu0 0.0
    %1501 = vmatprep.subr.mxu0 0.0
    %1502 = vmatpush1.msra.mxu0 0.0
    %1503 = vmatprep.subr.mxu0 0.0
    %1504 = vmatpush1.msra.mxu0 0.0
    %1505 = vmatprep.subr.mxu0 0.0
    %1506 = vmatpush1.msra.mxu0 0.0
    %1507 = vmatprep.subr.mxu0 0.0
    %1508 = vmatpush1.msra.mxu0 0.0
    %1509 = vmatprep.subr.mxu0 0.0
    %1510 = vmatpush1.msra.mxu0 0.0
    %1511 = vmatprep.subr.mxu0 0.0
    %1512 = vmatpush1.msra.mxu0 0.0
    %1513 = vmatprep.subr.mxu0 0.0
    %1514 = vmatpush1.msra.mxu0 0.0
    %1515 = vmatprep.subr.mxu0 0.0
    %1516 = vmatpush1.msra.mxu0 0.0
    %1517 = vmatprep.subr.mxu0 0.0
    %1518 = vmatpush1.msra.mxu0 0.0
    %1519 = vmatprep.subr.mxu0 0.0
    %1520 = vmatpush1.msra.mxu0 0.0
    %1521 = vmatprep.subr.mxu0 0.0
    %1522 = vmatpush1.msra.mxu0 0.0
    %1523 = vmatprep.subr.mxu0 0.0
    %1524 = vmatpush1.msra.mxu0 0.0
    %1525 = vmatprep.subr.mxu0 0.0
    %1526 = vmatpush1.msra.mxu0 0.0
    %1527 = vmatprep.subr.mxu0 0.0
    %1528 = vmatpush1.msra.mxu0 0.0
    %1529 = vmatprep.subr.mxu0 0.0
    %1530 = vmatpush1.msra.mxu0 0.0
    %1531 = vmatprep.subr.mxu0 0.0
    %1532 = vmatpush1.msra.mxu0 0.0
    %1533 = vmatprep.subr.mxu0 0.0
    %1534 = vmatpush1.msra.mxu0 0.0
    %1535 = vmatprep.subr.mxu0 0.0
    %1536 = vmatpush1.msra.mxu0 0.0
    %1537 = vmatprep.mubr.f32.mxu0 0.0
    %1538 = vmatmul.mubr.f32.gmra.mrb[0].mxu0 %v1191
    %v1539 = vpop.f32.mrb[0].mxu0
    %v1540 = vadd.f32 %v1128, %v1539
    %v1541 = vpop.f32.mrb[0].mxu0
    %1542 = vdwg.mxu0
    %1543 = vmatprep.subr.mxu0 0.0
    %1544 = vmatpush1.msra.mxu0 %v984
    %1545 = vmatprep.subr.mxu0 0.0
    %1546 = vmatpush1.msra.mxu0 %v985
    %1547 = vmatprep.subr.mxu0 0.0
    %1548 = vmatpush1.msra.mxu0 0.0
    %1549 = vmatprep.subr.mxu0 0.0
    %1550 = vmatpush1.msra.mxu0 0.0
    %1551 = vmatprep.subr.mxu0 0.0
    %1552 = vmatpush1.msra.mxu0 0.0
    %1553 = vmatprep.subr.mxu0 0.0
    %1554 = vmatpush1.msra.mxu0 0.0
    %1555 = vmatprep.subr.mxu0 0.0
    %1556 = vmatpush1.msra.mxu0 0.0
    %1557 = vmatprep.subr.mxu0 0.0
    %1558 = vmatpush1.msra.mxu0 0.0
    %1559 = vmatprep.subr.mxu0 0.0
    %1560 = vmatpush1.msra.mxu0 0.0
    %1561 = vmatprep.subr.mxu0 0.0
    %1562 = vmatpush1.msra.mxu0 0.0
    %1563 = vmatprep.subr.mxu0 0.0
    %1564 = vmatpush1.msra.mxu0 0.0
    %1565 = vmatprep.subr.mxu0 0.0
    %1566 = vmatpush1.msra.mxu0 0.0
    %1567 = vmatprep.subr.mxu0 0.0
    %1568 = vmatpush1.msra.mxu0 0.0
    %1569 = vmatprep.subr.mxu0 0.0
    %1570 = vmatpush1.msra.mxu0 0.0
    %1571 = vmatprep.subr.mxu0 0.0
    %1572 = vmatpush1.msra.mxu0 0.0
    %1573 = vmatprep.subr.mxu0 0.0
    %1574 = vmatpush1.msra.mxu0 0.0
    %1575 = vmatprep.subr.mxu0 0.0
    %1576 = vmatpush1.msra.mxu0 0.0
    %1577 = vmatprep.subr.mxu0 0.0
    %1578 = vmatpush1.msra.mxu0 0.0
    %1579 = vmatprep.subr.mxu0 0.0
    %1580 = vmatpush1.msra.mxu0 0.0
    %1581 = vmatprep.subr.mxu0 0.0
    %1582 = vmatpush1.msra.mxu0 0.0
    %1583 = vmatprep.subr.mxu0 0.0
    %1584 = vmatpush1.msra.mxu0 0.0
    %1585 = vmatprep.subr.mxu0 0.0
    %1586 = vmatpush1.msra.mxu0 0.0
    %1587 = vmatprep.subr.mxu0 0.0
    %1588 = vmatpush1.msra.mxu0 0.0
    %1589 = vmatprep.subr.mxu0 0.0
    %1590 = vmatpush1.msra.mxu0 0.0
    %1591 = vmatprep.subr.mxu0 0.0
    %1592 = vmatpush1.msra.mxu0 0.0
    %1593 = vmatprep.subr.mxu0 0.0
    %1594 = vmatpush1.msra.mxu0 0.0
    %1595 = vmatprep.subr.mxu0 0.0
    %1596 = vmatpush1.msra.mxu0 0.0
    %1597 = vmatprep.subr.mxu0 0.0
    %1598 = vmatpush1.msra.mxu0 0.0
    %1599 = vmatprep.subr.mxu0 0.0
    %1600 = vmatpush1.msra.mxu0 0.0
    %1601 = vmatprep.subr.mxu0 0.0
    %1602 = vmatpush1.msra.mxu0 0.0
    %1603 = vmatprep.subr.mxu0 0.0
    %1604 = vmatpush1.msra.mxu0 0.0
    %1605 = vmatprep.subr.mxu0 0.0
    %1606 = vmatpush1.msra.mxu0 0.0
    %1607 = vmatprep.mubr.f32.mxu0 0.0
    %1608 = vmatmul.mubr.f32.gmra.mrb[0].mxu0 %v1191
    %v1609 = vpop.f32.mrb[0].mxu0
    %v1610 = vadd.f32 %v1132, %v1609
    %v1611 = vpop.f32.mrb[0].mxu0
    %1612 = vdwg.mxu0
    %1613 = vmatprep.subr.mxu0 0.0
    %1614 = vmatpush1.msra.mxu0 %v986
    %1615 = vmatprep.subr.mxu0 0.0
    %1616 = vmatpush1.msra.mxu0 %v987
    %1617 = vmatprep.subr.mxu0 0.0
    %1618 = vmatpush1.msra.mxu0 0.0
    %1619 = vmatprep.subr.mxu0 0.0
    %1620 = vmatpush1.msra.mxu0 0.0
    %1621 = vmatprep.subr.mxu0 0.0
    %1622 = vmatpush1.msra.mxu0 0.0
    %1623 = vmatprep.subr.mxu0 0.0
    %1624 = vmatpush1.msra.mxu0 0.0
    %1625 = vmatprep.subr.mxu0 0.0
    %1626 = vmatpush1.msra.mxu0 0.0
    %1627 = vmatprep.subr.mxu0 0.0
    %1628 = vmatpush1.msra.mxu0 0.0
    %1629 = vmatprep.subr.mxu0 0.0
    %1630 = vmatpush1.msra.mxu0 0.0
    %1631 = vmatprep.subr.mxu0 0.0
    %1632 = vmatpush1.msra.mxu0 0.0
    %1633 = vmatprep.subr.mxu0 0.0
    %1634 = vmatpush1.msra.mxu0 0.0
    %1635 = vmatprep.subr.mxu0 0.0
    %1636 = vmatpush1.msra.mxu0 0.0
    %1637 = vmatprep.subr.mxu0 0.0
    %1638 = vmatpush1.msra.mxu0 0.0
    %1639 = vmatprep.subr.mxu0 0.0
    %1640 = vmatpush1.msra.mxu0 0.0
    %1641 = vmatprep.subr.mxu0 0.0
    %1642 = vmatpush1.msra.mxu0 0.0
    %1643 = vmatprep.subr.mxu0 0.0
    %1644 = vmatpush1.msra.mxu0 0.0
    %1645 = vmatprep.subr.mxu0 0.0
    %1646 = vmatpush1.msra.mxu0 0.0
    %1647 = vmatprep.subr.mxu0 0.0
    %1648 = vmatpush1.msra.mxu0 0.0
    %1649 = vmatprep.subr.mxu0 0.0
    %1650 = vmatpush1.msra.mxu0 0.0
    %1651 = vmatprep.subr.mxu0 0.0
    %1652 = vmatpush1.msra.mxu0 0.0
    %1653 = vmatprep.subr.mxu0 0.0
    %1654 = vmatpush1.msra.mxu0 0.0
    %1655 = vmatprep.subr.mxu0 0.0
    %1656 = vmatpush1.msra.mxu0 0.0
    %1657 = vmatprep.subr.mxu0 0.0
    %1658 = vmatpush1.msra.mxu0 0.0
    %1659 = vmatprep.subr.mxu0 0.0
    %1660 = vmatpush1.msra.mxu0 0.0
    %1661 = vmatprep.subr.mxu0 0.0
    %1662 = vmatpush1.msra.mxu0 0.0
    %1663 = vmatprep.subr.mxu0 0.0
    %1664 = vmatpush1.msra.mxu0 0.0
    %1665 = vmatprep.subr.mxu0 0.0
    %1666 = vmatpush1.msra.mxu0 0.0
    %1667 = vmatprep.subr.mxu0 0.0
    %1668 = vmatpush1.msra.mxu0 0.0
    %1669 = vmatprep.subr.mxu0 0.0
    %1670 = vmatpush1.msra.mxu0 0.0
    %1671 = vmatprep.subr.mxu0 0.0
    %1672 = vmatpush1.msra.mxu0 0.0
    %1673 = vmatprep.subr.mxu0 0.0
    %1674 = vmatpush1.msra.mxu0 0.0
    %1675 = vmatprep.subr.mxu0 0.0
    %1676 = vmatpush1.msra.mxu0 0.0
    %1677 = vmatprep.mubr.f32.mxu0 0.0
    %1678 = vmatmul.mubr.f32.gmra.mrb[0].mxu0 %v1191
    %v1679 = vpop.f32.mrb[0].mxu0
    %v1680 = vadd.f32 %v1136, %v1679
    %v1681 = vpop.f32.mrb[0].mxu0
    %1682 = vdwg.mxu0
    %1683 = vmatprep.subr.mxu0 0.0
    %1684 = vmatpush1.msra.mxu0 %v988
    %1685 = vmatprep.subr.mxu0 0.0
    %1686 = vmatpush1.msra.mxu0 %v989
    %1687 = vmatprep.subr.mxu0 0.0
    %1688 = vmatpush1.msra.mxu0 0.0
    %1689 = vmatprep.subr.mxu0 0.0
    %1690 = vmatpush1.msra.mxu0 0.0
    %1691 = vmatprep.subr.mxu0 0.0
    %1692 = vmatpush1.msra.mxu0 0.0
    %1693 = vmatprep.subr.mxu0 0.0
    %1694 = vmatpush1.msra.mxu0 0.0
    %1695 = vmatprep.subr.mxu0 0.0
    %1696 = vmatpush1.msra.mxu0 0.0
    %1697 = vmatprep.subr.mxu0 0.0
    %1698 = vmatpush1.msra.mxu0 0.0
    %1699 = vmatprep.subr.mxu0 0.0
    %1700 = vmatpush1.msra.mxu0 0.0
    %1701 = vmatprep.subr.mxu0 0.0
    %1702 = vmatpush1.msra.mxu0 0.0
    %1703 = vmatprep.subr.mxu0 0.0
    %1704 = vmatpush1.msra.mxu0 0.0
    %1705 = vmatprep.subr.mxu0 0.0
    %1706 = vmatpush1.msra.mxu0 0.0
    %1707 = vmatprep.subr.mxu0 0.0
    %1708 = vmatpush1.msra.mxu0 0.0
    %1709 = vmatprep.subr.mxu0 0.0
    %1710 = vmatpush1.msra.mxu0 0.0
    %1711 = vmatprep.subr.mxu0 0.0
    %1712 = vmatpush1.msra.mxu0 0.0
    %1713 = vmatprep.subr.mxu0 0.0
    %1714 = vmatpush1.msra.mxu0 0.0
    %1715 = vmatprep.subr.mxu0 0.0
    %1716 = vmatpush1.msra.mxu0 0.0
    %1717 = vmatprep.subr.mxu0 0.0
    %1718 = vmatpush1.msra.mxu0 0.0
    %1719 = vmatprep.subr.mxu0 0.0
    %1720 = vmatpush1.msra.mxu0 0.0
    %1721 = vmatprep.subr.mxu0 0.0
    %1722 = vmatpush1.msra.mxu0 0.0
    %1723 = vmatprep.subr.mxu0 0.0
    %1724 = vmatpush1.msra.mxu0 0.0
    %1725 = vmatprep.subr.mxu0 0.0
    %1726 = vmatpush1.msra.mxu0 0.0
    %1727 = vmatprep.subr.mxu0 0.0
    %1728 = vmatpush1.msra.mxu0 0.0
    %1729 = vmatprep.subr.mxu0 0.0
    %1730 = vmatpush1.msra.mxu0 0.0
    %1731 = vmatprep.subr.mxu0 0.0
    %1732 = vmatpush1.msra.mxu0 0.0
    %1733 = vmatprep.subr.mxu0 0.0
    %1734 = vmatpush1.msra.mxu0 0.0
    %1735 = vmatprep.subr.mxu0 0.0
    %1736 = vmatpush1.msra.mxu0 0.0
    %1737 = vmatprep.subr.mxu0 0.0
    %1738 = vmatpush1.msra.mxu0 0.0
    %1739 = vmatprep.subr.mxu0 0.0
    %1740 = vmatpush1.msra.mxu0 0.0
    %1741 = vmatprep.subr.mxu0 0.0
    %1742 = vmatpush1.msra.mxu0 0.0
    %1743 = vmatprep.subr.mxu0 0.0
    %1744 = vmatpush1.msra.mxu0 0.0
    %1745 = vmatprep.subr.mxu0 0.0
    %1746 = vmatpush1.msra.mxu0 0.0
    %1747 = vmatprep.mubr.f32.mxu0 0.0
    %1748 = vmatmul.mubr.f32.gmra.mrb[0].mxu0 %v1191
    %v1749 = vpop.f32.mrb[0].mxu0
    %v1750 = vadd.f32 %v1140, %v1749
    %v1751 = vpop.f32.mrb[0].mxu0
    %1752 = vdwg.mxu0
    %1753 = vmatprep.subr.mxu0 0.0
    %1754 = vmatpush1.msra.mxu0 %v990
    %1755 = vmatprep.subr.mxu0 0.0
    %1756 = vmatpush1.msra.mxu0 %v991
    %1757 = vmatprep.subr.mxu0 0.0
    %1758 = vmatpush1.msra.mxu0 0.0
    %1759 = vmatprep.subr.mxu0 0.0
    %1760 = vmatpush1.msra.mxu0 0.0
    %1761 = vmatprep.subr.mxu0 0.0
    %1762 = vmatpush1.msra.mxu0 0.0
    %1763 = vmatprep.subr.mxu0 0.0
    %1764 = vmatpush1.msra.mxu0 0.0
    %1765 = vmatprep.subr.mxu0 0.0
    %1766 = vmatpush1.msra.mxu0 0.0
    %1767 = vmatprep.subr.mxu0 0.0
    %1768 = vmatpush1.msra.mxu0 0.0
    %1769 = vmatprep.subr.mxu0 0.0
    %1770 = vmatpush1.msra.mxu0 0.0
    %1771 = vmatprep.subr.mxu0 0.0
    %1772 = vmatpush1.msra.mxu0 0.0
    %1773 = vmatprep.subr.mxu0 0.0
    %1774 = vmatpush1.msra.mxu0 0.0
    %1775 = vmatprep.subr.mxu0 0.0
    %1776 = vmatpush1.msra.mxu0 0.0
    %1777 = vmatprep.subr.mxu0 0.0
    %1778 = vmatpush1.msra.mxu0 0.0
    %1779 = vmatprep.subr.mxu0 0.0
    %1780 = vmatpush1.msra.mxu0 0.0
    %1781 = vmatprep.subr.mxu0 0.0
    %1782 = vmatpush1.msra.mxu0 0.0
    %1783 = vmatprep.subr.mxu0 0.0
    %1784 = vmatpush1.msra.mxu0 0.0
    %1785 = vmatprep.subr.mxu0 0.0
    %1786 = vmatpush1.msra.mxu0 0.0
    %1787 = vmatprep.subr.mxu0 0.0
    %1788 = vmatpush1.msra.mxu0 0.0
    %1789 = vmatprep.subr.mxu0 0.0
    %1790 = vmatpush1.msra.mxu0 0.0
    %1791 = vmatprep.subr.mxu0 0.0
    %1792 = vmatpush1.msra.mxu0 0.0
    %1793 = vmatprep.subr.mxu0 0.0
    %1794 = vmatpush1.msra.mxu0 0.0
    %1795 = vmatprep.subr.mxu0 0.0
    %1796 = vmatpush1.msra.mxu0 0.0
    %1797 = vmatprep.subr.mxu0 0.0
    %1798 = vmatpush1.msra.mxu0 0.0
    %1799 = vmatprep.subr.mxu0 0.0
    %1800 = vmatpush1.msra.mxu0 0.0
    %1801 = vmatprep.subr.mxu0 0.0
    %1802 = vmatpush1.msra.mxu0 0.0
    %1803 = vmatprep.subr.mxu0 0.0
    %1804 = vmatpush1.msra.mxu0 0.0
    %1805 = vmatprep.subr.mxu0 0.0
    %1806 = vmatpush1.msra.mxu0 0.0
    %1807 = vmatprep.subr.mxu0 0.0
    %1808 = vmatpush1.msra.mxu0 0.0
    %1809 = vmatprep.subr.mxu0 0.0
    %1810 = vmatpush1.msra.mxu0 0.0
    %1811 = vmatprep.subr.mxu0 0.0
    %1812 = vmatpush1.msra.mxu0 0.0
    %1813 = vmatprep.subr.mxu0 0.0
    %1814 = vmatpush1.msra.mxu0 0.0
    %1815 = vmatprep.subr.mxu0 0.0
    %1816 = vmatpush1.msra.mxu0 0.0
    %1817 = vmatprep.mubr.f32.mxu0 0.0
    %1818 = vmatmul.mubr.f32.gmra.mrb[0].mxu0 %v1191
    %v1819 = vpop.f32.mrb[0].mxu0
    %v1820 = vadd.f32 %v1144, %v1819
    %v1821 = vpop.f32.mrb[0].mxu0
    %1822 = vdwg.mxu0
    %1823 = vmatprep.subr.mxu0 0.0
    %1824 = vmatpush1.msra.mxu0 %v992
    %1825 = vmatprep.subr.mxu0 0.0
    %1826 = vmatpush1.msra.mxu0 %v993
    %1827 = vmatprep.subr.mxu0 0.0
    %1828 = vmatpush1.msra.mxu0 0.0
    %1829 = vmatprep.subr.mxu0 0.0
    %1830 = vmatpush1.msra.mxu0 0.0
    %1831 = vmatprep.subr.mxu0 0.0
    %1832 = vmatpush1.msra.mxu0 0.0
    %1833 = vmatprep.subr.mxu0 0.0
    %1834 = vmatpush1.msra.mxu0 0.0
    %1835 = vmatprep.subr.mxu0 0.0
    %1836 = vmatpush1.msra.mxu0 0.0
    %1837 = vmatprep.subr.mxu0 0.0
    %1838 = vmatpush1.msra.mxu0 0.0
    %1839 = vmatprep.subr.mxu0 0.0
    %1840 = vmatpush1.msra.mxu0 0.0
    %1841 = vmatprep.subr.mxu0 0.0
    %1842 = vmatpush1.msra.mxu0 0.0
    %1843 = vmatprep.subr.mxu0 0.0
    %1844 = vmatpush1.msra.mxu0 0.0
    %1845 = vmatprep.subr.mxu0 0.0
    %1846 = vmatpush1.msra.mxu0 0.0
    %1847 = vmatprep.subr.mxu0 0.0
    %1848 = vmatpush1.msra.mxu0 0.0
    %1849 = vmatprep.subr.mxu0 0.0
    %1850 = vmatpush1.msra.mxu0 0.0
    %1851 = vmatprep.subr.mxu0 0.0
    %1852 = vmatpush1.msra.mxu0 0.0
    %1853 = vmatprep.subr.mxu0 0.0
    %1854 = vmatpush1.msra.mxu0 0.0
    %1855 = vmatprep.subr.mxu0 0.0
    %1856 = vmatpush1.msra.mxu0 0.0
    %1857 = vmatprep.subr.mxu0 0.0
    %1858 = vmatpush1.msra.mxu0 0.0
    %1859 = vmatprep.subr.mxu0 0.0
    %1860 = vmatpush1.msra.mxu0 0.0
    %1861 = vmatprep.subr.mxu0 0.0
    %1862 = vmatpush1.msra.mxu0 0.0
    %1863 = vmatprep.subr.mxu0 0.0
    %1864 = vmatpush1.msra.mxu0 0.0
    %1865 = vmatprep.subr.mxu0 0.0
    %1866 = vmatpush1.msra.mxu0 0.0
    %1867 = vmatprep.subr.mxu0 0.0
    %1868 = vmatpush1.msra.mxu0 0.0
    %1869 = vmatprep.subr.mxu0 0.0
    %1870 = vmatpush1.msra.mxu0 0.0
    %1871 = vmatprep.subr.mxu0 0.0
    %1872 = vmatpush1.msra.mxu0 0.0
    %1873 = vmatprep.subr.mxu0 0.0
    %1874 = vmatpush1.msra.mxu0 0.0
    %1875 = vmatprep.subr.mxu0 0.0
    %1876 = vmatpush1.msra.mxu0 0.0
    %1877 = vmatprep.subr.mxu0 0.0
    %1878 = vmatpush1.msra.mxu0 0.0
    %1879 = vmatprep.subr.mxu0 0.0
    %1880 = vmatpush1.msra.mxu0 0.0
    %1881 = vmatprep.subr.mxu0 0.0
    %1882 = vmatpush1.msra.mxu0 0.0
    %1883 = vmatprep.subr.mxu0 0.0
    %1884 = vmatpush1.msra.mxu0 0.0
    %1885 = vmatprep.subr.mxu0 0.0
    %1886 = vmatpush1.msra.mxu0 0.0
    %1887 = vmatprep.mubr.f32.mxu0 0.0
    %1888 = vmatmul.mubr.f32.gmra.mrb[0].mxu0 %v1191
    %v1889 = vpop.f32.mrb[0].mxu0
    %v1890 = vadd.f32 %v1148, %v1889
    %v1891 = vpop.f32.mrb[0].mxu0
    %1892 = vdwg.mxu0
    %1893 = vmatprep.subr.mxu0 0.0
    %1894 = vmatpush1.msra.mxu0 %v994
    %1895 = vmatprep.subr.mxu0 0.0
    %1896 = vmatpush1.msra.mxu0 %v995
    %1897 = vmatprep.subr.mxu0 0.0
    %1898 = vmatpush1.msra.mxu0 0.0
    %1899 = vmatprep.subr.mxu0 0.0
    %1900 = vmatpush1.msra.mxu0 0.0
    %1901 = vmatprep.subr.mxu0 0.0
    %1902 = vmatpush1.msra.mxu0 0.0
    %1903 = vmatprep.subr.mxu0 0.0
    %1904 = vmatpush1.msra.mxu0 0.0
    %1905 = vmatprep.subr.mxu0 0.0
    %1906 = vmatpush1.msra.mxu0 0.0
    %1907 = vmatprep.subr.mxu0 0.0
    %1908 = vmatpush1.msra.mxu0 0.0
    %1909 = vmatprep.subr.mxu0 0.0
    %1910 = vmatpush1.msra.mxu0 0.0
    %1911 = vmatprep.subr.mxu0 0.0
    %1912 = vmatpush1.msra.mxu0 0.0
    %1913 = vmatprep.subr.mxu0 0.0
    %1914 = vmatpush1.msra.mxu0 0.0
    %1915 = vmatprep.subr.mxu0 0.0
    %1916 = vmatpush1.msra.mxu0 0.0
    %1917 = vmatprep.subr.mxu0 0.0
    %1918 = vmatpush1.msra.mxu0 0.0
    %1919 = vmatprep.subr.mxu0 0.0
    %1920 = vmatpush1.msra.mxu0 0.0
    %1921 = vmatprep.subr.mxu0 0.0
    %1922 = vmatpush1.msra.mxu0 0.0
    %1923 = vmatprep.subr.mxu0 0.0
    %1924 = vmatpush1.msra.mxu0 0.0
    %1925 = vmatprep.subr.mxu0 0.0
    %1926 = vmatpush1.msra.mxu0 0.0
    %1927 = vmatprep.subr.mxu0 0.0
    %1928 = vmatpush1.msra.mxu0 0.0
    %1929 = vmatprep.subr.mxu0 0.0
    %1930 = vmatpush1.msra.mxu0 0.0
    %1931 = vmatprep.subr.mxu0 0.0
    %1932 = vmatpush1.msra.mxu0 0.0
    %1933 = vmatprep.subr.mxu0 0.0
    %1934 = vmatpush1.msra.mxu0 0.0
    %1935 = vmatprep.subr.mxu0 0.0
    %1936 = vmatpush1.msra.mxu0 0.0
    %1937 = vmatprep.subr.mxu0 0.0
    %1938 = vmatpush1.msra.mxu0 0.0
    %1939 = vmatprep.subr.mxu0 0.0
    %1940 = vmatpush1.msra.mxu0 0.0
    %1941 = vmatprep.subr.mxu0 0.0
    %1942 = vmatpush1.msra.mxu0 0.0
    %1943 = vmatprep.subr.mxu0 0.0
    %1944 = vmatpush1.msra.mxu0 0.0
    %1945 = vmatprep.subr.mxu0 0.0
    %1946 = vmatpush1.msra.mxu0 0.0
    %1947 = vmatprep.subr.mxu0 0.0
    %1948 = vmatpush1.msra.mxu0 0.0
    %1949 = vmatprep.subr.mxu0 0.0
    %1950 = vmatpush1.msra.mxu0 0.0
    %1951 = vmatprep.subr.mxu0 0.0
    %1952 = vmatpush1.msra.mxu0 0.0
    %1953 = vmatprep.subr.mxu0 0.0
    %1954 = vmatpush1.msra.mxu0 0.0
    %1955 = vmatprep.subr.mxu0 0.0
    %1956 = vmatpush1.msra.mxu0 0.0
    %1957 = vmatprep.mubr.f32.mxu0 0.0
    %1958 = vmatmul.mubr.f32.gmra.mrb[0].mxu0 %v1191
    %v1959 = vpop.f32.mrb[0].mxu0
    %v1960 = vadd.f32 %v1152, %v1959
    %v1961 = vpop.f32.mrb[0].mxu0
    %1962 = vdwg.mxu0
    %1963 = vmatprep.subr.mxu0 0.0
    %1964 = vmatpush1.msra.mxu0 %v996
    %1965 = vmatprep.subr.mxu0 0.0
    %1966 = vmatpush1.msra.mxu0 %v997
    %1967 = vmatprep.subr.mxu0 0.0
    %1968 = vmatpush1.msra.mxu0 0.0
    %1969 = vmatprep.subr.mxu0 0.0
    %1970 = vmatpush1.msra.mxu0 0.0
    %1971 = vmatprep.subr.mxu0 0.0
    %1972 = vmatpush1.msra.mxu0 0.0
    %1973 = vmatprep.subr.mxu0 0.0
    %1974 = vmatpush1.msra.mxu0 0.0
    %1975 = vmatprep.subr.mxu0 0.0
    %1976 = vmatpush1.msra.mxu0 0.0
    %1977 = vmatprep.subr.mxu0 0.0
    %1978 = vmatpush1.msra.mxu0 0.0
    %1979 = vmatprep.subr.mxu0 0.0
    %1980 = vmatpush1.msra.mxu0 0.0
    %1981 = vmatprep.subr.mxu0 0.0
    %1982 = vmatpush1.msra.mxu0 0.0
    %1983 = vmatprep.subr.mxu0 0.0
    %1984 = vmatpush1.msra.mxu0 0.0
    %1985 = vmatprep.subr.mxu0 0.0
    %1986 = vmatpush1.msra.mxu0 0.0
    %1987 = vmatprep.subr.mxu0 0.0
    %1988 = vmatpush1.msra.mxu0 0.0
    %1989 = vmatprep.subr.mxu0 0.0
    %1990 = vmatpush1.msra.mxu0 0.0
    %1991 = vmatprep.subr.mxu0 0.0
    %1992 = vmatpush1.msra.mxu0 0.0
    %1993 = vmatprep.subr.mxu0 0.0
    %1994 = vmatpush1.msra.mxu0 0.0
    %1995 = vmatprep.subr.mxu0 0.0
    %1996 = vmatpush1.msra.mxu0 0.0
    %1997 = vmatprep.subr.mxu0 0.0
    %1998 = vmatpush1.msra.mxu0 0.0
    %1999 = vmatprep.subr.mxu0 0.0
    %2000 = vmatpush1.msra.mxu0 0.0
    %2001 = vmatprep.subr.mxu0 0.0
    %2002 = vmatpush1.msra.mxu0 0.0
    %2003 = vmatprep.subr.mxu0 0.0
    %2004 = vmatpush1.msra.mxu0 0.0
    %2005 = vmatprep.subr.mxu0 0.0
    %2006 = vmatpush1.msra.mxu0 0.0
    %2007 = vmatprep.subr.mxu0 0.0
    %2008 = vmatpush1.msra.mxu0 0.0
    %2009 = vmatprep.subr.mxu0 0.0
    %2010 = vmatpush1.msra.mxu0 0.0
    %2011 = vmatprep.subr.mxu0 0.0
    %2012 = vmatpush1.msra.mxu0 0.0
    %2013 = vmatprep.subr.mxu0 0.0
    %2014 = vmatpush1.msra.mxu0 0.0
    %2015 = vmatprep.subr.mxu0 0.0
    %2016 = vmatpush1.msra.mxu0 0.0
    %2017 = vmatprep.subr.mxu0 0.0
    %2018 = vmatpush1.msra.mxu0 0.0
    %2019 = vmatprep.subr.mxu0 0.0
    %2020 = vmatpush1.msra.mxu0 0.0
    %2021 = vmatprep.subr.mxu0 0.0
    %2022 = vmatpush1.msra.mxu0 0.0
    %2023 = vmatprep.subr.mxu0 0.0
    %2024 = vmatpush1.msra.mxu0 0.0
    %2025 = vmatprep.subr.mxu0 0.0
    %2026 = vmatpush1.msra.mxu0 0.0
    %2027 = vmatprep.mubr.f32.mxu0 0.0
    %2028 = vmatmul.mubr.f32.gmra.mrb[0].mxu0 %v1191
    %v2029 = vpop.f32.mrb[0].mxu0
    %v2030 = vadd.f32 %v1156, %v2029
    %v2031 = vpop.f32.mrb[0].mxu0
    %2032 = vdwg.mxu0
    %2033 = vmatprep.subr.mxu0 0.0
    %2034 = vmatpush1.msra.mxu0 %v998
    %2035 = vmatprep.subr.mxu0 0.0
    %2036 = vmatpush1.msra.mxu0 %v999
    %2037 = vmatprep.subr.mxu0 0.0
    %2038 = vmatpush1.msra.mxu0 0.0
    %2039 = vmatprep.subr.mxu0 0.0
    %2040 = vmatpush1.msra.mxu0 0.0
    %2041 = vmatprep.subr.mxu0 0.0
    %2042 = vmatpush1.msra.mxu0 0.0
    %2043 = vmatprep.subr.mxu0 0.0
    %2044 = vmatpush1.msra.mxu0 0.0
    %2045 = vmatprep.subr.mxu0 0.0
    %2046 = vmatpush1.msra.mxu0 0.0
    %2047 = vmatprep.subr.mxu0 0.0
    %2048 = vmatpush1.msra.mxu0 0.0
    %2049 = vmatprep.subr.mxu0 0.0
    %2050 = vmatpush1.msra.mxu0 0.0
    %2051 = vmatprep.subr.mxu0 0.0
    %2052 = vmatpush1.msra.mxu0 0.0
    %2053 = vmatprep.subr.mxu0 0.0
    %2054 = vmatpush1.msra.mxu0 0.0
    %2055 = vmatprep.subr.mxu0 0.0
    %2056 = vmatpush1.msra.mxu0 0.0
    %2057 = vmatprep.subr.mxu0 0.0
    %2058 = vmatpush1.msra.mxu0 0.0
    %2059 = vmatprep.subr.mxu0 0.0
    %2060 = vmatpush1.msra.mxu0 0.0
    %2061 = vmatprep.subr.mxu0 0.0
    %2062 = vmatpush1.msra.mxu0 0.0
    %2063 = vmatprep.subr.mxu0 0.0
    %2064 = vmatpush1.msra.mxu0 0.0
    %2065 = vmatprep.subr.mxu0 0.0
    %2066 = vmatpush1.msra.mxu0 0.0
    %2067 = vmatprep.subr.mxu0 0.0
    %2068 = vmatpush1.msra.mxu0 0.0
    %2069 = vmatprep.subr.mxu0 0.0
    %2070 = vmatpush1.msra.mxu0 0.0
    %2071 = vmatprep.subr.mxu0 0.0
    %2072 = vmatpush1.msra.mxu0 0.0
    %2073 = vmatprep.subr.mxu0 0.0
    %2074 = vmatpush1.msra.mxu0 0.0
    %2075 = vmatprep.subr.mxu0 0.0
    %2076 = vmatpush1.msra.mxu0 0.0
    %2077 = vmatprep.subr.mxu0 0.0
    %2078 = vmatpush1.msra.mxu0 0.0
    %2079 = vmatprep.subr.mxu0 0.0
    %2080 = vmatpush1.msra.mxu0 0.0
    %2081 = vmatprep.subr.mxu0 0.0
    %2082 = vmatpush1.msra.mxu0 0.0
    %2083 = vmatprep.subr.mxu0 0.0
    %2084 = vmatpush1.msra.mxu0 0.0
    %2085 = vmatprep.subr.mxu0 0.0
    %2086 = vmatpush1.msra.mxu0 0.0
    %2087 = vmatprep.subr.mxu0 0.0
    %2088 = vmatpush1.msra.mxu0 0.0
    %2089 = vmatprep.subr.mxu0 0.0
    %2090 = vmatpush1.msra.mxu0 0.0
    %2091 = vmatprep.subr.mxu0 0.0
    %2092 = vmatpush1.msra.mxu0 0.0
    %2093 = vmatprep.subr.mxu0 0.0
    %2094 = vmatpush1.msra.mxu0 0.0
    %2095 = vmatprep.subr.mxu0 0.0
    %2096 = vmatpush1.msra.mxu0 0.0
    %2097 = vmatprep.mubr.f32.mxu0 0.0
    %2098 = vmatmul.mubr.f32.gmra.mrb[0].mxu0 %v1191
    %v2099 = vpop.f32.mrb[0].mxu0
    %v2100 = vadd.f32 %v1160, %v2099
    %v2101 = vpop.f32.mrb[0].mxu0
    %2102 = vdwg.mxu0
    %2103 = vmatprep.subr.mxu0 0.0
    %2104 = vmatpush1.msra.mxu0 %v1000
    %2105 = vmatprep.subr.mxu0 0.0
    %2106 = vmatpush1.msra.mxu0 %v1001
    %2107 = vmatprep.subr.mxu0 0.0
    %2108 = vmatpush1.msra.mxu0 0.0
    %2109 = vmatprep.subr.mxu0 0.0
    %2110 = vmatpush1.msra.mxu0 0.0
    %2111 = vmatprep.subr.mxu0 0.0
    %2112 = vmatpush1.msra.mxu0 0.0
    %2113 = vmatprep.subr.mxu0 0.0
    %2114 = vmatpush1.msra.mxu0 0.0
    %2115 = vmatprep.subr.mxu0 0.0
    %2116 = vmatpush1.msra.mxu0 0.0
    %2117 = vmatprep.subr.mxu0 0.0
    %2118 = vmatpush1.msra.mxu0 0.0
    %2119 = vmatprep.subr.mxu0 0.0
    %2120 = vmatpush1.msra.mxu0 0.0
    %2121 = vmatprep.subr.mxu0 0.0
    %2122 = vmatpush1.msra.mxu0 0.0
    %2123 = vmatprep.subr.mxu0 0.0
    %2124 = vmatpush1.msra.mxu0 0.0
    %2125 = vmatprep.subr.mxu0 0.0
    %2126 = vmatpush1.msra.mxu0 0.0
    %2127 = vmatprep.subr.mxu0 0.0
    %2128 = vmatpush1.msra.mxu0 0.0
    %2129 = vmatprep.subr.mxu0 0.0
    %2130 = vmatpush1.msra.mxu0 0.0
    %2131 = vmatprep.subr.mxu0 0.0
    %2132 = vmatpush1.msra.mxu0 0.0
    %2133 = vmatprep.subr.mxu0 0.0
    %2134 = vmatpush1.msra.mxu0 0.0
    %2135 = vmatprep.subr.mxu0 0.0
    %2136 = vmatpush1.msra.mxu0 0.0
    %2137 = vmatprep.subr.mxu0 0.0
    %2138 = vmatpush1.msra.mxu0 0.0
    %2139 = vmatprep.subr.mxu0 0.0
    %2140 = vmatpush1.msra.mxu0 0.0
    %2141 = vmatprep.subr.mxu0 0.0
    %2142 = vmatpush1.msra.mxu0 0.0
    %2143 = vmatprep.subr.mxu0 0.0
    %2144 = vmatpush1.msra.mxu0 0.0
    %2145 = vmatprep.subr.mxu0 0.0
    %2146 = vmatpush1.msra.mxu0 0.0
    %2147 = vmatprep.subr.mxu0 0.0
    %2148 = vmatpush1.msra.mxu0 0.0
    %2149 = vmatprep.subr.mxu0 0.0
    %2150 = vmatpush1.msra.mxu0 0.0
    %2151 = vmatprep.subr.mxu0 0.0
    %2152 = vmatpush1.msra.mxu0 0.0
    %2153 = vmatprep.subr.mxu0 0.0
    %2154 = vmatpush1.msra.mxu0 0.0
    %2155 = vmatprep.subr.mxu0 0.0
    %2156 = vmatpush1.msra.mxu0 0.0
    %2157 = vmatprep.subr.mxu0 0.0
    %2158 = vmatpush1.msra.mxu0 0.0
    %2159 = vmatprep.subr.mxu0 0.0
    %2160 = vmatpush1.msra.mxu0 0.0
    %2161 = vmatprep.subr.mxu0 0.0
    %2162 = vmatpush1.msra.mxu0 0.0
    %2163 = vmatprep.subr.mxu0 0.0
    %2164 = vmatpush1.msra.mxu0 0.0
    %2165 = vmatprep.subr.mxu0 0.0
    %2166 = vmatpush1.msra.mxu0 0.0
    %2167 = vmatprep.mubr.f32.mxu0 0.0
    %2168 = vmatmul.mubr.f32.gmra.mrb[0].mxu0 %v1191
    %v2169 = vpop.f32.mrb[0].mxu0
    %v2170 = vadd.f32 %v1164, %v2169
    %v2171 = vpop.f32.mrb[0].mxu0
    %2172 = vdwg.mxu0
    %2173 = vmatprep.subr.mxu0 0.0
    %2174 = vmatpush1.msra.mxu0 %v1002
    %2175 = vmatprep.subr.mxu0 0.0
    %2176 = vmatpush1.msra.mxu0 %v1003
    %2177 = vmatprep.subr.mxu0 0.0
    %2178 = vmatpush1.msra.mxu0 0.0
    %2179 = vmatprep.subr.mxu0 0.0
    %2180 = vmatpush1.msra.mxu0 0.0
    %2181 = vmatprep.subr.mxu0 0.0
    %2182 = vmatpush1.msra.mxu0 0.0
    %2183 = vmatprep.subr.mxu0 0.0
    %2184 = vmatpush1.msra.mxu0 0.0
    %2185 = vmatprep.subr.mxu0 0.0
    %2186 = vmatpush1.msra.mxu0 0.0
    %2187 = vmatprep.subr.mxu0 0.0
    %2188 = vmatpush1.msra.mxu0 0.0
    %2189 = vmatprep.subr.mxu0 0.0
    %2190 = vmatpush1.msra.mxu0 0.0
    %2191 = vmatprep.subr.mxu0 0.0
    %2192 = vmatpush1.msra.mxu0 0.0
    %2193 = vmatprep.subr.mxu0 0.0
    %2194 = vmatpush1.msra.mxu0 0.0
    %2195 = vmatprep.subr.mxu0 0.0
    %2196 = vmatpush1.msra.mxu0 0.0
    %2197 = vmatprep.subr.mxu0 0.0
    %2198 = vmatpush1.msra.mxu0 0.0
    %2199 = vmatprep.subr.mxu0 0.0
    %2200 = vmatpush1.msra.mxu0 0.0
    %2201 = vmatprep.subr.mxu0 0.0
    %2202 = vmatpush1.msra.mxu0 0.0
    %2203 = vmatprep.subr.mxu0 0.0
    %2204 = vmatpush1.msra.mxu0 0.0
    %2205 = vmatprep.subr.mxu0 0.0
    %2206 = vmatpush1.msra.mxu0 0.0
    %2207 = vmatprep.subr.mxu0 0.0
    %2208 = vmatpush1.msra.mxu0 0.0
    %2209 = vmatprep.subr.mxu0 0.0
    %2210 = vmatpush1.msra.mxu0 0.0
    %2211 = vmatprep.subr.mxu0 0.0
    %2212 = vmatpush1.msra.mxu0 0.0
    %2213 = vmatprep.subr.mxu0 0.0
    %2214 = vmatpush1.msra.mxu0 0.0
    %2215 = vmatprep.subr.mxu0 0.0
    %2216 = vmatpush1.msra.mxu0 0.0
    %2217 = vmatprep.subr.mxu0 0.0
    %2218 = vmatpush1.msra.mxu0 0.0
    %2219 = vmatprep.subr.mxu0 0.0
    %2220 = vmatpush1.msra.mxu0 0.0
    %2221 = vmatprep.subr.mxu0 0.0
    %2222 = vmatpush1.msra.mxu0 0.0
    %2223 = vmatprep.subr.mxu0 0.0
    %2224 = vmatpush1.msra.mxu0 0.0
    %2225 = vmatprep.subr.mxu0 0.0
    %2226 = vmatpush1.msra.mxu0 0.0
    %2227 = vmatprep.subr.mxu0 0.0
    %2228 = vmatpush1.msra.mxu0 0.0
    %2229 = vmatprep.subr.mxu0 0.0
    %2230 = vmatpush1.msra.mxu0 0.0
    %2231 = vmatprep.subr.mxu0 0.0
    %2232 = vmatpush1.msra.mxu0 0.0
    %2233 = vmatprep.subr.mxu0 0.0
    %2234 = vmatpush1.msra.mxu0 0.0
    %2235 = vmatprep.subr.mxu0 0.0
    %2236 = vmatpush1.msra.mxu0 0.0
    %2237 = vmatprep.mubr.f32.mxu0 0.0
    %2238 = vmatmul.mubr.f32.gmra.mrb[0].mxu0 %v1191
    %v2239 = vpop.f32.mrb[0].mxu0
    %v2240 = vadd.f32 %v1168, %v2239
    %v2241 = vpop.f32.mrb[0].mxu0
    %2242 = vdwg.mxu0
    %2243 = vmatprep.subr.mxu0 0.0
    %2244 = vmatpush1.msra.mxu0 %v1004
    %2245 = vmatprep.subr.mxu0 0.0
    %2246 = vmatpush1.msra.mxu0 %v1005
    %2247 = vmatprep.subr.mxu0 0.0
    %2248 = vmatpush1.msra.mxu0 0.0
    %2249 = vmatprep.subr.mxu0 0.0
    %2250 = vmatpush1.msra.mxu0 0.0
    %2251 = vmatprep.subr.mxu0 0.0
    %2252 = vmatpush1.msra.mxu0 0.0
    %2253 = vmatprep.subr.mxu0 0.0
    %2254 = vmatpush1.msra.mxu0 0.0
    %2255 = vmatprep.subr.mxu0 0.0
    %2256 = vmatpush1.msra.mxu0 0.0
    %2257 = vmatprep.subr.mxu0 0.0
    %2258 = vmatpush1.msra.mxu0 0.0
    %2259 = vmatprep.subr.mxu0 0.0
    %2260 = vmatpush1.msra.mxu0 0.0
    %2261 = vmatprep.subr.mxu0 0.0
    %2262 = vmatpush1.msra.mxu0 0.0
    %2263 = vmatprep.subr.mxu0 0.0
    %2264 = vmatpush1.msra.mxu0 0.0
    %2265 = vmatprep.subr.mxu0 0.0
    %2266 = vmatpush1.msra.mxu0 0.0
    %2267 = vmatprep.subr.mxu0 0.0
    %2268 = vmatpush1.msra.mxu0 0.0
    %2269 = vmatprep.subr.mxu0 0.0
    %2270 = vmatpush1.msra.mxu0 0.0
    %2271 = vmatprep.subr.mxu0 0.0
    %2272 = vmatpush1.msra.mxu0 0.0
    %2273 = vmatprep.subr.mxu0 0.0
    %2274 = vmatpush1.msra.mxu0 0.0
    %2275 = vmatprep.subr.mxu0 0.0
    %2276 = vmatpush1.msra.mxu0 0.0
    %2277 = vmatprep.subr.mxu0 0.0
    %2278 = vmatpush1.msra.mxu0 0.0
    %2279 = vmatprep.subr.mxu0 0.0
    %2280 = vmatpush1.msra.mxu0 0.0
    %2281 = vmatprep.subr.mxu0 0.0
    %2282 = vmatpush1.msra.mxu0 0.0
    %2283 = vmatprep.subr.mxu0 0.0
    %2284 = vmatpush1.msra.mxu0 0.0
    %2285 = vmatprep.subr.mxu0 0.0
    %2286 = vmatpush1.msra.mxu0 0.0
    %2287 = vmatprep.subr.mxu0 0.0
    %2288 = vmatpush1.msra.mxu0 0.0
    %2289 = vmatprep.subr.mxu0 0.0
    %2290 = vmatpush1.msra.mxu0 0.0
    %2291 = vmatprep.subr.mxu0 0.0
    %2292 = vmatpush1.msra.mxu0 0.0
    %2293 = vmatprep.subr.mxu0 0.0
    %2294 = vmatpush1.msra.mxu0 0.0
    %2295 = vmatprep.subr.mxu0 0.0
    %2296 = vmatpush1.msra.mxu0 0.0
    %2297 = vmatprep.subr.mxu0 0.0
    %2298 = vmatpush1.msra.mxu0 0.0
    %2299 = vmatprep.subr.mxu0 0.0
    %2300 = vmatpush1.msra.mxu0 0.0
    %2301 = vmatprep.subr.mxu0 0.0
    %2302 = vmatpush1.msra.mxu0 0.0
    %2303 = vmatprep.subr.mxu0 0.0
    %2304 = vmatpush1.msra.mxu0 0.0
    %2305 = vmatprep.subr.mxu0 0.0
    %2306 = vmatpush1.msra.mxu0 0.0
    %2307 = vmatprep.mubr.f32.mxu0 0.0
    %2308 = vmatmul.mubr.f32.gmra.mrb[0].mxu0 %v1191
    %v2309 = vpop.f32.mrb[0].mxu0
    %v2310 = vadd.f32 %v1172, %v2309
    %v2311 = vpop.f32.mrb[0].mxu0
    %2312 = vdwg.mxu0
    %v2313 = vlaneseq
    %v2314 = vshrl.u32 %v2313, 7
    %v2315 = vadd.s32 %v2314, 8
    %v2316 = vlaneseq
    %v2317 = vand.u32 %v2316, 127
    %v2318 = vadd.s32 %v2317, 7
    %v2319 = vsub.s32 %v2318, 1
    %v2320 = vsub.s32 %v2318, 2
    %v2321 = vsub.s32 %v2318, 3
    %v2322 = vsub.s32 %v2318, 4
    %v2323 = vsub.s32 %v2318, 5
    %v2324 = vsub.s32 %v2318, 6
    %vm2325 = vcmp.eq.s32.totalorder %v2314, %v2318
    %vm2326 = vcmp.eq.s32.totalorder %v2315, %v2318
    %vm2327 = vcmp.eq.s32.totalorder %v2314, %v2319
    %vm2328 = vcmp.eq.s32.totalorder %v2315, %v2319
    %vm2329 = vcmp.eq.s32.totalorder %v2314, %v2320
    %vm2330 = vcmp.eq.s32.totalorder %v2315, %v2320
    %vm2331 = vcmp.eq.s32.totalorder %v2314, %v2321
    %vm2332 = vcmp.eq.s32.totalorder %v2315, %v2321
    %vm2333 = vcmp.eq.s32.totalorder %v2314, %v2322
    %vm2334 = vcmp.eq.s32.totalorder %v2315, %v2322
    %vm2335 = vcmp.eq.s32.totalorder %v2314, %v2323
    %vm2336 = vcmp.eq.s32.totalorder %v2315, %v2323
    %vm2337 = vcmp.eq.s32.totalorder %v2314, %v2324
    %vm2338 = vcmp.eq.s32.totalorder %v2315, %v2324
    %vm2339 = vcmp.eq.s32.totalorder %v2314, %v2317
    %vm2340 = vcmp.eq.s32.totalorder %v2315, %v2317
    %v2341 = vsel %vm2325, 1, 0
    %v2342 = vsel %vm2326, 1, 0
    %v2343 = vsel %vm2327, 1, 0
    %v2344 = vsel %vm2328, 1, 0
    %v2345 = vsel %vm2329, 1, 0
    %v2346 = vsel %vm2330, 1, 0
    %v2347 = vsel %vm2331, 1, 0
    %v2348 = vsel %vm2332, 1, 0
    %v2349 = vsel %vm2333, 1, 0
    %v2350 = vsel %vm2334, 1, 0
    %v2351 = vsel %vm2335, 1, 0
    %v2352 = vsel %vm2336, 1, 0
    %v2353 = vsel %vm2337, 1, 0
    %v2354 = vsel %vm2338, 1, 0
    %v2355 = vsel %vm2339, 1, 0
    %v2356 = vsel %vm2340, 1, 0
    %v2357 = vcvt.s32.f32 %v2341
    %v2358 = vcvt.s32.f32 %v2342
    %v2359 = vcvt.s32.f32 %v2343
    %v2360 = vcvt.s32.f32 %v2344
    %v2361 = vcvt.s32.f32 %v2345
    %v2362 = vcvt.s32.f32 %v2346
    %v2363 = vcvt.s32.f32 %v2347
    %v2364 = vcvt.s32.f32 %v2348
    %v2365 = vcvt.s32.f32 %v2349
    %v2366 = vcvt.s32.f32 %v2350
    %v2367 = vcvt.s32.f32 %v2351
    %v2368 = vcvt.s32.f32 %v2352
    %v2369 = vcvt.s32.f32 %v2353
    %v2370 = vcvt.s32.f32 %v2354
    %v2371 = vcvt.s32.f32 %v2355
    %v2372 = vcvt.s32.f32 %v2356
    %v2373 = vld [vmem:[%s14] sm:$0x1]
    %v2374 = vlaneseq
    %v2375 = vshrl.u32 %v2374, 7
    %v2376 = vsub.s32 0, %v2375
    %v2377 = vrot.slane %v2373, %v2376
    %v2378 = vadd.f32 %v153, %v2377
    %v2379 = vadd.f32 %v158, %v2377
    %v2381 = vsel %vm468, %v2378, 0
    %v2384 = vsel %vm468, %v2379, 0
    %v2387 = vsel %vm468, %v428, 0
    %v2390 = vsel %vm468, %v433, 0
    %2392 = vmatprep.subr.mxu0 0.0
    %2393 = vmatpush1.xpose.msra.mxu0 %v2387
    %2394 = vmatprep.subr.mxu0 0.0
    %2395 = vmatpush1.xpose.msra.mxu0 %v2390
    %2396 = vmatprep.subr.mxu0 0.0
    %2397 = vmatpush1.xpose.msra.mxu0 0.0
    %2398 = vmatprep.subr.mxu0 0.0
    %2399 = vmatpush1.xpose.msra.mxu0 0.0
    %2400 = vmatprep.subr.mxu0 0.0
    %2401 = vmatpush1.xpose.msra.mxu0 0.0
    %2402 = vmatprep.subr.mxu0 0.0
    %2403 = vmatpush1.xpose.msra.mxu0 0.0
    %2404 = vmatprep.subr.mxu0 0.0
    %2405 = vmatpush1.xpose.msra.mxu0 0.0
    %2406 = vmatprep.subr.mxu0 0.0
    %2407 = vmatpush1.xpose.msra.mxu0 0.0
    %2408 = vmatprep.subr.mxu0 0.0
    %2409 = vmatpush1.xpose.msra.mxu0 0.0
    %2410 = vmatprep.subr.mxu0 0.0
    %2411 = vmatpush1.xpose.msra.mxu0 0.0
    %2412 = vmatprep.subr.mxu0 0.0
    %2413 = vmatpush1.xpose.msra.mxu0 0.0
    %2414 = vmatprep.subr.mxu0 0.0
    %2415 = vmatpush1.xpose.msra.mxu0 0.0
    %2416 = vmatprep.subr.mxu0 0.0
    %2417 = vmatpush1.xpose.msra.mxu0 0.0
    %2418 = vmatprep.subr.mxu0 0.0
    %2419 = vmatpush1.xpose.msra.mxu0 0.0
    %2420 = vmatprep.subr.mxu0 0.0
    %2421 = vmatpush1.xpose.msra.mxu0 0.0
    %2422 = vmatprep.subr.mxu0 0.0
    %2423 = vmatpush1.xpose.msra.mxu0 0.0
    %2424 = vmatprep.subr.mxu0 0.0
    %2425 = vmatpush1.xpose.msra.mxu0 0.0
    %2426 = vmatprep.subr.mxu0 0.0
    %2427 = vmatpush1.xpose.msra.mxu0 0.0
    %2428 = vmatprep.subr.mxu0 0.0
    %2429 = vmatpush1.xpose.msra.mxu0 0.0
    %2430 = vmatprep.subr.mxu0 0.0
    %2431 = vmatpush1.xpose.msra.mxu0 0.0
    %2432 = vmatprep.subr.mxu0 0.0
    %2433 = vmatpush1.xpose.msra.mxu0 0.0
    %2434 = vmatprep.subr.mxu0 0.0
    %2435 = vmatpush1.xpose.msra.mxu0 0.0
    %2436 = vmatprep.subr.mxu0 0.0
    %2437 = vmatpush1.xpose.msra.mxu0 0.0
    %2438 = vmatprep.subr.mxu0 0.0
    %2439 = vmatpush1.xpose.msra.mxu0 0.0
    %2440 = vmatprep.subr.mxu0 0.0
    %2441 = vmatpush1.xpose.msra.mxu0 0.0
    %2442 = vmatprep.subr.mxu0 0.0
    %2443 = vmatpush1.xpose.msra.mxu0 0.0
    %2444 = vmatprep.subr.mxu0 0.0
    %2445 = vmatpush1.xpose.msra.mxu0 0.0
    %2446 = vmatprep.subr.mxu0 0.0
    %2447 = vmatpush1.xpose.msra.mxu0 0.0
    %2448 = vmatprep.subr.mxu0 0.0
    %2449 = vmatpush1.xpose.msra.mxu0 0.0
    %2450 = vmatprep.subr.mxu0 0.0
    %2451 = vmatpush1.xpose.msra.mxu0 0.0
    %2452 = vmatprep.subr.mxu0 0.0
    %2453 = vmatpush1.xpose.msra.mxu0 0.0
    %2454 = vmatprep.subr.mxu0 0.0
    %2455 = vmatpush1.xpose.msra.mxu0 0.0
    %2456 = vmatprep.mubr.f32.mxu0 0.0
    %2457 = vmatmul.mubr.f32.gmra.mrb[0].mxu0 %v2381
    %v2458 = vpop.f32.mrb[0].mxu0
    %v2459 = vadd.f32 0.0, %v2458
    %v2460 = vpop.f32.mrb[0].mxu0
    %2461 = vmatprep.mubr.f32.mxu0 0.0
    %2462 = vmatmul.mubr.f32.gmra.mrb[0].mxu0 %v2384
    %v2463 = vpop.f32.mrb[0].mxu0
    %v2464 = vadd.f32 0.0, %v2463
    %v2465 = vpop.f32.mrb[0].mxu0
    %2466 = vdwg.mxu0
    %v2469 = vcombine.high %v2459, %v2459
    %v2471 = vunpack.c.l.s4 1966171168
    %v2472 = vunpack.c.0.s8 %v2471
    %v2473 = vlaneseq
    %v2474 = vshrl.u32 %v2473, 7
    %v2475 = vsub.s32 %v2472, %v2474
    %v2476 = vrot.slane %v2459, %v2475
    %v2478 = vunpack.c.l.s4 1966171168
    %v2479 = vunpack.c.0.s8 %v2478
    %v2480 = vlaneseq
    %v2481 = vshrl.u32 %v2480, 7
    %v2482 = vsub.s32 %v2479, %v2481
    %v2483 = vrot.slane %v2469, %v2482
    %v2484 = vcombine.high %v2476, %v2476
    %v2485 = vcombine.high %v2483, %v2483
    %v2487 = vunpack.c.l.s4 1966171168
    %v2488 = vunpack.c.0.s8 %v2487
    %v2489 = vlaneseq
    %v2490 = vshrl.u32 %v2489, 7
    %v2491 = vsub.s32 %v2488, %v2490
    %v2492 = vrot.slane %v2476, %v2491
    %v2494 = vunpack.c.l.s4 1966171168
    %v2495 = vunpack.c.0.s8 %v2494
    %v2496 = vlaneseq
    %v2497 = vshrl.u32 %v2496, 7
    %v2498 = vsub.s32 %v2495, %v2497
    %v2499 = vrot.slane %v2483, %v2498
    %v2501 = vunpack.c.l.s4 1966171168
    %v2502 = vunpack.c.0.s8 %v2501
    %v2503 = vlaneseq
    %v2504 = vshrl.u32 %v2503, 7
    %v2505 = vsub.s32 %v2502, %v2504
    %v2506 = vrot.slane %v2484, %v2505
    %v2508 = vunpack.c.l.s4 1966171168
    %v2509 = vunpack.c.0.s8 %v2508
    %v2510 = vlaneseq
    %v2511 = vshrl.u32 %v2510, 7
    %v2512 = vsub.s32 %v2509, %v2511
    %v2513 = vrot.slane %v2485, %v2512
    %v2514 = vcombine.high %v2492, %v2492
    %v2515 = vcombine.high %v2499, %v2499
    %v2516 = vcombine.high %v2506, %v2506
    %v2517 = vcombine.high %v2513, %v2513
    %v2518 = vcombine.high %v2464, %v2464
    %v2520 = vunpack.c.l.s4 1966171168
    %v2521 = vunpack.c.0.s8 %v2520
    %v2522 = vlaneseq
    %v2523 = vshrl.u32 %v2522, 7
    %v2524 = vsub.s32 %v2521, %v2523
    %v2525 = vrot.slane %v2464, %v2524
    %v2527 = vunpack.c.l.s4 1966171168
    %v2528 = vunpack.c.0.s8 %v2527
    %v2529 = vlaneseq
    %v2530 = vshrl.u32 %v2529, 7
    %v2531 = vsub.s32 %v2528, %v2530
    %v2532 = vrot.slane %v2518, %v2531
    %v2533 = vcombine.high %v2525, %v2525
    %v2534 = vcombine.high %v2532, %v2532
    %v2536 = vunpack.c.l.s4 1966171168
    %v2537 = vunpack.c.0.s8 %v2536
    %v2538 = vlaneseq
    %v2539 = vshrl.u32 %v2538, 7
    %v2540 = vsub.s32 %v2537, %v2539
    %v2541 = vrot.slane %v2525, %v2540
    %v2543 = vunpack.c.l.s4 1966171168
    %v2544 = vunpack.c.0.s8 %v2543
    %v2545 = vlaneseq
    %v2546 = vshrl.u32 %v2545, 7
    %v2547 = vsub.s32 %v2544, %v2546
    %v2548 = vrot.slane %v2532, %v2547
    %v2550 = vunpack.c.l.s4 1966171168
    %v2551 = vunpack.c.0.s8 %v2550
    %v2552 = vlaneseq
    %v2553 = vshrl.u32 %v2552, 7
    %v2554 = vsub.s32 %v2551, %v2553
    %v2555 = vrot.slane %v2533, %v2554
    %v2557 = vunpack.c.l.s4 1966171168
    %v2558 = vunpack.c.0.s8 %v2557
    %v2559 = vlaneseq
    %v2560 = vshrl.u32 %v2559, 7
    %v2561 = vsub.s32 %v2558, %v2560
    %v2562 = vrot.slane %v2534, %v2561
    %v2563 = vcombine.high %v2541, %v2541
    %v2564 = vcombine.high %v2548, %v2548
    %v2565 = vcombine.high %v2555, %v2555
    %v2566 = vcombine.high %v2562, %v2562
    %v2583 = vld [vmem:[%s14 + $0x1] sm:$0x1]
    %v2584 = vlaneseq
    %v2585 = vshrl.u32 %v2584, 7
    %v2586 = vsub.s32 0, %v2585
    %v2587 = vrot.slane %v2583, %v2586
    %2589 = vrot.lane.b32.xlu0 %v2587, 8
    %v2590 = vpop.permute.xlu0 %2589
    %v2592 = vadd.f32 %v153, %v2590
    %v2593 = vadd.f32 %v158, %v2590
    %2596 = vrot.lane.b32.xlu0 %v2592, 120
    %v2597 = vpop.permute.xlu0 %2596
    %2598 = vrot.lane.b32.xlu0 %v2593, 120
    %v2599 = vpop.permute.xlu0 %2598
    %2600 = vrot.lane.b32.xlu0 %v428, 120
    %v2601 = vpop.permute.xlu0 %2600
    %2602 = vrot.lane.b32.xlu0 %v433, 120
    %v2603 = vpop.permute.xlu0 %2602
    %v2604 = vsel %vm468, %v2597, 0
    %v2606 = vsel %vm468, %v2599, 0
    %v2608 = vsel %vm468, %v2601, 0
    %v2610 = vsel %vm468, %v2603, 0
    %2612 = vmatprep.subr.mxu0 0.0
    %2613 = vmatpush1.xpose.msra.mxu0 %v2608
    %2614 = vmatprep.subr.mxu0 0.0
    %2615 = vmatpush1.xpose.msra.mxu0 %v2610
    %2616 = vmatprep.subr.mxu0 0.0
    %2617 = vmatpush1.xpose.msra.mxu0 0.0
    %2618 = vmatprep.subr.mxu0 0.0
    %2619 = vmatpush1.xpose.msra.mxu0 0.0
    %2620 = vmatprep.subr.mxu0 0.0
    %2621 = vmatpush1.xpose.msra.mxu0 0.0
    %2622 = vmatprep.subr.mxu0 0.0
    %2623 = vmatpush1.xpose.msra.mxu0 0.0
    %2624 = vmatprep.subr.mxu0 0.0
    %2625 = vmatpush1.xpose.msra.mxu0 0.0
    %2626 = vmatprep.subr.mxu0 0.0
    %2627 = vmatpush1.xpose.msra.mxu0 0.0
    %2628 = vmatprep.subr.mxu0 0.0
    %2629 = vmatpush1.xpose.msra.mxu0 0.0
    %2630 = vmatprep.subr.mxu0 0.0
    %2631 = vmatpush1.xpose.msra.mxu0 0.0
    %2632 = vmatprep.subr.mxu0 0.0
    %2633 = vmatpush1.xpose.msra.mxu0 0.0
    %2634 = vmatprep.subr.mxu0 0.0
    %2635 = vmatpush1.xpose.msra.mxu0 0.0
    %2636 = vmatprep.subr.mxu0 0.0
    %2637 = vmatpush1.xpose.msra.mxu0 0.0
    %2638 = vmatprep.subr.mxu0 0.0
    %2639 = vmatpush1.xpose.msra.mxu0 0.0
    %2640 = vmatprep.subr.mxu0 0.0
    %2641 = vmatpush1.xpose.msra.mxu0 0.0
    %2642 = vmatprep.subr.mxu0 0.0
    %2643 = vmatpush1.xpose.msra.mxu0 0.0
    %2644 = vmatprep.subr.mxu0 0.0
    %2645 = vmatpush1.xpose.msra.mxu0 0.0
    %2646 = vmatprep.subr.mxu0 0.0
    %2647 = vmatpush1.xpose.msra.mxu0 0.0
    %2648 = vmatprep.subr.mxu0 0.0
    %2649 = vmatpush1.xpose.msra.mxu0 0.0
    %2650 = vmatprep.subr.mxu0 0.0
    %2651 = vmatpush1.xpose.msra.mxu0 0.0
    %2652 = vmatprep.subr.mxu0 0.0
    %2653 = vmatpush1.xpose.msra.mxu0 0.0
    %2654 = vmatprep.subr.mxu0 0.0
    %2655 = vmatpush1.xpose.msra.mxu0 0.0
    %2656 = vmatprep.subr.mxu0 0.0
    %2657 = vmatpush1.xpose.msra.mxu0 0.0
    %2658 = vmatprep.subr.mxu0 0.0
    %2659 = vmatpush1.xpose.msra.mxu0 0.0
    %2660 = vmatprep.subr.mxu0 0.0
    %2661 = vmatpush1.xpose.msra.mxu0 0.0
    %2662 = vmatprep.subr.mxu0 0.0
    %2663 = vmatpush1.xpose.msra.mxu0 0.0
    %2664 = vmatprep.subr.mxu0 0.0
    %2665 = vmatpush1.xpose.msra.mxu0 0.0
    %2666 = vmatprep.subr.mxu0 0.0
    %2667 = vmatpush1.xpose.msra.mxu0 0.0
    %2668 = vmatprep.subr.mxu0 0.0
    %2669 = vmatpush1.xpose.msra.mxu0 0.0
    %2670 = vmatprep.subr.mxu0 0.0
    %2671 = vmatpush1.xpose.msra.mxu0 0.0
    %2672 = vmatprep.subr.mxu0 0.0
    %2673 = vmatpush1.xpose.msra.mxu0 0.0
    %2674 = vmatprep.subr.mxu0 0.0
    %2675 = vmatpush1.xpose.msra.mxu0 0.0
    %2676 = vmatprep.mubr.f32.mxu0 0.0
    %2677 = vmatmul.mubr.f32.gmra.mrb[0].mxu0 %v2604
    %v2678 = vpop.f32.mrb[0].mxu0
    %v2679 = vadd.f32 0.0, %v2678
    %v2680 = vpop.f32.mrb[0].mxu0
    %2681 = vmatprep.mubr.f32.mxu0 0.0
    %2682 = vmatmul.mubr.f32.gmra.mrb[0].mxu0 %v2606
    %v2683 = vpop.f32.mrb[0].mxu0
    %v2684 = vadd.f32 0.0, %v2683
    %v2685 = vpop.f32.mrb[0].mxu0
    %2686 = vdwg.mxu0
    %v2689 = vcombine.high %v2679, %v2679
    %v2691 = vunpack.c.l.s4 1966171168
    %v2692 = vunpack.c.0.s8 %v2691
    %v2693 = vlaneseq
    %v2694 = vshrl.u32 %v2693, 7
    %v2695 = vsub.s32 %v2692, %v2694
    %v2696 = vrot.slane %v2679, %v2695
    %v2698 = vunpack.c.l.s4 1966171168
    %v2699 = vunpack.c.0.s8 %v2698
    %v2700 = vlaneseq
    %v2701 = vshrl.u32 %v2700, 7
    %v2702 = vsub.s32 %v2699, %v2701
    %v2703 = vrot.slane %v2689, %v2702
    %v2704 = vcombine.high %v2696, %v2696
    %v2705 = vcombine.high %v2703, %v2703
    %v2707 = vunpack.c.l.s4 1966171168
    %v2708 = vunpack.c.0.s8 %v2707
    %v2709 = vlaneseq
    %v2710 = vshrl.u32 %v2709, 7
    %v2711 = vsub.s32 %v2708, %v2710
    %v2712 = vrot.slane %v2696, %v2711
    %v2714 = vunpack.c.l.s4 1966171168
    %v2715 = vunpack.c.0.s8 %v2714
    %v2716 = vlaneseq
    %v2717 = vshrl.u32 %v2716, 7
    %v2718 = vsub.s32 %v2715, %v2717
    %v2719 = vrot.slane %v2703, %v2718
    %v2721 = vunpack.c.l.s4 1966171168
    %v2722 = vunpack.c.0.s8 %v2721
    %v2723 = vlaneseq
    %v2724 = vshrl.u32 %v2723, 7
    %v2725 = vsub.s32 %v2722, %v2724
    %v2726 = vrot.slane %v2704, %v2725
    %v2728 = vunpack.c.l.s4 1966171168
    %v2729 = vunpack.c.0.s8 %v2728
    %v2730 = vlaneseq
    %v2731 = vshrl.u32 %v2730, 7
    %v2732 = vsub.s32 %v2729, %v2731
    %v2733 = vrot.slane %v2705, %v2732
    %v2734 = vcombine.high %v2712, %v2712
    %v2735 = vcombine.high %v2719, %v2719
    %v2736 = vcombine.high %v2726, %v2726
    %v2737 = vcombine.high %v2733, %v2733
    %v2738 = vcombine.high %v2684, %v2684
    %v2740 = vunpack.c.l.s4 1966171168
    %v2741 = vunpack.c.0.s8 %v2740
    %v2742 = vlaneseq
    %v2743 = vshrl.u32 %v2742, 7
    %v2744 = vsub.s32 %v2741, %v2743
    %v2745 = vrot.slane %v2684, %v2744
    %v2747 = vunpack.c.l.s4 1966171168
    %v2748 = vunpack.c.0.s8 %v2747
    %v2749 = vlaneseq
    %v2750 = vshrl.u32 %v2749, 7
    %v2751 = vsub.s32 %v2748, %v2750
    %v2752 = vrot.slane %v2738, %v2751
    %v2753 = vcombine.high %v2745, %v2745
    %v2754 = vcombine.high %v2752, %v2752
    %v2756 = vunpack.c.l.s4 1966171168
    %v2757 = vunpack.c.0.s8 %v2756
    %v2758 = vlaneseq
    %v2759 = vshrl.u32 %v2758, 7
    %v2760 = vsub.s32 %v2757, %v2759
    %v2761 = vrot.slane %v2745, %v2760
    %v2763 = vunpack.c.l.s4 1966171168
    %v2764 = vunpack.c.0.s8 %v2763
    %v2765 = vlaneseq
    %v2766 = vshrl.u32 %v2765, 7
    %v2767 = vsub.s32 %v2764, %v2766
    %v2768 = vrot.slane %v2752, %v2767
    %v2770 = vunpack.c.l.s4 1966171168
    %v2771 = vunpack.c.0.s8 %v2770
    %v2772 = vlaneseq
    %v2773 = vshrl.u32 %v2772, 7
    %v2774 = vsub.s32 %v2771, %v2773
    %v2775 = vrot.slane %v2753, %v2774
    %v2777 = vunpack.c.l.s4 1966171168
    %v2778 = vunpack.c.0.s8 %v2777
    %v2779 = vlaneseq
    %v2780 = vshrl.u32 %v2779, 7
    %v2781 = vsub.s32 %v2778, %v2780
    %v2782 = vrot.slane %v2754, %v2781
    %v2783 = vcombine.high %v2761, %v2761
    %v2784 = vcombine.high %v2768, %v2768
    %v2785 = vcombine.high %v2775, %v2775
    %v2786 = vcombine.high %v2782, %v2782
    %v2787 = vld [vmem:[%s14 + $0x2] sm:$0x1]
    %v2788 = vlaneseq
    %v2789 = vshrl.u32 %v2788, 7
    %v2790 = vsub.s32 0, %v2789
    %v2791 = vrot.slane %v2787, %v2790
    %2793 = vrot.lane.b32.xlu0 %v2791, 16
    %v2794 = vpop.permute.xlu0 %2793
    %v2796 = vadd.f32 %v153, %v2794
    %v2797 = vadd.f32 %v158, %v2794
    %2800 = vrot.lane.b32.xlu0 %v2796, 112
    %v2801 = vpop.permute.xlu0 %2800
    %2802 = vrot.lane.b32.xlu0 %v2797, 112
    %v2803 = vpop.permute.xlu0 %2802
    %2804 = vrot.lane.b32.xlu0 %v428, 112
    %v2805 = vpop.permute.xlu0 %2804
    %2806 = vrot.lane.b32.xlu0 %v433, 112
    %v2807 = vpop.permute.xlu0 %2806
    %v2808 = vsel %vm468, %v2801, 0
    %v2810 = vsel %vm468, %v2803, 0
    %v2812 = vsel %vm468, %v2805, 0
    %v2814 = vsel %vm468, %v2807, 0
    %2816 = vmatprep.subr.mxu0 0.0
    %2817 = vmatpush1.xpose.msra.mxu0 %v2812
    %2818 = vmatprep.subr.mxu0 0.0
    %2819 = vmatpush1.xpose.msra.mxu0 %v2814
    %2820 = vmatprep.subr.mxu0 0.0
    %2821 = vmatpush1.xpose.msra.mxu0 0.0
    %2822 = vmatprep.subr.mxu0 0.0
    %2823 = vmatpush1.xpose.msra.mxu0 0.0
    %2824 = vmatprep.subr.mxu0 0.0
    %2825 = vmatpush1.xpose.msra.mxu0 0.0
    %2826 = vmatprep.subr.mxu0 0.0
    %2827 = vmatpush1.xpose.msra.mxu0 0.0
    %2828 = vmatprep.subr.mxu0 0.0
    %2829 = vmatpush1.xpose.msra.mxu0 0.0
    %2830 = vmatprep.subr.mxu0 0.0
    %2831 = vmatpush1.xpose.msra.mxu0 0.0
    %2832 = vmatprep.subr.mxu0 0.0
    %2833 = vmatpush1.xpose.msra.mxu0 0.0
    %2834 = vmatprep.subr.mxu0 0.0
    %2835 = vmatpush1.xpose.msra.mxu0 0.0
    %2836 = vmatprep.subr.mxu0 0.0
    %2837 = vmatpush1.xpose.msra.mxu0 0.0
    %2838 = vmatprep.subr.mxu0 0.0
    %2839 = vmatpush1.xpose.msra.mxu0 0.0
    %2840 = vmatprep.subr.mxu0 0.0
    %2841 = vmatpush1.xpose.msra.mxu0 0.0
    %2842 = vmatprep.subr.mxu0 0.0
    %2843 = vmatpush1.xpose.msra.mxu0 0.0
    %2844 = vmatprep.subr.mxu0 0.0
    %2845 = vmatpush1.xpose.msra.mxu0 0.0
    %2846 = vmatprep.subr.mxu0 0.0
    %2847 = vmatpush1.xpose.msra.mxu0 0.0
    %2848 = vmatprep.subr.mxu0 0.0
    %2849 = vmatpush1.xpose.msra.mxu0 0.0
    %2850 = vmatprep.subr.mxu0 0.0
    %2851 = vmatpush1.xpose.msra.mxu0 0.0
    %2852 = vmatprep.subr.mxu0 0.0
    %2853 = vmatpush1.xpose.msra.mxu0 0.0
    %2854 = vmatprep.subr.mxu0 0.0
    %2855 = vmatpush1.xpose.msra.mxu0 0.0
    %2856 = vmatprep.subr.mxu0 0.0
    %2857 = vmatpush1.xpose.msra.mxu0 0.0
    %2858 = vmatprep.subr.mxu0 0.0
    %2859 = vmatpush1.xpose.msra.mxu0 0.0
    %2860 = vmatprep.subr.mxu0 0.0
    %2861 = vmatpush1.xpose.msra.mxu0 0.0
    %2862 = vmatprep.subr.mxu0 0.0
    %2863 = vmatpush1.xpose.msra.mxu0 0.0
    %2864 = vmatprep.subr.mxu0 0.0
    %2865 = vmatpush1.xpose.msra.mxu0 0.0
    %2866 = vmatprep.subr.mxu0 0.0
    %2867 = vmatpush1.xpose.msra.mxu0 0.0
    %2868 = vmatprep.subr.mxu0 0.0
    %2869 = vmatpush1.xpose.msra.mxu0 0.0
    %2870 = vmatprep.subr.mxu0 0.0
    %2871 = vmatpush1.xpose.msra.mxu0 0.0
    %2872 = vmatprep.subr.mxu0 0.0
    %2873 = vmatpush1.xpose.msra.mxu0 0.0
    %2874 = vmatprep.subr.mxu0 0.0
    %2875 = vmatpush1.xpose.msra.mxu0 0.0
    %2876 = vmatprep.subr.mxu0 0.0
    %2877 = vmatpush1.xpose.msra.mxu0 0.0
    %2878 = vmatprep.subr.mxu0 0.0
    %2879 = vmatpush1.xpose.msra.mxu0 0.0
    %2880 = vmatprep.mubr.f32.mxu0 0.0
    %2881 = vmatmul.mubr.f32.gmra.mrb[0].mxu0 %v2808
    %v2882 = vpop.f32.mrb[0].mxu0
    %v2883 = vadd.f32 0.0, %v2882
    %v2884 = vpop.f32.mrb[0].mxu0
    %2885 = vmatprep.mubr.f32.mxu0 0.0
    %2886 = vmatmul.mubr.f32.gmra.mrb[0].mxu0 %v2810
    %v2887 = vpop.f32.mrb[0].mxu0
    %v2888 = vadd.f32 0.0, %v2887
    %v2889 = vpop.f32.mrb[0].mxu0
    %2890 = vdwg.mxu0
    %v2893 = vcombine.high %v2883, %v2883
    %v2895 = vunpack.c.l.s4 1966171168
    %v2896 = vunpack.c.0.s8 %v2895
    %v2897 = vlaneseq
    %v2898 = vshrl.u32 %v2897, 7
    %v2899 = vsub.s32 %v2896, %v2898
    %v2900 = vrot.slane %v2883, %v2899
    %v2902 = vunpack.c.l.s4 1966171168
    %v2903 = vunpack.c.0.s8 %v2902
    %v2904 = vlaneseq
    %v2905 = vshrl.u32 %v2904, 7
    %v2906 = vsub.s32 %v2903, %v2905
    %v2907 = vrot.slane %v2893, %v2906
    %v2908 = vcombine.high %v2900, %v2900
    %v2909 = vcombine.high %v2907, %v2907
    %v2911 = vunpack.c.l.s4 1966171168
    %v2912 = vunpack.c.0.s8 %v2911
    %v2913 = vlaneseq
    %v2914 = vshrl.u32 %v2913, 7
    %v2915 = vsub.s32 %v2912, %v2914
    %v2916 = vrot.slane %v2900, %v2915
    %v2918 = vunpack.c.l.s4 1966171168
    %v2919 = vunpack.c.0.s8 %v2918
    %v2920 = vlaneseq
    %v2921 = vshrl.u32 %v2920, 7
    %v2922 = vsub.s32 %v2919, %v2921
    %v2923 = vrot.slane %v2907, %v2922
    %v2925 = vunpack.c.l.s4 1966171168
    %v2926 = vunpack.c.0.s8 %v2925
    %v2927 = vlaneseq
    %v2928 = vshrl.u32 %v2927, 7
    %v2929 = vsub.s32 %v2926, %v2928
    %v2930 = vrot.slane %v2908, %v2929
    %v2932 = vunpack.c.l.s4 1966171168
    %v2933 = vunpack.c.0.s8 %v2932
    %v2934 = vlaneseq
    %v2935 = vshrl.u32 %v2934, 7
    %v2936 = vsub.s32 %v2933, %v2935
    %v2937 = vrot.slane %v2909, %v2936
    %v2938 = vcombine.high %v2916, %v2916
    %v2939 = vcombine.high %v2923, %v2923
    %v2940 = vcombine.high %v2930, %v2930
    %v2941 = vcombine.high %v2937, %v2937
    %v2942 = vcombine.high %v2888, %v2888
    %v2944 = vunpack.c.l.s4 1966171168
    %v2945 = vunpack.c.0.s8 %v2944
    %v2946 = vlaneseq
    %v2947 = vshrl.u32 %v2946, 7
    %v2948 = vsub.s32 %v2945, %v2947
    %v2949 = vrot.slane %v2888, %v2948
    %v2951 = vunpack.c.l.s4 1966171168
    %v2952 = vunpack.c.0.s8 %v2951
    %v2953 = vlaneseq
    %v2954 = vshrl.u32 %v2953, 7
    %v2955 = vsub.s32 %v2952, %v2954
    %v2956 = vrot.slane %v2942, %v2955
    %v2957 = vcombine.high %v2949, %v2949
    %v2958 = vcombine.high %v2956, %v2956
    %v2960 = vunpack.c.l.s4 1966171168
    %v2961 = vunpack.c.0.s8 %v2960
    %v2962 = vlaneseq
    %v2963 = vshrl.u32 %v2962, 7
    %v2964 = vsub.s32 %v2961, %v2963
    %v2965 = vrot.slane %v2949, %v2964
    %v2967 = vunpack.c.l.s4 1966171168
    %v2968 = vunpack.c.0.s8 %v2967
    %v2969 = vlaneseq
    %v2970 = vshrl.u32 %v2969, 7
    %v2971 = vsub.s32 %v2968, %v2970
    %v2972 = vrot.slane %v2956, %v2971
    %v2974 = vunpack.c.l.s4 1966171168
    %v2975 = vunpack.c.0.s8 %v2974
    %v2976 = vlaneseq
    %v2977 = vshrl.u32 %v2976, 7
    %v2978 = vsub.s32 %v2975, %v2977
    %v2979 = vrot.slane %v2957, %v2978
    %v2981 = vunpack.c.l.s4 1966171168
    %v2982 = vunpack.c.0.s8 %v2981
    %v2983 = vlaneseq
    %v2984 = vshrl.u32 %v2983, 7
    %v2985 = vsub.s32 %v2982, %v2984
    %v2986 = vrot.slane %v2958, %v2985
    %v2987 = vcombine.high %v2965, %v2965
    %v2988 = vcombine.high %v2972, %v2972
    %v2989 = vcombine.high %v2979, %v2979
    %v2990 = vcombine.high %v2986, %v2986
    %v2991 = vld [vmem:[%s14 + $0x3] sm:$0x1]
    %v2992 = vlaneseq
    %v2993 = vshrl.u32 %v2992, 7
    %v2994 = vsub.s32 0, %v2993
    %v2995 = vrot.slane %v2991, %v2994
    %2997 = vrot.lane.b32.xlu0 %v2995, 24
    %v2998 = vpop.permute.xlu0 %2997
    %v3000 = vadd.f32 %v153, %v2998
    %v3001 = vadd.f32 %v158, %v2998
    %3004 = vrot.lane.b32.xlu0 %v3000, 104
    %v3005 = vpop.permute.xlu0 %3004
    %3006 = vrot.lane.b32.xlu0 %v3001, 104
    %v3007 = vpop.permute.xlu0 %3006
    %3008 = vrot.lane.b32.xlu0 %v428, 104
    %v3009 = vpop.permute.xlu0 %3008
    %3010 = vrot.lane.b32.xlu0 %v433, 104
    %v3011 = vpop.permute.xlu0 %3010
    %v3012 = vsel %vm468, %v3005, 0
    %v3014 = vsel %vm468, %v3007, 0
    %v3016 = vsel %vm468, %v3009, 0
    %v3018 = vsel %vm468, %v3011, 0
    %3020 = vmatprep.subr.mxu0 0.0
    %3021 = vmatpush1.xpose.msra.mxu0 %v3016
    %3022 = vmatprep.subr.mxu0 0.0
    %3023 = vmatpush1.xpose.msra.mxu0 %v3018
    %3024 = vmatprep.subr.mxu0 0.0
    %3025 = vmatpush1.xpose.msra.mxu0 0.0
    %3026 = vmatprep.subr.mxu0 0.0
    %3027 = vmatpush1.xpose.msra.mxu0 0.0
    %3028 = vmatprep.subr.mxu0 0.0
    %3029 = vmatpush1.xpose.msra.mxu0 0.0
    %3030 = vmatprep.subr.mxu0 0.0
    %3031 = vmatpush1.xpose.msra.mxu0 0.0
    %3032 = vmatprep.subr.mxu0 0.0
    %3033 = vmatpush1.xpose.msra.mxu0 0.0
    %3034 = vmatprep.subr.mxu0 0.0
    %3035 = vmatpush1.xpose.msra.mxu0 0.0
    %3036 = vmatprep.subr.mxu0 0.0
    %3037 = vmatpush1.xpose.msra.mxu0 0.0
    %3038 = vmatprep.subr.mxu0 0.0
    %3039 = vmatpush1.xpose.msra.mxu0 0.0
    %3040 = vmatprep.subr.mxu0 0.0
    %3041 = vmatpush1.xpose.msra.mxu0 0.0
    %3042 = vmatprep.subr.mxu0 0.0
    %3043 = vmatpush1.xpose.msra.mxu0 0.0
    %3044 = vmatprep.subr.mxu0 0.0
    %3045 = vmatpush1.xpose.msra.mxu0 0.0
    %3046 = vmatprep.subr.mxu0 0.0
    %3047 = vmatpush1.xpose.msra.mxu0 0.0
    %3048 = vmatprep.subr.mxu0 0.0
    %3049 = vmatpush1.xpose.msra.mxu0 0.0
    %3050 = vmatprep.subr.mxu0 0.0
    %3051 = vmatpush1.xpose.msra.mxu0 0.0
    %3052 = vmatprep.subr.mxu0 0.0
    %3053 = vmatpush1.xpose.msra.mxu0 0.0
    %3054 = vmatprep.subr.mxu0 0.0
    %3055 = vmatpush1.xpose.msra.mxu0 0.0
    %3056 = vmatprep.subr.mxu0 0.0
    %3057 = vmatpush1.xpose.msra.mxu0 0.0
    %3058 = vmatprep.subr.mxu0 0.0
    %3059 = vmatpush1.xpose.msra.mxu0 0.0
    %3060 = vmatprep.subr.mxu0 0.0
    %3061 = vmatpush1.xpose.msra.mxu0 0.0
    %3062 = vmatprep.subr.mxu0 0.0
    %3063 = vmatpush1.xpose.msra.mxu0 0.0
    %3064 = vmatprep.subr.mxu0 0.0
    %3065 = vmatpush1.xpose.msra.mxu0 0.0
    %3066 = vmatprep.subr.mxu0 0.0
    %3067 = vmatpush1.xpose.msra.mxu0 0.0
    %3068 = vmatprep.subr.mxu0 0.0
    %3069 = vmatpush1.xpose.msra.mxu0 0.0
    %3070 = vmatprep.subr.mxu0 0.0
    %3071 = vmatpush1.xpose.msra.mxu0 0.0
    %3072 = vmatprep.subr.mxu0 0.0
    %3073 = vmatpush1.xpose.msra.mxu0 0.0
    %3074 = vmatprep.subr.mxu0 0.0
    %3075 = vmatpush1.xpose.msra.mxu0 0.0
    %3076 = vmatprep.subr.mxu0 0.0
    %3077 = vmatpush1.xpose.msra.mxu0 0.0
    %3078 = vmatprep.subr.mxu0 0.0
    %3079 = vmatpush1.xpose.msra.mxu0 0.0
    %3080 = vmatprep.subr.mxu0 0.0
    %3081 = vmatpush1.xpose.msra.mxu0 0.0
    %3082 = vmatprep.subr.mxu0 0.0
    %3083 = vmatpush1.xpose.msra.mxu0 0.0
    %3084 = vmatprep.mubr.f32.mxu0 0.0
    %3085 = vmatmul.mubr.f32.gmra.mrb[0].mxu0 %v3012
    %v3086 = vpop.f32.mrb[0].mxu0
    %v3087 = vadd.f32 0.0, %v3086
    %v3088 = vpop.f32.mrb[0].mxu0
    %3089 = vmatprep.mubr.f32.mxu0 0.0
    %3090 = vmatmul.mubr.f32.gmra.mrb[0].mxu0 %v3014
    %v3091 = vpop.f32.mrb[0].mxu0
    %v3092 = vadd.f32 0.0, %v3091
    %v3093 = vpop.f32.mrb[0].mxu0
    %3094 = vdwg.mxu0
    %v3097 = vcombine.high %v3087, %v3087
    %v3099 = vunpack.c.l.s4 1966171168
    %v3100 = vunpack.c.0.s8 %v3099
    %v3101 = vlaneseq
    %v3102 = vshrl.u32 %v3101, 7
    %v3103 = vsub.s32 %v3100, %v3102
    %v3104 = vrot.slane %v3087, %v3103
    %v3106 = vunpack.c.l.s4 1966171168
    %v3107 = vunpack.c.0.s8 %v3106
    %v3108 = vlaneseq
    %v3109 = vshrl.u32 %v3108, 7
    %v3110 = vsub.s32 %v3107, %v3109
    %v3111 = vrot.slane %v3097, %v3110
    %v3112 = vcombine.high %v3104, %v3104
    %v3113 = vcombine.high %v3111, %v3111
    %v3115 = vunpack.c.l.s4 1966171168
    %v3116 = vunpack.c.0.s8 %v3115
    %v3117 = vlaneseq
    %v3118 = vshrl.u32 %v3117, 7
    %v3119 = vsub.s32 %v3116, %v3118
    %v3120 = vrot.slane %v3104, %v3119
    %v3122 = vunpack.c.l.s4 1966171168
    %v3123 = vunpack.c.0.s8 %v3122
    %v3124 = vlaneseq
    %v3125 = vshrl.u32 %v3124, 7
    %v3126 = vsub.s32 %v3123, %v3125
    %v3127 = vrot.slane %v3111, %v3126
    %v3129 = vunpack.c.l.s4 1966171168
    %v3130 = vunpack.c.0.s8 %v3129
    %v3131 = vlaneseq
    %v3132 = vshrl.u32 %v3131, 7
    %v3133 = vsub.s32 %v3130, %v3132
    %v3134 = vrot.slane %v3112, %v3133
    %v3136 = vunpack.c.l.s4 1966171168
    %v3137 = vunpack.c.0.s8 %v3136
    %v3138 = vlaneseq
    %v3139 = vshrl.u32 %v3138, 7
    %v3140 = vsub.s32 %v3137, %v3139
    %v3141 = vrot.slane %v3113, %v3140
    %v3142 = vcombine.high %v3120, %v3120
    %v3143 = vcombine.high %v3127, %v3127
    %v3144 = vcombine.high %v3134, %v3134
    %v3145 = vcombine.high %v3141, %v3141
    %v3146 = vcombine.high %v3092, %v3092
    %v3148 = vunpack.c.l.s4 1966171168
    %v3149 = vunpack.c.0.s8 %v3148
    %v3150 = vlaneseq
    %v3151 = vshrl.u32 %v3150, 7
    %v3152 = vsub.s32 %v3149, %v3151
    %v3153 = vrot.slane %v3092, %v3152
    %v3155 = vunpack.c.l.s4 1966171168
    %v3156 = vunpack.c.0.s8 %v3155
    %v3157 = vlaneseq
    %v3158 = vshrl.u32 %v3157, 7
    %v3159 = vsub.s32 %v3156, %v3158
    %v3160 = vrot.slane %v3146, %v3159
    %v3161 = vcombine.high %v3153, %v3153
    %v3162 = vcombine.high %v3160, %v3160
    %v3164 = vunpack.c.l.s4 1966171168
    %v3165 = vunpack.c.0.s8 %v3164
    %v3166 = vlaneseq
    %v3167 = vshrl.u32 %v3166, 7
    %v3168 = vsub.s32 %v3165, %v3167
    %v3169 = vrot.slane %v3153, %v3168
    %v3171 = vunpack.c.l.s4 1966171168
    %v3172 = vunpack.c.0.s8 %v3171
    %v3173 = vlaneseq
    %v3174 = vshrl.u32 %v3173, 7
    %v3175 = vsub.s32 %v3172, %v3174
    %v3176 = vrot.slane %v3160, %v3175
    %v3178 = vunpack.c.l.s4 1966171168
    %v3179 = vunpack.c.0.s8 %v3178
    %v3180 = vlaneseq
    %v3181 = vshrl.u32 %v3180, 7
    %v3182 = vsub.s32 %v3179, %v3181
    %v3183 = vrot.slane %v3161, %v3182
    %v3185 = vunpack.c.l.s4 1966171168
    %v3186 = vunpack.c.0.s8 %v3185
    %v3187 = vlaneseq
    %v3188 = vshrl.u32 %v3187, 7
    %v3189 = vsub.s32 %v3186, %v3188
    %v3190 = vrot.slane %v3162, %v3189
    %v3191 = vcombine.high %v3169, %v3169
    %v3192 = vcombine.high %v3176, %v3176
    %v3193 = vcombine.high %v3183, %v3183
    %v3194 = vcombine.high %v3190, %v3190
    %v3195 = vlaneseq
    %v3196 = vshrl.u32 %v3195, 7
    %v3197 = vsub.s32 0, %v3196
    %v3198 = vrot.slane %v2712, %v3197
    %v3199 = vlaneseq
    %v3200 = vshrl.u32 %v3199, 7
    %v3201 = vsub.s32 0, %v3200
    %v3202 = vrot.slane %v2726, %v3201
    %v3203 = vlaneseq
    %v3204 = vshrl.u32 %v3203, 7
    %v3205 = vsub.s32 0, %v3204
    %v3206 = vrot.slane %v2734, %v3205
    %v3207 = vlaneseq
    %v3208 = vshrl.u32 %v3207, 7
    %v3209 = vsub.s32 0, %v3208
    %v3210 = vrot.slane %v2736, %v3209
    %v3211 = vlaneseq
    %v3212 = vshrl.u32 %v3211, 7
    %v3213 = vsub.s32 0, %v3212
    %v3214 = vrot.slane %v2719, %v3213
    %v3215 = vlaneseq
    %v3216 = vshrl.u32 %v3215, 7
    %v3217 = vsub.s32 0, %v3216
    %v3218 = vrot.slane %v2733, %v3217
    %v3219 = vlaneseq
    %v3220 = vshrl.u32 %v3219, 7
    %v3221 = vsub.s32 0, %v3220
    %v3222 = vrot.slane %v2735, %v3221
    %v3223 = vlaneseq
    %v3224 = vshrl.u32 %v3223, 7
    %v3225 = vsub.s32 0, %v3224
    %v3226 = vrot.slane %v2737, %v3225
    %v3227 = vlaneseq
    %v3228 = vshrl.u32 %v3227, 7
    %v3229 = vsub.s32 0, %v3228
    %v3230 = vrot.slane %v2761, %v3229
    %v3231 = vlaneseq
    %v3232 = vshrl.u32 %v3231, 7
    %v3233 = vsub.s32 0, %v3232
    %v3234 = vrot.slane %v2775, %v3233
    %v3235 = vlaneseq
    %v3236 = vshrl.u32 %v3235, 7
    %v3237 = vsub.s32 0, %v3236
    %v3238 = vrot.slane %v2783, %v3237
    %v3239 = vlaneseq
    %v3240 = vshrl.u32 %v3239, 7
    %v3241 = vsub.s32 0, %v3240
    %v3242 = vrot.slane %v2785, %v3241
    %v3243 = vlaneseq
    %v3244 = vshrl.u32 %v3243, 7
    %v3245 = vsub.s32 0, %v3244
    %v3246 = vrot.slane %v2768, %v3245
    %v3247 = vlaneseq
    %v3248 = vshrl.u32 %v3247, 7
    %v3249 = vsub.s32 0, %v3248
    %v3250 = vrot.slane %v2782, %v3249
    %v3251 = vlaneseq
    %v3252 = vshrl.u32 %v3251, 7
    %v3253 = vsub.s32 0, %v3252
    %v3254 = vrot.slane %v2784, %v3253
    %v3255 = vlaneseq
    %v3256 = vshrl.u32 %v3255, 7
    %v3257 = vsub.s32 0, %v3256
    %v3258 = vrot.slane %v2786, %v3257
    %v3275 = vlaneseq
    %v3276 = vshrl.u32 %v3275, 7
    %v3277 = vsub.s32 0, %v3276
    %v3278 = vrot.slane %v2916, %v3277
    %v3279 = vlaneseq
    %v3280 = vshrl.u32 %v3279, 7
    %v3281 = vsub.s32 0, %v3280
    %v3282 = vrot.slane %v2930, %v3281
    %v3283 = vlaneseq
    %v3284 = vshrl.u32 %v3283, 7
    %v3285 = vsub.s32 0, %v3284
    %v3286 = vrot.slane %v2938, %v3285
    %v3287 = vlaneseq
    %v3288 = vshrl.u32 %v3287, 7
    %v3289 = vsub.s32 0, %v3288
    %v3290 = vrot.slane %v2940, %v3289
    %v3291 = vlaneseq
    %v3292 = vshrl.u32 %v3291, 7
    %v3293 = vsub.s32 0, %v3292
    %v3294 = vrot.slane %v2923, %v3293
    %v3295 = vlaneseq
    %v3296 = vshrl.u32 %v3295, 7
    %v3297 = vsub.s32 0, %v3296
    %v3298 = vrot.slane %v2937, %v3297
    %v3299 = vlaneseq
    %v3300 = vshrl.u32 %v3299, 7
    %v3301 = vsub.s32 0, %v3300
    %v3302 = vrot.slane %v2939, %v3301
    %v3303 = vlaneseq
    %v3304 = vshrl.u32 %v3303, 7
    %v3305 = vsub.s32 0, %v3304
    %v3306 = vrot.slane %v2941, %v3305
    %v3307 = vlaneseq
    %v3308 = vshrl.u32 %v3307, 7
    %v3309 = vsub.s32 0, %v3308
    %v3310 = vrot.slane %v2965, %v3309
    %v3311 = vlaneseq
    %v3312 = vshrl.u32 %v3311, 7
    %v3313 = vsub.s32 0, %v3312
    %v3314 = vrot.slane %v2979, %v3313
    %v3315 = vlaneseq
    %v3316 = vshrl.u32 %v3315, 7
    %v3317 = vsub.s32 0, %v3316
    %v3318 = vrot.slane %v2987, %v3317
    %v3319 = vlaneseq
    %v3320 = vshrl.u32 %v3319, 7
    %v3321 = vsub.s32 0, %v3320
    %v3322 = vrot.slane %v2989, %v3321
    %v3323 = vlaneseq
    %v3324 = vshrl.u32 %v3323, 7
    %v3325 = vsub.s32 0, %v3324
    %v3326 = vrot.slane %v2972, %v3325
    %v3327 = vlaneseq
    %v3328 = vshrl.u32 %v3327, 7
    %v3329 = vsub.s32 0, %v3328
    %v3330 = vrot.slane %v2986, %v3329
    %v3331 = vlaneseq
    %v3332 = vshrl.u32 %v3331, 7
    %v3333 = vsub.s32 0, %v3332
    %v3334 = vrot.slane %v2988, %v3333
    %v3335 = vlaneseq
    %v3336 = vshrl.u32 %v3335, 7
    %v3337 = vsub.s32 0, %v3336
    %v3338 = vrot.slane %v2990, %v3337
    %v3355 = vlaneseq
    %v3356 = vshrl.u32 %v3355, 7
    %v3357 = vsub.s32 0, %v3356
    %v3358 = vrot.slane %v3120, %v3357
    %v3359 = vlaneseq
    %v3360 = vshrl.u32 %v3359, 7
    %v3361 = vsub.s32 0, %v3360
    %v3362 = vrot.slane %v3134, %v3361
    %v3363 = vlaneseq
    %v3364 = vshrl.u32 %v3363, 7
    %v3365 = vsub.s32 0, %v3364
    %v3366 = vrot.slane %v3142, %v3365
    %v3367 = vlaneseq
    %v3368 = vshrl.u32 %v3367, 7
    %v3369 = vsub.s32 0, %v3368
    %v3370 = vrot.slane %v3144, %v3369
    %v3371 = vlaneseq
    %v3372 = vshrl.u32 %v3371, 7
    %v3373 = vsub.s32 0, %v3372
    %v3374 = vrot.slane %v3127, %v3373
    %v3375 = vlaneseq
    %v3376 = vshrl.u32 %v3375, 7
    %v3377 = vsub.s32 0, %v3376
    %v3378 = vrot.slane %v3141, %v3377
    %v3379 = vlaneseq
    %v3380 = vshrl.u32 %v3379, 7
    %v3381 = vsub.s32 0, %v3380
    %v3382 = vrot.slane %v3143, %v3381
    %v3383 = vlaneseq
    %v3384 = vshrl.u32 %v3383, 7
    %v3385 = vsub.s32 0, %v3384
    %v3386 = vrot.slane %v3145, %v3385
    %v3387 = vlaneseq
    %v3388 = vshrl.u32 %v3387, 7
    %v3389 = vsub.s32 0, %v3388
    %v3390 = vrot.slane %v3169, %v3389
    %v3391 = vlaneseq
    %v3392 = vshrl.u32 %v3391, 7
    %v3393 = vsub.s32 0, %v3392
    %v3394 = vrot.slane %v3183, %v3393
    %v3395 = vlaneseq
    %v3396 = vshrl.u32 %v3395, 7
    %v3397 = vsub.s32 0, %v3396
    %v3398 = vrot.slane %v3191, %v3397
    %v3399 = vlaneseq
    %v3400 = vshrl.u32 %v3399, 7
    %v3401 = vsub.s32 0, %v3400
    %v3402 = vrot.slane %v3193, %v3401
    %v3403 = vlaneseq
    %v3404 = vshrl.u32 %v3403, 7
    %v3405 = vsub.s32 0, %v3404
    %v3406 = vrot.slane %v3176, %v3405
    %v3407 = vlaneseq
    %v3408 = vshrl.u32 %v3407, 7
    %v3409 = vsub.s32 0, %v3408
    %v3410 = vrot.slane %v3190, %v3409
    %v3411 = vlaneseq
    %v3412 = vshrl.u32 %v3411, 7
    %v3413 = vsub.s32 0, %v3412
    %v3414 = vrot.slane %v3192, %v3413
    %v3415 = vlaneseq
    %v3416 = vshrl.u32 %v3415, 7
    %v3417 = vsub.s32 0, %v3416
    %v3418 = vrot.slane %v3194, %v3417
    %vm3435 = vcmask 1040384
    %v3436 = vsel %vm3435, %v2492, %v3198
    %v3437 = vsel %vm3435, %v2506, %v3202
    %v3438 = vsel %vm3435, %v2514, %v3206
    %v3439 = vsel %vm3435, %v2516, %v3210
    %v3440 = vsel %vm3435, %v2499, %v3214
    %v3441 = vsel %vm3435, %v2513, %v3218
    %v3442 = vsel %vm3435, %v2515, %v3222
    %v3443 = vsel %vm3435, %v2517, %v3226
    %v3444 = vsel %vm3435, %v2541, %v3230
    %v3445 = vsel %vm3435, %v2555, %v3234
    %v3446 = vsel %vm3435, %v2563, %v3238
    %v3447 = vsel %vm3435, %v2565, %v3242
    %v3448 = vsel %vm3435, %v2548, %v3246
    %v3449 = vsel %vm3435, %v2562, %v3250
    %v3450 = vsel %vm3435, %v2564, %v3254
    %v3451 = vsel %vm3435, %v2566, %v3258
    %vm3452 = vcmask 1041408
    %v3453 = vsel %vm3452, %v3436, %v3278
    %v3454 = vsel %vm3452, %v3437, %v3282
    %v3455 = vsel %vm3452, %v3438, %v3286
    %v3456 = vsel %vm3452, %v3439, %v3290
    %v3457 = vsel %vm3452, %v3440, %v3294
    %v3458 = vsel %vm3452, %v3441, %v3298
    %v3459 = vsel %vm3452, %v3442, %v3302
    %v3460 = vsel %vm3452, %v3443, %v3306
    %v3461 = vsel %vm3452, %v3444, %v3310
    %v3462 = vsel %vm3452, %v3445, %v3314
    %v3463 = vsel %vm3452, %v3446, %v3318
    %v3464 = vsel %vm3452, %v3447, %v3322
    %v3465 = vsel %vm3452, %v3448, %v3326
    %v3466 = vsel %vm3452, %v3449, %v3330
    %v3467 = vsel %vm3452, %v3450, %v3334
    %v3468 = vsel %vm3452, %v3451, %v3338
    %vm3469 = vcmask 1042432
    %v3470 = vsel %vm3469, %v3453, %v3358
    %v3471 = vsel %vm3469, %v3454, %v3362
    %v3472 = vsel %vm3469, %v3455, %v3366
    %v3473 = vsel %vm3469, %v3456, %v3370
    %v3474 = vsel %vm3469, %v3457, %v3374
    %v3475 = vsel %vm3469, %v3458, %v3378
    %v3476 = vsel %vm3469, %v3459, %v3382
    %v3477 = vsel %vm3469, %v3460, %v3386
    %v3478 = vsel %vm3469, %v3461, %v3390
    %v3479 = vsel %vm3469, %v3462, %v3394
    %v3480 = vsel %vm3469, %v3463, %v3398
    %v3481 = vsel %vm3469, %v3464, %v3402
    %v3482 = vsel %vm3469, %v3465, %v3406
    %v3483 = vsel %vm3469, %v3466, %v3410
    %v3484 = vsel %vm3469, %v3467, %v3414
    %v3485 = vsel %vm3469, %v3468, %v3418
    %vm3486 = vcmask 121856
    %v3488 = vsel %vm3486, %v3470, 0
    %vm3490 = vcmask 1046528
    %v3492 = vsel %vm3490, %v2358, 0
    %3494 = vmatprep.subr.mxu0 0.0
    %3495 = vmatpush1.msra.mxu0 %v2357
    %3496 = vmatprep.subr.mxu0 0.0
    %3497 = vmatpush1.msra.mxu0 %v3492
    %3498 = vmatprep.subr.mxu0 0.0
    %3499 = vmatpush1.msra.mxu0 0.0
    %3500 = vmatprep.subr.mxu0 0.0
    %3501 = vmatpush1.msra.mxu0 0.0
    %3502 = vmatprep.subr.mxu0 0.0
    %3503 = vmatpush1.msra.mxu0 0.0
    %3504 = vmatprep.subr.mxu0 0.0
    %3505 = vmatpush1.msra.mxu0 0.0
    %3506 = vmatprep.subr.mxu0 0.0
    %3507 = vmatpush1.msra.mxu0 0.0
    %3508 = vmatprep.subr.mxu0 0.0
    %3509 = vmatpush1.msra.mxu0 0.0
    %3510 = vmatprep.subr.mxu0 0.0
    %3511 = vmatpush1.msra.mxu0 0.0
    %3512 = vmatprep.subr.mxu0 0.0
    %3513 = vmatpush1.msra.mxu0 0.0
    %3514 = vmatprep.subr.mxu0 0.0
    %3515 = vmatpush1.msra.mxu0 0.0
    %3516 = vmatprep.subr.mxu0 0.0
    %3517 = vmatpush1.msra.mxu0 0.0
    %3518 = vmatprep.subr.mxu0 0.0
    %3519 = vmatpush1.msra.mxu0 0.0
    %3520 = vmatprep.subr.mxu0 0.0
    %3521 = vmatpush1.msra.mxu0 0.0
    %3522 = vmatprep.subr.mxu0 0.0
    %3523 = vmatpush1.msra.mxu0 0.0
    %3524 = vmatprep.subr.mxu0 0.0
    %3525 = vmatpush1.msra.mxu0 0.0
    %3526 = vmatprep.subr.mxu0 0.0
    %3527 = vmatpush1.msra.mxu0 0.0
    %3528 = vmatprep.subr.mxu0 0.0
    %3529 = vmatpush1.msra.mxu0 0.0
    %3530 = vmatprep.subr.mxu0 0.0
    %3531 = vmatpush1.msra.mxu0 0.0
    %3532 = vmatprep.subr.mxu0 0.0
    %3533 = vmatpush1.msra.mxu0 0.0
    %3534 = vmatprep.subr.mxu0 0.0
    %3535 = vmatpush1.msra.mxu0 0.0
    %3536 = vmatprep.subr.mxu0 0.0
    %3537 = vmatpush1.msra.mxu0 0.0
    %3538 = vmatprep.subr.mxu0 0.0
    %3539 = vmatpush1.msra.mxu0 0.0
    %3540 = vmatprep.subr.mxu0 0.0
    %3541 = vmatpush1.msra.mxu0 0.0
    %3542 = vmatprep.subr.mxu0 0.0
    %3543 = vmatpush1.msra.mxu0 0.0
    %3544 = vmatprep.subr.mxu0 0.0
    %3545 = vmatpush1.msra.mxu0 0.0
    %3546 = vmatprep.subr.mxu0 0.0
    %3547 = vmatpush1.msra.mxu0 0.0
    %3548 = vmatprep.subr.mxu0 0.0
    %3549 = vmatpush1.msra.mxu0 0.0
    %3550 = vmatprep.subr.mxu0 0.0
    %3551 = vmatpush1.msra.mxu0 0.0
    %3552 = vmatprep.subr.mxu0 0.0
    %3553 = vmatpush1.msra.mxu0 0.0
    %3554 = vmatprep.subr.mxu0 0.0
    %3555 = vmatpush1.msra.mxu0 0.0
    %3556 = vmatprep.subr.mxu0 0.0
    %3557 = vmatpush1.msra.mxu0 0.0
    %3558 = vmatprep.mubr.f32.mxu0 0.0
    %3559 = vmatmul.mubr.f32.gmra.mrb[0].mxu0 %v3488
    %v3560 = vpop.f32.mrb[0].mxu0
    %v3561 = vadd.f32 0.0, %v3560
    %v3562 = vpop.f32.mrb[0].mxu0
    %3563 = vdwg.mxu0
    %v3565 = vsel %vm3486, %v3471, 0
    %v3568 = vsel %vm3490, %v2360, 0
    %3570 = vmatprep.subr.mxu0 0.0
    %3571 = vmatpush1.msra.mxu0 %v2359
    %3572 = vmatprep.subr.mxu0 0.0
    %3573 = vmatpush1.msra.mxu0 %v3568
    %3574 = vmatprep.subr.mxu0 0.0
    %3575 = vmatpush1.msra.mxu0 0.0
    %3576 = vmatprep.subr.mxu0 0.0
    %3577 = vmatpush1.msra.mxu0 0.0
    %3578 = vmatprep.subr.mxu0 0.0
    %3579 = vmatpush1.msra.mxu0 0.0
    %3580 = vmatprep.subr.mxu0 0.0
    %3581 = vmatpush1.msra.mxu0 0.0
    %3582 = vmatprep.subr.mxu0 0.0
    %3583 = vmatpush1.msra.mxu0 0.0
    %3584 = vmatprep.subr.mxu0 0.0
    %3585 = vmatpush1.msra.mxu0 0.0
    %3586 = vmatprep.subr.mxu0 0.0
    %3587 = vmatpush1.msra.mxu0 0.0
    %3588 = vmatprep.subr.mxu0 0.0
    %3589 = vmatpush1.msra.mxu0 0.0
    %3590 = vmatprep.subr.mxu0 0.0
    %3591 = vmatpush1.msra.mxu0 0.0
    %3592 = vmatprep.subr.mxu0 0.0
    %3593 = vmatpush1.msra.mxu0 0.0
    %3594 = vmatprep.subr.mxu0 0.0
    %3595 = vmatpush1.msra.mxu0 0.0
    %3596 = vmatprep.subr.mxu0 0.0
    %3597 = vmatpush1.msra.mxu0 0.0
    %3598 = vmatprep.subr.mxu0 0.0
    %3599 = vmatpush1.msra.mxu0 0.0
    %3600 = vmatprep.subr.mxu0 0.0
    %3601 = vmatpush1.msra.mxu0 0.0
    %3602 = vmatprep.subr.mxu0 0.0
    %3603 = vmatpush1.msra.mxu0 0.0
    %3604 = vmatprep.subr.mxu0 0.0
    %3605 = vmatpush1.msra.mxu0 0.0
    %3606 = vmatprep.subr.mxu0 0.0
    %3607 = vmatpush1.msra.mxu0 0.0
    %3608 = vmatprep.subr.mxu0 0.0
    %3609 = vmatpush1.msra.mxu0 0.0
    %3610 = vmatprep.subr.mxu0 0.0
    %3611 = vmatpush1.msra.mxu0 0.0
    %3612 = vmatprep.subr.mxu0 0.0
    %3613 = vmatpush1.msra.mxu0 0.0
    %3614 = vmatprep.subr.mxu0 0.0
    %3615 = vmatpush1.msra.mxu0 0.0
    %3616 = vmatprep.subr.mxu0 0.0
    %3617 = vmatpush1.msra.mxu0 0.0
    %3618 = vmatprep.subr.mxu0 0.0
    %3619 = vmatpush1.msra.mxu0 0.0
    %3620 = vmatprep.subr.mxu0 0.0
    %3621 = vmatpush1.msra.mxu0 0.0
    %3622 = vmatprep.subr.mxu0 0.0
    %3623 = vmatpush1.msra.mxu0 0.0
    %3624 = vmatprep.subr.mxu0 0.0
    %3625 = vmatpush1.msra.mxu0 0.0
    %3626 = vmatprep.subr.mxu0 0.0
    %3627 = vmatpush1.msra.mxu0 0.0
    %3628 = vmatprep.subr.mxu0 0.0
    %3629 = vmatpush1.msra.mxu0 0.0
    %3630 = vmatprep.subr.mxu0 0.0
    %3631 = vmatpush1.msra.mxu0 0.0
    %3632 = vmatprep.subr.mxu0 0.0
    %3633 = vmatpush1.msra.mxu0 0.0
    %3634 = vmatprep.mubr.f32.mxu0 0.0
    %3635 = vmatmul.mubr.f32.gmra.mrb[0].mxu0 %v3565
    %v3636 = vpop.f32.mrb[0].mxu0
    %v3637 = vadd.f32 0.0, %v3636
    %v3638 = vpop.f32.mrb[0].mxu0
    %3639 = vdwg.mxu0
    %v3641 = vsel %vm3486, %v3472, 0
    %v3644 = vsel %vm3490, %v2362, 0
    %3646 = vmatprep.subr.mxu0 0.0
    %3647 = vmatpush1.msra.mxu0 %v2361
    %3648 = vmatprep.subr.mxu0 0.0
    %3649 = vmatpush1.msra.mxu0 %v3644
    %3650 = vmatprep.subr.mxu0 0.0
    %3651 = vmatpush1.msra.mxu0 0.0
    %3652 = vmatprep.subr.mxu0 0.0
    %3653 = vmatpush1.msra.mxu0 0.0
    %3654 = vmatprep.subr.mxu0 0.0
    %3655 = vmatpush1.msra.mxu0 0.0
    %3656 = vmatprep.subr.mxu0 0.0
    %3657 = vmatpush1.msra.mxu0 0.0
    %3658 = vmatprep.subr.mxu0 0.0
    %3659 = vmatpush1.msra.mxu0 0.0
    %3660 = vmatprep.subr.mxu0 0.0
    %3661 = vmatpush1.msra.mxu0 0.0
    %3662 = vmatprep.subr.mxu0 0.0
    %3663 = vmatpush1.msra.mxu0 0.0
    %3664 = vmatprep.subr.mxu0 0.0
    %3665 = vmatpush1.msra.mxu0 0.0
    %3666 = vmatprep.subr.mxu0 0.0
    %3667 = vmatpush1.msra.mxu0 0.0
    %3668 = vmatprep.subr.mxu0 0.0
    %3669 = vmatpush1.msra.mxu0 0.0
    %3670 = vmatprep.subr.mxu0 0.0
    %3671 = vmatpush1.msra.mxu0 0.0
    %3672 = vmatprep.subr.mxu0 0.0
    %3673 = vmatpush1.msra.mxu0 0.0
    %3674 = vmatprep.subr.mxu0 0.0
    %3675 = vmatpush1.msra.mxu0 0.0
    %3676 = vmatprep.subr.mxu0 0.0
    %3677 = vmatpush1.msra.mxu0 0.0
    %3678 = vmatprep.subr.mxu0 0.0
    %3679 = vmatpush1.msra.mxu0 0.0
    %3680 = vmatprep.subr.mxu0 0.0
    %3681 = vmatpush1.msra.mxu0 0.0
    %3682 = vmatprep.subr.mxu0 0.0
    %3683 = vmatpush1.msra.mxu0 0.0
    %3684 = vmatprep.subr.mxu0 0.0
    %3685 = vmatpush1.msra.mxu0 0.0
    %3686 = vmatprep.subr.mxu0 0.0
    %3687 = vmatpush1.msra.mxu0 0.0
    %3688 = vmatprep.subr.mxu0 0.0
    %3689 = vmatpush1.msra.mxu0 0.0
    %3690 = vmatprep.subr.mxu0 0.0
    %3691 = vmatpush1.msra.mxu0 0.0
    %3692 = vmatprep.subr.mxu0 0.0
    %3693 = vmatpush1.msra.mxu0 0.0
    %3694 = vmatprep.subr.mxu0 0.0
    %3695 = vmatpush1.msra.mxu0 0.0
    %3696 = vmatprep.subr.mxu0 0.0
    %3697 = vmatpush1.msra.mxu0 0.0
    %3698 = vmatprep.subr.mxu0 0.0
    %3699 = vmatpush1.msra.mxu0 0.0
    %3700 = vmatprep.subr.mxu0 0.0
    %3701 = vmatpush1.msra.mxu0 0.0
    %3702 = vmatprep.subr.mxu0 0.0
    %3703 = vmatpush1.msra.mxu0 0.0
    %3704 = vmatprep.subr.mxu0 0.0
    %3705 = vmatpush1.msra.mxu0 0.0
    %3706 = vmatprep.subr.mxu0 0.0
    %3707 = vmatpush1.msra.mxu0 0.0
    %3708 = vmatprep.subr.mxu0 0.0
    %3709 = vmatpush1.msra.mxu0 0.0
    %3710 = vmatprep.mubr.f32.mxu0 0.0
    %3711 = vmatmul.mubr.f32.gmra.mrb[0].mxu0 %v3641
    %v3712 = vpop.f32.mrb[0].mxu0
    %v3713 = vadd.f32 0.0, %v3712
    %v3714 = vpop.f32.mrb[0].mxu0
    %3715 = vdwg.mxu0
    %v3717 = vsel %vm3486, %v3473, 0
    %v3720 = vsel %vm3490, %v2364, 0
    %3722 = vmatprep.subr.mxu0 0.0
    %3723 = vmatpush1.msra.mxu0 %v2363
    %3724 = vmatprep.subr.mxu0 0.0
    %3725 = vmatpush1.msra.mxu0 %v3720
    %3726 = vmatprep.subr.mxu0 0.0
    %3727 = vmatpush1.msra.mxu0 0.0
    %3728 = vmatprep.subr.mxu0 0.0
    %3729 = vmatpush1.msra.mxu0 0.0
    %3730 = vmatprep.subr.mxu0 0.0
    %3731 = vmatpush1.msra.mxu0 0.0
    %3732 = vmatprep.subr.mxu0 0.0
    %3733 = vmatpush1.msra.mxu0 0.0
    %3734 = vmatprep.subr.mxu0 0.0
    %3735 = vmatpush1.msra.mxu0 0.0
    %3736 = vmatprep.subr.mxu0 0.0
    %3737 = vmatpush1.msra.mxu0 0.0
    %3738 = vmatprep.subr.mxu0 0.0
    %3739 = vmatpush1.msra.mxu0 0.0
    %3740 = vmatprep.subr.mxu0 0.0
    %3741 = vmatpush1.msra.mxu0 0.0
    %3742 = vmatprep.subr.mxu0 0.0
    %3743 = vmatpush1.msra.mxu0 0.0
    %3744 = vmatprep.subr.mxu0 0.0
    %3745 = vmatpush1.msra.mxu0 0.0
    %3746 = vmatprep.subr.mxu0 0.0
    %3747 = vmatpush1.msra.mxu0 0.0
    %3748 = vmatprep.subr.mxu0 0.0
    %3749 = vmatpush1.msra.mxu0 0.0
    %3750 = vmatprep.subr.mxu0 0.0
    %3751 = vmatpush1.msra.mxu0 0.0
    %3752 = vmatprep.subr.mxu0 0.0
    %3753 = vmatpush1.msra.mxu0 0.0
    %3754 = vmatprep.subr.mxu0 0.0
    %3755 = vmatpush1.msra.mxu0 0.0
    %3756 = vmatprep.subr.mxu0 0.0
    %3757 = vmatpush1.msra.mxu0 0.0
    %3758 = vmatprep.subr.mxu0 0.0
    %3759 = vmatpush1.msra.mxu0 0.0
    %3760 = vmatprep.subr.mxu0 0.0
    %3761 = vmatpush1.msra.mxu0 0.0
    %3762 = vmatprep.subr.mxu0 0.0
    %3763 = vmatpush1.msra.mxu0 0.0
    %3764 = vmatprep.subr.mxu0 0.0
    %3765 = vmatpush1.msra.mxu0 0.0
    %3766 = vmatprep.subr.mxu0 0.0
    %3767 = vmatpush1.msra.mxu0 0.0
    %3768 = vmatprep.subr.mxu0 0.0
    %3769 = vmatpush1.msra.mxu0 0.0
    %3770 = vmatprep.subr.mxu0 0.0
    %3771 = vmatpush1.msra.mxu0 0.0
    %3772 = vmatprep.subr.mxu0 0.0
    %3773 = vmatpush1.msra.mxu0 0.0
    %3774 = vmatprep.subr.mxu0 0.0
    %3775 = vmatpush1.msra.mxu0 0.0
    %3776 = vmatprep.subr.mxu0 0.0
    %3777 = vmatpush1.msra.mxu0 0.0
    %3778 = vmatprep.subr.mxu0 0.0
    %3779 = vmatpush1.msra.mxu0 0.0
    %3780 = vmatprep.subr.mxu0 0.0
    %3781 = vmatpush1.msra.mxu0 0.0
    %3782 = vmatprep.subr.mxu0 0.0
    %3783 = vmatpush1.msra.mxu0 0.0
    %3784 = vmatprep.subr.mxu0 0.0
    %3785 = vmatpush1.msra.mxu0 0.0
    %3786 = vmatprep.mubr.f32.mxu0 0.0
    %3787 = vmatmul.mubr.f32.gmra.mrb[0].mxu0 %v3717
    %v3788 = vpop.f32.mrb[0].mxu0
    %v3789 = vadd.f32 0.0, %v3788
    %v3790 = vpop.f32.mrb[0].mxu0
    %3791 = vdwg.mxu0
    %v3793 = vsel %vm3486, %v3474, 0
    %v3796 = vsel %vm3490, %v2366, 0
    %3798 = vmatprep.subr.mxu0 0.0
    %3799 = vmatpush1.msra.mxu0 %v2365
    %3800 = vmatprep.subr.mxu0 0.0
    %3801 = vmatpush1.msra.mxu0 %v3796
    %3802 = vmatprep.subr.mxu0 0.0
    %3803 = vmatpush1.msra.mxu0 0.0
    %3804 = vmatprep.subr.mxu0 0.0
    %3805 = vmatpush1.msra.mxu0 0.0
    %3806 = vmatprep.subr.mxu0 0.0
    %3807 = vmatpush1.msra.mxu0 0.0
    %3808 = vmatprep.subr.mxu0 0.0
    %3809 = vmatpush1.msra.mxu0 0.0
    %3810 = vmatprep.subr.mxu0 0.0
    %3811 = vmatpush1.msra.mxu0 0.0
    %3812 = vmatprep.subr.mxu0 0.0
    %3813 = vmatpush1.msra.mxu0 0.0
    %3814 = vmatprep.subr.mxu0 0.0
    %3815 = vmatpush1.msra.mxu0 0.0
    %3816 = vmatprep.subr.mxu0 0.0
    %3817 = vmatpush1.msra.mxu0 0.0
    %3818 = vmatprep.subr.mxu0 0.0
    %3819 = vmatpush1.msra.mxu0 0.0
    %3820 = vmatprep.subr.mxu0 0.0
    %3821 = vmatpush1.msra.mxu0 0.0
    %3822 = vmatprep.subr.mxu0 0.0
    %3823 = vmatpush1.msra.mxu0 0.0
    %3824 = vmatprep.subr.mxu0 0.0
    %3825 = vmatpush1.msra.mxu0 0.0
    %3826 = vmatprep.subr.mxu0 0.0
    %3827 = vmatpush1.msra.mxu0 0.0
    %3828 = vmatprep.subr.mxu0 0.0
    %3829 = vmatpush1.msra.mxu0 0.0
    %3830 = vmatprep.subr.mxu0 0.0
    %3831 = vmatpush1.msra.mxu0 0.0
    %3832 = vmatprep.subr.mxu0 0.0
    %3833 = vmatpush1.msra.mxu0 0.0
    %3834 = vmatprep.subr.mxu0 0.0
    %3835 = vmatpush1.msra.mxu0 0.0
    %3836 = vmatprep.subr.mxu0 0.0
    %3837 = vmatpush1.msra.mxu0 0.0
    %3838 = vmatprep.subr.mxu0 0.0
    %3839 = vmatpush1.msra.mxu0 0.0
    %3840 = vmatprep.subr.mxu0 0.0
    %3841 = vmatpush1.msra.mxu0 0.0
    %3842 = vmatprep.subr.mxu0 0.0
    %3843 = vmatpush1.msra.mxu0 0.0
    %3844 = vmatprep.subr.mxu0 0.0
    %3845 = vmatpush1.msra.mxu0 0.0
    %3846 = vmatprep.subr.mxu0 0.0
    %3847 = vmatpush1.msra.mxu0 0.0
    %3848 = vmatprep.subr.mxu0 0.0
    %3849 = vmatpush1.msra.mxu0 0.0
    %3850 = vmatprep.subr.mxu0 0.0
    %3851 = vmatpush1.msra.mxu0 0.0
    %3852 = vmatprep.subr.mxu0 0.0
    %3853 = vmatpush1.msra.mxu0 0.0
    %3854 = vmatprep.subr.mxu0 0.0
    %3855 = vmatpush1.msra.mxu0 0.0
    %3856 = vmatprep.subr.mxu0 0.0
    %3857 = vmatpush1.msra.mxu0 0.0
    %3858 = vmatprep.subr.mxu0 0.0
    %3859 = vmatpush1.msra.mxu0 0.0
    %3860 = vmatprep.subr.mxu0 0.0
    %3861 = vmatpush1.msra.mxu0 0.0
    %3862 = vmatprep.mubr.f32.mxu0 0.0
    %3863 = vmatmul.mubr.f32.gmra.mrb[0].mxu0 %v3793
    %v3864 = vpop.f32.mrb[0].mxu0
    %v3865 = vadd.f32 0.0, %v3864
    %v3866 = vpop.f32.mrb[0].mxu0
    %3867 = vdwg.mxu0
    %v3869 = vsel %vm3486, %v3475, 0
    %v3872 = vsel %vm3490, %v2368, 0
    %3874 = vmatprep.subr.mxu0 0.0
    %3875 = vmatpush1.msra.mxu0 %v2367
    %3876 = vmatprep.subr.mxu0 0.0
    %3877 = vmatpush1.msra.mxu0 %v3872
    %3878 = vmatprep.subr.mxu0 0.0
    %3879 = vmatpush1.msra.mxu0 0.0
    %3880 = vmatprep.subr.mxu0 0.0
    %3881 = vmatpush1.msra.mxu0 0.0
    %3882 = vmatprep.subr.mxu0 0.0
    %3883 = vmatpush1.msra.mxu0 0.0
    %3884 = vmatprep.subr.mxu0 0.0
    %3885 = vmatpush1.msra.mxu0 0.0
    %3886 = vmatprep.subr.mxu0 0.0
    %3887 = vmatpush1.msra.mxu0 0.0
    %3888 = vmatprep.subr.mxu0 0.0
    %3889 = vmatpush1.msra.mxu0 0.0
    %3890 = vmatprep.subr.mxu0 0.0
    %3891 = vmatpush1.msra.mxu0 0.0
    %3892 = vmatprep.subr.mxu0 0.0
    %3893 = vmatpush1.msra.mxu0 0.0
    %3894 = vmatprep.subr.mxu0 0.0
    %3895 = vmatpush1.msra.mxu0 0.0
    %3896 = vmatprep.subr.mxu0 0.0
    %3897 = vmatpush1.msra.mxu0 0.0
    %3898 = vmatprep.subr.mxu0 0.0
    %3899 = vmatpush1.msra.mxu0 0.0
    %3900 = vmatprep.subr.mxu0 0.0
    %3901 = vmatpush1.msra.mxu0 0.0
    %3902 = vmatprep.subr.mxu0 0.0
    %3903 = vmatpush1.msra.mxu0 0.0
    %3904 = vmatprep.subr.mxu0 0.0
    %3905 = vmatpush1.msra.mxu0 0.0
    %3906 = vmatprep.subr.mxu0 0.0
    %3907 = vmatpush1.msra.mxu0 0.0
    %3908 = vmatprep.subr.mxu0 0.0
    %3909 = vmatpush1.msra.mxu0 0.0
    %3910 = vmatprep.subr.mxu0 0.0
    %3911 = vmatpush1.msra.mxu0 0.0
    %3912 = vmatprep.subr.mxu0 0.0
    %3913 = vmatpush1.msra.mxu0 0.0
    %3914 = vmatprep.subr.mxu0 0.0
    %3915 = vmatpush1.msra.mxu0 0.0
    %3916 = vmatprep.subr.mxu0 0.0
    %3917 = vmatpush1.msra.mxu0 0.0
    %3918 = vmatprep.subr.mxu0 0.0
    %3919 = vmatpush1.msra.mxu0 0.0
    %3920 = vmatprep.subr.mxu0 0.0
    %3921 = vmatpush1.msra.mxu0 0.0
    %3922 = vmatprep.subr.mxu0 0.0
    %3923 = vmatpush1.msra.mxu0 0.0
    %3924 = vmatprep.subr.mxu0 0.0
    %3925 = vmatpush1.msra.mxu0 0.0
    %3926 = vmatprep.subr.mxu0 0.0
    %3927 = vmatpush1.msra.mxu0 0.0
    %3928 = vmatprep.subr.mxu0 0.0
    %3929 = vmatpush1.msra.mxu0 0.0
    %3930 = vmatprep.subr.mxu0 0.0
    %3931 = vmatpush1.msra.mxu0 0.0
    %3932 = vmatprep.subr.mxu0 0.0
    %3933 = vmatpush1.msra.mxu0 0.0
    %3934 = vmatprep.subr.mxu0 0.0
    %3935 = vmatpush1.msra.mxu0 0.0
    %3936 = vmatprep.subr.mxu0 0.0
    %3937 = vmatpush1.msra.mxu0 0.0
    %3938 = vmatprep.mubr.f32.mxu0 0.0
    %3939 = vmatmul.mubr.f32.gmra.mrb[0].mxu0 %v3869
    %v3940 = vpop.f32.mrb[0].mxu0
    %v3941 = vadd.f32 0.0, %v3940
    %v3942 = vpop.f32.mrb[0].mxu0
    %3943 = vdwg.mxu0
    %v3945 = vsel %vm3486, %v3476, 0
    %v3948 = vsel %vm3490, %v2370, 0
    %3950 = vmatprep.subr.mxu0 0.0
    %3951 = vmatpush1.msra.mxu0 %v2369
    %3952 = vmatprep.subr.mxu0 0.0
    %3953 = vmatpush1.msra.mxu0 %v3948
    %3954 = vmatprep.subr.mxu0 0.0
    %3955 = vmatpush1.msra.mxu0 0.0
    %3956 = vmatprep.subr.mxu0 0.0
    %3957 = vmatpush1.msra.mxu0 0.0
    %3958 = vmatprep.subr.mxu0 0.0
    %3959 = vmatpush1.msra.mxu0 0.0
    %3960 = vmatprep.subr.mxu0 0.0
    %3961 = vmatpush1.msra.mxu0 0.0
    %3962 = vmatprep.subr.mxu0 0.0
    %3963 = vmatpush1.msra.mxu0 0.0
    %3964 = vmatprep.subr.mxu0 0.0
    %3965 = vmatpush1.msra.mxu0 0.0
    %3966 = vmatprep.subr.mxu0 0.0
    %3967 = vmatpush1.msra.mxu0 0.0
    %3968 = vmatprep.subr.mxu0 0.0
    %3969 = vmatpush1.msra.mxu0 0.0
    %3970 = vmatprep.subr.mxu0 0.0
    %3971 = vmatpush1.msra.mxu0 0.0
    %3972 = vmatprep.subr.mxu0 0.0
    %3973 = vmatpush1.msra.mxu0 0.0
    %3974 = vmatprep.subr.mxu0 0.0
    %3975 = vmatpush1.msra.mxu0 0.0
    %3976 = vmatprep.subr.mxu0 0.0
    %3977 = vmatpush1.msra.mxu0 0.0
    %3978 = vmatprep.subr.mxu0 0.0
    %3979 = vmatpush1.msra.mxu0 0.0
    %3980 = vmatprep.subr.mxu0 0.0
    %3981 = vmatpush1.msra.mxu0 0.0
    %3982 = vmatprep.subr.mxu0 0.0
    %3983 = vmatpush1.msra.mxu0 0.0
    %3984 = vmatprep.subr.mxu0 0.0
    %3985 = vmatpush1.msra.mxu0 0.0
    %3986 = vmatprep.subr.mxu0 0.0
    %3987 = vmatpush1.msra.mxu0 0.0
    %3988 = vmatprep.subr.mxu0 0.0
    %3989 = vmatpush1.msra.mxu0 0.0
    %3990 = vmatprep.subr.mxu0 0.0
    %3991 = vmatpush1.msra.mxu0 0.0
    %3992 = vmatprep.subr.mxu0 0.0
    %3993 = vmatpush1.msra.mxu0 0.0
    %3994 = vmatprep.subr.mxu0 0.0
    %3995 = vmatpush1.msra.mxu0 0.0
    %3996 = vmatprep.subr.mxu0 0.0
    %3997 = vmatpush1.msra.mxu0 0.0
    %3998 = vmatprep.subr.mxu0 0.0
    %3999 = vmatpush1.msra.mxu0 0.0
    %4000 = vmatprep.subr.mxu0 0.0
    %4001 = vmatpush1.msra.mxu0 0.0
    %4002 = vmatprep.subr.mxu0 0.0
    %4003 = vmatpush1.msra.mxu0 0.0
    %4004 = vmatprep.subr.mxu0 0.0
    %4005 = vmatpush1.msra.mxu0 0.0
    %4006 = vmatprep.subr.mxu0 0.0
    %4007 = vmatpush1.msra.mxu0 0.0
    %4008 = vmatprep.subr.mxu0 0.0
    %4009 = vmatpush1.msra.mxu0 0.0
    %4010 = vmatprep.subr.mxu0 0.0
    %4011 = vmatpush1.msra.mxu0 0.0
    %4012 = vmatprep.subr.mxu0 0.0
    %4013 = vmatpush1.msra.mxu0 0.0
    %4014 = vmatprep.mubr.f32.mxu0 0.0
    %4015 = vmatmul.mubr.f32.gmra.mrb[0].mxu0 %v3945
    %v4016 = vpop.f32.mrb[0].mxu0
    %v4017 = vadd.f32 0.0, %v4016
    %v4018 = vpop.f32.mrb[0].mxu0
    %4019 = vdwg.mxu0
    %v4021 = vsel %vm3486, %v3477, 0
    %v4024 = vsel %vm3490, %v2372, 0
    %4026 = vmatprep.subr.mxu0 0.0
    %4027 = vmatpush1.msra.mxu0 %v2371
    %4028 = vmatprep.subr.mxu0 0.0
    %4029 = vmatpush1.msra.mxu0 %v4024
    %4030 = vmatprep.subr.mxu0 0.0
    %4031 = vmatpush1.msra.mxu0 0.0
    %4032 = vmatprep.subr.mxu0 0.0
    %4033 = vmatpush1.msra.mxu0 0.0
    %4034 = vmatprep.subr.mxu0 0.0
    %4035 = vmatpush1.msra.mxu0 0.0
    %4036 = vmatprep.subr.mxu0 0.0
    %4037 = vmatpush1.msra.mxu0 0.0
    %4038 = vmatprep.subr.mxu0 0.0
    %4039 = vmatpush1.msra.mxu0 0.0
    %4040 = vmatprep.subr.mxu0 0.0
    %4041 = vmatpush1.msra.mxu0 0.0
    %4042 = vmatprep.subr.mxu0 0.0
    %4043 = vmatpush1.msra.mxu0 0.0
    %4044 = vmatprep.subr.mxu0 0.0
    %4045 = vmatpush1.msra.mxu0 0.0
    %4046 = vmatprep.subr.mxu0 0.0
    %4047 = vmatpush1.msra.mxu0 0.0
    %4048 = vmatprep.subr.mxu0 0.0
    %4049 = vmatpush1.msra.mxu0 0.0
    %4050 = vmatprep.subr.mxu0 0.0
    %4051 = vmatpush1.msra.mxu0 0.0
    %4052 = vmatprep.subr.mxu0 0.0
    %4053 = vmatpush1.msra.mxu0 0.0
    %4054 = vmatprep.subr.mxu0 0.0
    %4055 = vmatpush1.msra.mxu0 0.0
    %4056 = vmatprep.subr.mxu0 0.0
    %4057 = vmatpush1.msra.mxu0 0.0
    %4058 = vmatprep.subr.mxu0 0.0
    %4059 = vmatpush1.msra.mxu0 0.0
    %4060 = vmatprep.subr.mxu0 0.0
    %4061 = vmatpush1.msra.mxu0 0.0
    %4062 = vmatprep.subr.mxu0 0.0
    %4063 = vmatpush1.msra.mxu0 0.0
    %4064 = vmatprep.subr.mxu0 0.0
    %4065 = vmatpush1.msra.mxu0 0.0
    %4066 = vmatprep.subr.mxu0 0.0
    %4067 = vmatpush1.msra.mxu0 0.0
    %4068 = vmatprep.subr.mxu0 0.0
    %4069 = vmatpush1.msra.mxu0 0.0
    %4070 = vmatprep.subr.mxu0 0.0
    %4071 = vmatpush1.msra.mxu0 0.0
    %4072 = vmatprep.subr.mxu0 0.0
    %4073 = vmatpush1.msra.mxu0 0.0
    %4074 = vmatprep.subr.mxu0 0.0
    %4075 = vmatpush1.msra.mxu0 0.0
    %4076 = vmatprep.subr.mxu0 0.0
    %4077 = vmatpush1.msra.mxu0 0.0
    %4078 = vmatprep.subr.mxu0 0.0
    %4079 = vmatpush1.msra.mxu0 0.0
    %4080 = vmatprep.subr.mxu0 0.0
    %4081 = vmatpush1.msra.mxu0 0.0
    %4082 = vmatprep.subr.mxu0 0.0
    %4083 = vmatpush1.msra.mxu0 0.0
    %4084 = vmatprep.subr.mxu0 0.0
    %4085 = vmatpush1.msra.mxu0 0.0
    %4086 = vmatprep.subr.mxu0 0.0
    %4087 = vmatpush1.msra.mxu0 0.0
    %4088 = vmatprep.subr.mxu0 0.0
    %4089 = vmatpush1.msra.mxu0 0.0
    %4090 = vmatprep.mubr.f32.mxu0 0.0
    %4091 = vmatmul.mubr.f32.gmra.mrb[0].mxu0 %v4021
    %v4092 = vpop.f32.mrb[0].mxu0
    %v4093 = vadd.f32 0.0, %v4092
    %v4094 = vpop.f32.mrb[0].mxu0
    %4095 = vdwg.mxu0
    %v4097 = vsel %vm3486, %v3478, 0
    %4099 = vmatprep.subr.mxu0 0.0
    %4100 = vmatpush1.msra.mxu0 %v2357
    %4101 = vmatprep.subr.mxu0 0.0
    %4102 = vmatpush1.msra.mxu0 %v3492
    %4103 = vmatprep.subr.mxu0 0.0
    %4104 = vmatpush1.msra.mxu0 0.0
    %4105 = vmatprep.subr.mxu0 0.0
    %4106 = vmatpush1.msra.mxu0 0.0
    %4107 = vmatprep.subr.mxu0 0.0
    %4108 = vmatpush1.msra.mxu0 0.0
    %4109 = vmatprep.subr.mxu0 0.0
    %4110 = vmatpush1.msra.mxu0 0.0
    %4111 = vmatprep.subr.mxu0 0.0
    %4112 = vmatpush1.msra.mxu0 0.0
    %4113 = vmatprep.subr.mxu0 0.0
    %4114 = vmatpush1.msra.mxu0 0.0
    %4115 = vmatprep.subr.mxu0 0.0
    %4116 = vmatpush1.msra.mxu0 0.0
    %4117 = vmatprep.subr.mxu0 0.0
    %4118 = vmatpush1.msra.mxu0 0.0
    %4119 = vmatprep.subr.mxu0 0.0
    %4120 = vmatpush1.msra.mxu0 0.0
    %4121 = vmatprep.subr.mxu0 0.0
    %4122 = vmatpush1.msra.mxu0 0.0
    %4123 = vmatprep.subr.mxu0 0.0
    %4124 = vmatpush1.msra.mxu0 0.0
    %4125 = vmatprep.subr.mxu0 0.0
    %4126 = vmatpush1.msra.mxu0 0.0
    %4127 = vmatprep.subr.mxu0 0.0
    %4128 = vmatpush1.msra.mxu0 0.0
    %4129 = vmatprep.subr.mxu0 0.0
    %4130 = vmatpush1.msra.mxu0 0.0
    %4131 = vmatprep.subr.mxu0 0.0
    %4132 = vmatpush1.msra.mxu0 0.0
    %4133 = vmatprep.subr.mxu0 0.0
    %4134 = vmatpush1.msra.mxu0 0.0
    %4135 = vmatprep.subr.mxu0 0.0
    %4136 = vmatpush1.msra.mxu0 0.0
    %4137 = vmatprep.subr.mxu0 0.0
    %4138 = vmatpush1.msra.mxu0 0.0
    %4139 = vmatprep.subr.mxu0 0.0
    %4140 = vmatpush1.msra.mxu0 0.0
    %4141 = vmatprep.subr.mxu0 0.0
    %4142 = vmatpush1.msra.mxu0 0.0
    %4143 = vmatprep.subr.mxu0 0.0
    %4144 = vmatpush1.msra.mxu0 0.0
    %4145 = vmatprep.subr.mxu0 0.0
    %4146 = vmatpush1.msra.mxu0 0.0
    %4147 = vmatprep.subr.mxu0 0.0
    %4148 = vmatpush1.msra.mxu0 0.0
    %4149 = vmatprep.subr.mxu0 0.0
    %4150 = vmatpush1.msra.mxu0 0.0
    %4151 = vmatprep.subr.mxu0 0.0
    %4152 = vmatpush1.msra.mxu0 0.0
    %4153 = vmatprep.subr.mxu0 0.0
    %4154 = vmatpush1.msra.mxu0 0.0
    %4155 = vmatprep.subr.mxu0 0.0
    %4156 = vmatpush1.msra.mxu0 0.0
    %4157 = vmatprep.subr.mxu0 0.0
    %4158 = vmatpush1.msra.mxu0 0.0
    %4159 = vmatprep.subr.mxu0 0.0
    %4160 = vmatpush1.msra.mxu0 0.0
    %4161 = vmatprep.subr.mxu0 0.0
    %4162 = vmatpush1.msra.mxu0 0.0
    %4163 = vmatprep.mubr.f32.mxu0 0.0
    %4164 = vmatmul.mubr.f32.gmra.mrb[0].mxu0 %v4097
    %v4165 = vpop.f32.mrb[0].mxu0
    %v4166 = vadd.f32 0.0, %v4165
    %v4167 = vpop.f32.mrb[0].mxu0
    %4168 = vdwg.mxu0
    %v4170 = vsel %vm3486, %v3479, 0
    %4172 = vmatprep.subr.mxu0 0.0
    %4173 = vmatpush1.msra.mxu0 %v2359
    %4174 = vmatprep.subr.mxu0 0.0
    %4175 = vmatpush1.msra.mxu0 %v3568
    %4176 = vmatprep.subr.mxu0 0.0
    %4177 = vmatpush1.msra.mxu0 0.0
    %4178 = vmatprep.subr.mxu0 0.0
    %4179 = vmatpush1.msra.mxu0 0.0
    %4180 = vmatprep.subr.mxu0 0.0
    %4181 = vmatpush1.msra.mxu0 0.0
    %4182 = vmatprep.subr.mxu0 0.0
    %4183 = vmatpush1.msra.mxu0 0.0
    %4184 = vmatprep.subr.mxu0 0.0
    %4185 = vmatpush1.msra.mxu0 0.0
    %4186 = vmatprep.subr.mxu0 0.0
    %4187 = vmatpush1.msra.mxu0 0.0
    %4188 = vmatprep.subr.mxu0 0.0
    %4189 = vmatpush1.msra.mxu0 0.0
    %4190 = vmatprep.subr.mxu0 0.0
    %4191 = vmatpush1.msra.mxu0 0.0
    %4192 = vmatprep.subr.mxu0 0.0
    %4193 = vmatpush1.msra.mxu0 0.0
    %4194 = vmatprep.subr.mxu0 0.0
    %4195 = vmatpush1.msra.mxu0 0.0
    %4196 = vmatprep.subr.mxu0 0.0
    %4197 = vmatpush1.msra.mxu0 0.0
    %4198 = vmatprep.subr.mxu0 0.0
    %4199 = vmatpush1.msra.mxu0 0.0
    %4200 = vmatprep.subr.mxu0 0.0
    %4201 = vmatpush1.msra.mxu0 0.0
    %4202 = vmatprep.subr.mxu0 0.0
    %4203 = vmatpush1.msra.mxu0 0.0
    %4204 = vmatprep.subr.mxu0 0.0
    %4205 = vmatpush1.msra.mxu0 0.0
    %4206 = vmatprep.subr.mxu0 0.0
    %4207 = vmatpush1.msra.mxu0 0.0
    %4208 = vmatprep.subr.mxu0 0.0
    %4209 = vmatpush1.msra.mxu0 0.0
    %4210 = vmatprep.subr.mxu0 0.0
    %4211 = vmatpush1.msra.mxu0 0.0
    %4212 = vmatprep.subr.mxu0 0.0
    %4213 = vmatpush1.msra.mxu0 0.0
    %4214 = vmatprep.subr.mxu0 0.0
    %4215 = vmatpush1.msra.mxu0 0.0
    %4216 = vmatprep.subr.mxu0 0.0
    %4217 = vmatpush1.msra.mxu0 0.0
    %4218 = vmatprep.subr.mxu0 0.0
    %4219 = vmatpush1.msra.mxu0 0.0
    %4220 = vmatprep.subr.mxu0 0.0
    %4221 = vmatpush1.msra.mxu0 0.0
    %4222 = vmatprep.subr.mxu0 0.0
    %4223 = vmatpush1.msra.mxu0 0.0
    %4224 = vmatprep.subr.mxu0 0.0
    %4225 = vmatpush1.msra.mxu0 0.0
    %4226 = vmatprep.subr.mxu0 0.0
    %4227 = vmatpush1.msra.mxu0 0.0
    %4228 = vmatprep.subr.mxu0 0.0
    %4229 = vmatpush1.msra.mxu0 0.0
    %4230 = vmatprep.subr.mxu0 0.0
    %4231 = vmatpush1.msra.mxu0 0.0
    %4232 = vmatprep.subr.mxu0 0.0
    %4233 = vmatpush1.msra.mxu0 0.0
    %4234 = vmatprep.subr.mxu0 0.0
    %4235 = vmatpush1.msra.mxu0 0.0
    %4236 = vmatprep.mubr.f32.mxu0 0.0
    %4237 = vmatmul.mubr.f32.gmra.mrb[0].mxu0 %v4170
    %v4238 = vpop.f32.mrb[0].mxu0
    %v4239 = vadd.f32 0.0, %v4238
    %v4240 = vpop.f32.mrb[0].mxu0
    %4241 = vdwg.mxu0
    %v4243 = vsel %vm3486, %v3480, 0
    %4245 = vmatprep.subr.mxu0 0.0
    %4246 = vmatpush1.msra.mxu0 %v2361
    %4247 = vmatprep.subr.mxu0 0.0
    %4248 = vmatpush1.msra.mxu0 %v3644
    %4249 = vmatprep.subr.mxu0 0.0
    %4250 = vmatpush1.msra.mxu0 0.0
    %4251 = vmatprep.subr.mxu0 0.0
    %4252 = vmatpush1.msra.mxu0 0.0
    %4253 = vmatprep.subr.mxu0 0.0
    %4254 = vmatpush1.msra.mxu0 0.0
    %4255 = vmatprep.subr.mxu0 0.0
    %4256 = vmatpush1.msra.mxu0 0.0
    %4257 = vmatprep.subr.mxu0 0.0
    %4258 = vmatpush1.msra.mxu0 0.0
    %4259 = vmatprep.subr.mxu0 0.0
    %4260 = vmatpush1.msra.mxu0 0.0
    %4261 = vmatprep.subr.mxu0 0.0
    %4262 = vmatpush1.msra.mxu0 0.0
    %4263 = vmatprep.subr.mxu0 0.0
    %4264 = vmatpush1.msra.mxu0 0.0
    %4265 = vmatprep.subr.mxu0 0.0
    %4266 = vmatpush1.msra.mxu0 0.0
    %4267 = vmatprep.subr.mxu0 0.0
    %4268 = vmatpush1.msra.mxu0 0.0
    %4269 = vmatprep.subr.mxu0 0.0
    %4270 = vmatpush1.msra.mxu0 0.0
    %4271 = vmatprep.subr.mxu0 0.0
    %4272 = vmatpush1.msra.mxu0 0.0
    %4273 = vmatprep.subr.mxu0 0.0
    %4274 = vmatpush1.msra.mxu0 0.0
    %4275 = vmatprep.subr.mxu0 0.0
    %4276 = vmatpush1.msra.mxu0 0.0
    %4277 = vmatprep.subr.mxu0 0.0
    %4278 = vmatpush1.msra.mxu0 0.0
    %4279 = vmatprep.subr.mxu0 0.0
    %4280 = vmatpush1.msra.mxu0 0.0
    %4281 = vmatprep.subr.mxu0 0.0
    %4282 = vmatpush1.msra.mxu0 0.0
    %4283 = vmatprep.subr.mxu0 0.0
    %4284 = vmatpush1.msra.mxu0 0.0
    %4285 = vmatprep.subr.mxu0 0.0
    %4286 = vmatpush1.msra.mxu0 0.0
    %4287 = vmatprep.subr.mxu0 0.0
    %4288 = vmatpush1.msra.mxu0 0.0
    %4289 = vmatprep.subr.mxu0 0.0
    %4290 = vmatpush1.msra.mxu0 0.0
    %4291 = vmatprep.subr.mxu0 0.0
    %4292 = vmatpush1.msra.mxu0 0.0
    %4293 = vmatprep.subr.mxu0 0.0
    %4294 = vmatpush1.msra.mxu0 0.0
    %4295 = vmatprep.subr.mxu0 0.0
    %4296 = vmatpush1.msra.mxu0 0.0
    %4297 = vmatprep.subr.mxu0 0.0
    %4298 = vmatpush1.msra.mxu0 0.0
    %4299 = vmatprep.subr.mxu0 0.0
    %4300 = vmatpush1.msra.mxu0 0.0
    %4301 = vmatprep.subr.mxu0 0.0
    %4302 = vmatpush1.msra.mxu0 0.0
    %4303 = vmatprep.subr.mxu0 0.0
    %4304 = vmatpush1.msra.mxu0 0.0
    %4305 = vmatprep.subr.mxu0 0.0
    %4306 = vmatpush1.msra.mxu0 0.0
    %4307 = vmatprep.subr.mxu0 0.0
    %4308 = vmatpush1.msra.mxu0 0.0
    %4309 = vmatprep.mubr.f32.mxu0 0.0
    %4310 = vmatmul.mubr.f32.gmra.mrb[0].mxu0 %v4243
    %v4311 = vpop.f32.mrb[0].mxu0
    %v4312 = vadd.f32 0.0, %v4311
    %v4313 = vpop.f32.mrb[0].mxu0
    %4314 = vdwg.mxu0
    %v4316 = vsel %vm3486, %v3481, 0
    %4318 = vmatprep.subr.mxu0 0.0
    %4319 = vmatpush1.msra.mxu0 %v2363
    %4320 = vmatprep.subr.mxu0 0.0
    %4321 = vmatpush1.msra.mxu0 %v3720
    %4322 = vmatprep.subr.mxu0 0.0
    %4323 = vmatpush1.msra.mxu0 0.0
    %4324 = vmatprep.subr.mxu0 0.0
    %4325 = vmatpush1.msra.mxu0 0.0
    %4326 = vmatprep.subr.mxu0 0.0
    %4327 = vmatpush1.msra.mxu0 0.0
    %4328 = vmatprep.subr.mxu0 0.0
    %4329 = vmatpush1.msra.mxu0 0.0
    %4330 = vmatprep.subr.mxu0 0.0
    %4331 = vmatpush1.msra.mxu0 0.0
    %4332 = vmatprep.subr.mxu0 0.0
    %4333 = vmatpush1.msra.mxu0 0.0
    %4334 = vmatprep.subr.mxu0 0.0
    %4335 = vmatpush1.msra.mxu0 0.0
    %4336 = vmatprep.subr.mxu0 0.0
    %4337 = vmatpush1.msra.mxu0 0.0
    %4338 = vmatprep.subr.mxu0 0.0
    %4339 = vmatpush1.msra.mxu0 0.0
    %4340 = vmatprep.subr.mxu0 0.0
    %4341 = vmatpush1.msra.mxu0 0.0
    %4342 = vmatprep.subr.mxu0 0.0
    %4343 = vmatpush1.msra.mxu0 0.0
    %4344 = vmatprep.subr.mxu0 0.0
    %4345 = vmatpush1.msra.mxu0 0.0
    %4346 = vmatprep.subr.mxu0 0.0
    %4347 = vmatpush1.msra.mxu0 0.0
    %4348 = vmatprep.subr.mxu0 0.0
    %4349 = vmatpush1.msra.mxu0 0.0
    %4350 = vmatprep.subr.mxu0 0.0
    %4351 = vmatpush1.msra.mxu0 0.0
    %4352 = vmatprep.subr.mxu0 0.0
    %4353 = vmatpush1.msra.mxu0 0.0
    %4354 = vmatprep.subr.mxu0 0.0
    %4355 = vmatpush1.msra.mxu0 0.0
    %4356 = vmatprep.subr.mxu0 0.0
    %4357 = vmatpush1.msra.mxu0 0.0
    %4358 = vmatprep.subr.mxu0 0.0
    %4359 = vmatpush1.msra.mxu0 0.0
    %4360 = vmatprep.subr.mxu0 0.0
    %4361 = vmatpush1.msra.mxu0 0.0
    %4362 = vmatprep.subr.mxu0 0.0
    %4363 = vmatpush1.msra.mxu0 0.0
    %4364 = vmatprep.subr.mxu0 0.0
    %4365 = vmatpush1.msra.mxu0 0.0
    %4366 = vmatprep.subr.mxu0 0.0
    %4367 = vmatpush1.msra.mxu0 0.0
    %4368 = vmatprep.subr.mxu0 0.0
    %4369 = vmatpush1.msra.mxu0 0.0
    %4370 = vmatprep.subr.mxu0 0.0
    %4371 = vmatpush1.msra.mxu0 0.0
    %4372 = vmatprep.subr.mxu0 0.0
    %4373 = vmatpush1.msra.mxu0 0.0
    %4374 = vmatprep.subr.mxu0 0.0
    %4375 = vmatpush1.msra.mxu0 0.0
    %4376 = vmatprep.subr.mxu0 0.0
    %4377 = vmatpush1.msra.mxu0 0.0
    %4378 = vmatprep.subr.mxu0 0.0
    %4379 = vmatpush1.msra.mxu0 0.0
    %4380 = vmatprep.subr.mxu0 0.0
    %4381 = vmatpush1.msra.mxu0 0.0
    %4382 = vmatprep.mubr.f32.mxu0 0.0
    %4383 = vmatmul.mubr.f32.gmra.mrb[0].mxu0 %v4316
    %v4384 = vpop.f32.mrb[0].mxu0
    %v4385 = vadd.f32 0.0, %v4384
    %v4386 = vpop.f32.mrb[0].mxu0
    %4387 = vdwg.mxu0
    %v4389 = vsel %vm3486, %v3482, 0
    %4391 = vmatprep.subr.mxu0 0.0
    %4392 = vmatpush1.msra.mxu0 %v2365
    %4393 = vmatprep.subr.mxu0 0.0
    %4394 = vmatpush1.msra.mxu0 %v3796
    %4395 = vmatprep.subr.mxu0 0.0
    %4396 = vmatpush1.msra.mxu0 0.0
    %4397 = vmatprep.subr.mxu0 0.0
    %4398 = vmatpush1.msra.mxu0 0.0
    %4399 = vmatprep.subr.mxu0 0.0
    %4400 = vmatpush1.msra.mxu0 0.0
    %4401 = vmatprep.subr.mxu0 0.0
    %4402 = vmatpush1.msra.mxu0 0.0
    %4403 = vmatprep.subr.mxu0 0.0
    %4404 = vmatpush1.msra.mxu0 0.0
    %4405 = vmatprep.subr.mxu0 0.0
    %4406 = vmatpush1.msra.mxu0 0.0
    %4407 = vmatprep.subr.mxu0 0.0
    %4408 = vmatpush1.msra.mxu0 0.0
    %4409 = vmatprep.subr.mxu0 0.0
    %4410 = vmatpush1.msra.mxu0 0.0
    %4411 = vmatprep.subr.mxu0 0.0
    %4412 = vmatpush1.msra.mxu0 0.0
    %4413 = vmatprep.subr.mxu0 0.0
    %4414 = vmatpush1.msra.mxu0 0.0
    %4415 = vmatprep.subr.mxu0 0.0
    %4416 = vmatpush1.msra.mxu0 0.0
    %4417 = vmatprep.subr.mxu0 0.0
    %4418 = vmatpush1.msra.mxu0 0.0
    %4419 = vmatprep.subr.mxu0 0.0
    %4420 = vmatpush1.msra.mxu0 0.0
    %4421 = vmatprep.subr.mxu0 0.0
    %4422 = vmatpush1.msra.mxu0 0.0
    %4423 = vmatprep.subr.mxu0 0.0
    %4424 = vmatpush1.msra.mxu0 0.0
    %4425 = vmatprep.subr.mxu0 0.0
    %4426 = vmatpush1.msra.mxu0 0.0
    %4427 = vmatprep.subr.mxu0 0.0
    %4428 = vmatpush1.msra.mxu0 0.0
    %4429 = vmatprep.subr.mxu0 0.0
    %4430 = vmatpush1.msra.mxu0 0.0
    %4431 = vmatprep.subr.mxu0 0.0
    %4432 = vmatpush1.msra.mxu0 0.0
    %4433 = vmatprep.subr.mxu0 0.0
    %4434 = vmatpush1.msra.mxu0 0.0
    %4435 = vmatprep.subr.mxu0 0.0
    %4436 = vmatpush1.msra.mxu0 0.0
    %4437 = vmatprep.subr.mxu0 0.0
    %4438 = vmatpush1.msra.mxu0 0.0
    %4439 = vmatprep.subr.mxu0 0.0
    %4440 = vmatpush1.msra.mxu0 0.0
    %4441 = vmatprep.subr.mxu0 0.0
    %4442 = vmatpush1.msra.mxu0 0.0
    %4443 = vmatprep.subr.mxu0 0.0
    %4444 = vmatpush1.msra.mxu0 0.0
    %4445 = vmatprep.subr.mxu0 0.0
    %4446 = vmatpush1.msra.mxu0 0.0
    %4447 = vmatprep.subr.mxu0 0.0
    %4448 = vmatpush1.msra.mxu0 0.0
    %4449 = vmatprep.subr.mxu0 0.0
    %4450 = vmatpush1.msra.mxu0 0.0
    %4451 = vmatprep.subr.mxu0 0.0
    %4452 = vmatpush1.msra.mxu0 0.0
    %4453 = vmatprep.subr.mxu0 0.0
    %4454 = vmatpush1.msra.mxu0 0.0
    %4455 = vmatprep.mubr.f32.mxu0 0.0
    %4456 = vmatmul.mubr.f32.gmra.mrb[0].mxu0 %v4389
    %v4457 = vpop.f32.mrb[0].mxu0
    %v4458 = vadd.f32 0.0, %v4457
    %v4459 = vpop.f32.mrb[0].mxu0
    %4460 = vdwg.mxu0
    %v4462 = vsel %vm3486, %v3483, 0
    %4464 = vmatprep.subr.mxu0 0.0
    %4465 = vmatpush1.msra.mxu0 %v2367
    %4466 = vmatprep.subr.mxu0 0.0
    %4467 = vmatpush1.msra.mxu0 %v3872
    %4468 = vmatprep.subr.mxu0 0.0
    %4469 = vmatpush1.msra.mxu0 0.0
    %4470 = vmatprep.subr.mxu0 0.0
    %4471 = vmatpush1.msra.mxu0 0.0
    %4472 = vmatprep.subr.mxu0 0.0
    %4473 = vmatpush1.msra.mxu0 0.0
    %4474 = vmatprep.subr.mxu0 0.0
    %4475 = vmatpush1.msra.mxu0 0.0
    %4476 = vmatprep.subr.mxu0 0.0
    %4477 = vmatpush1.msra.mxu0 0.0
    %4478 = vmatprep.subr.mxu0 0.0
    %4479 = vmatpush1.msra.mxu0 0.0
    %4480 = vmatprep.subr.mxu0 0.0
    %4481 = vmatpush1.msra.mxu0 0.0
    %4482 = vmatprep.subr.mxu0 0.0
    %4483 = vmatpush1.msra.mxu0 0.0
    %4484 = vmatprep.subr.mxu0 0.0
    %4485 = vmatpush1.msra.mxu0 0.0
    %4486 = vmatprep.subr.mxu0 0.0
    %4487 = vmatpush1.msra.mxu0 0.0
    %4488 = vmatprep.subr.mxu0 0.0
    %4489 = vmatpush1.msra.mxu0 0.0
    %4490 = vmatprep.subr.mxu0 0.0
    %4491 = vmatpush1.msra.mxu0 0.0
    %4492 = vmatprep.subr.mxu0 0.0
    %4493 = vmatpush1.msra.mxu0 0.0
    %4494 = vmatprep.subr.mxu0 0.0
    %4495 = vmatpush1.msra.mxu0 0.0
    %4496 = vmatprep.subr.mxu0 0.0
    %4497 = vmatpush1.msra.mxu0 0.0
    %4498 = vmatprep.subr.mxu0 0.0
    %4499 = vmatpush1.msra.mxu0 0.0
    %4500 = vmatprep.subr.mxu0 0.0
    %4501 = vmatpush1.msra.mxu0 0.0
    %4502 = vmatprep.subr.mxu0 0.0
    %4503 = vmatpush1.msra.mxu0 0.0
    %4504 = vmatprep.subr.mxu0 0.0
    %4505 = vmatpush1.msra.mxu0 0.0
    %4506 = vmatprep.subr.mxu0 0.0
    %4507 = vmatpush1.msra.mxu0 0.0
    %4508 = vmatprep.subr.mxu0 0.0
    %4509 = vmatpush1.msra.mxu0 0.0
    %4510 = vmatprep.subr.mxu0 0.0
    %4511 = vmatpush1.msra.mxu0 0.0
    %4512 = vmatprep.subr.mxu0 0.0
    %4513 = vmatpush1.msra.mxu0 0.0
    %4514 = vmatprep.subr.mxu0 0.0
    %4515 = vmatpush1.msra.mxu0 0.0
    %4516 = vmatprep.subr.mxu0 0.0
    %4517 = vmatpush1.msra.mxu0 0.0
    %4518 = vmatprep.subr.mxu0 0.0
    %4519 = vmatpush1.msra.mxu0 0.0
    %4520 = vmatprep.subr.mxu0 0.0
    %4521 = vmatpush1.msra.mxu0 0.0
    %4522 = vmatprep.subr.mxu0 0.0
    %4523 = vmatpush1.msra.mxu0 0.0
    %4524 = vmatprep.subr.mxu0 0.0
    %4525 = vmatpush1.msra.mxu0 0.0
    %4526 = vmatprep.subr.mxu0 0.0
    %4527 = vmatpush1.msra.mxu0 0.0
    %4528 = vmatprep.mubr.f32.mxu0 0.0
    %4529 = vmatmul.mubr.f32.gmra.mrb[0].mxu0 %v4462
    %v4530 = vpop.f32.mrb[0].mxu0
    %v4531 = vadd.f32 0.0, %v4530
    %v4532 = vpop.f32.mrb[0].mxu0
    %4533 = vdwg.mxu0
    %v4535 = vsel %vm3486, %v3484, 0
    %4537 = vmatprep.subr.mxu0 0.0
    %4538 = vmatpush1.msra.mxu0 %v2369
    %4539 = vmatprep.subr.mxu0 0.0
    %4540 = vmatpush1.msra.mxu0 %v3948
    %4541 = vmatprep.subr.mxu0 0.0
    %4542 = vmatpush1.msra.mxu0 0.0
    %4543 = vmatprep.subr.mxu0 0.0
    %4544 = vmatpush1.msra.mxu0 0.0
    %4545 = vmatprep.subr.mxu0 0.0
    %4546 = vmatpush1.msra.mxu0 0.0
    %4547 = vmatprep.subr.mxu0 0.0
    %4548 = vmatpush1.msra.mxu0 0.0
    %4549 = vmatprep.subr.mxu0 0.0
    %4550 = vmatpush1.msra.mxu0 0.0
    %4551 = vmatprep.subr.mxu0 0.0
    %4552 = vmatpush1.msra.mxu0 0.0
    %4553 = vmatprep.subr.mxu0 0.0
    %4554 = vmatpush1.msra.mxu0 0.0
    %4555 = vmatprep.subr.mxu0 0.0
    %4556 = vmatpush1.msra.mxu0 0.0
    %4557 = vmatprep.subr.mxu0 0.0
    %4558 = vmatpush1.msra.mxu0 0.0
    %4559 = vmatprep.subr.mxu0 0.0
    %4560 = vmatpush1.msra.mxu0 0.0
    %4561 = vmatprep.subr.mxu0 0.0
    %4562 = vmatpush1.msra.mxu0 0.0
    %4563 = vmatprep.subr.mxu0 0.0
    %4564 = vmatpush1.msra.mxu0 0.0
    %4565 = vmatprep.subr.mxu0 0.0
    %4566 = vmatpush1.msra.mxu0 0.0
    %4567 = vmatprep.subr.mxu0 0.0
    %4568 = vmatpush1.msra.mxu0 0.0
    %4569 = vmatprep.subr.mxu0 0.0
    %4570 = vmatpush1.msra.mxu0 0.0
    %4571 = vmatprep.subr.mxu0 0.0
    %4572 = vmatpush1.msra.mxu0 0.0
    %4573 = vmatprep.subr.mxu0 0.0
    %4574 = vmatpush1.msra.mxu0 0.0
    %4575 = vmatprep.subr.mxu0 0.0
    %4576 = vmatpush1.msra.mxu0 0.0
    %4577 = vmatprep.subr.mxu0 0.0
    %4578 = vmatpush1.msra.mxu0 0.0
    %4579 = vmatprep.subr.mxu0 0.0
    %4580 = vmatpush1.msra.mxu0 0.0
    %4581 = vmatprep.subr.mxu0 0.0
    %4582 = vmatpush1.msra.mxu0 0.0
    %4583 = vmatprep.subr.mxu0 0.0
    %4584 = vmatpush1.msra.mxu0 0.0
    %4585 = vmatprep.subr.mxu0 0.0
    %4586 = vmatpush1.msra.mxu0 0.0
    %4587 = vmatprep.subr.mxu0 0.0
    %4588 = vmatpush1.msra.mxu0 0.0
    %4589 = vmatprep.subr.mxu0 0.0
    %4590 = vmatpush1.msra.mxu0 0.0
    %4591 = vmatprep.subr.mxu0 0.0
    %4592 = vmatpush1.msra.mxu0 0.0
    %4593 = vmatprep.subr.mxu0 0.0
    %4594 = vmatpush1.msra.mxu0 0.0
    %4595 = vmatprep.subr.mxu0 0.0
    %4596 = vmatpush1.msra.mxu0 0.0
    %4597 = vmatprep.subr.mxu0 0.0
    %4598 = vmatpush1.msra.mxu0 0.0
    %4599 = vmatprep.subr.mxu0 0.0
    %4600 = vmatpush1.msra.mxu0 0.0
    %4601 = vmatprep.mubr.f32.mxu0 0.0
    %4602 = vmatmul.mubr.f32.gmra.mrb[0].mxu0 %v4535
    %v4603 = vpop.f32.mrb[0].mxu0
    %v4604 = vadd.f32 0.0, %v4603
    %v4605 = vpop.f32.mrb[0].mxu0
    %4606 = vdwg.mxu0
    %v4608 = vsel %vm3486, %v3485, 0
    %4610 = vmatprep.subr.mxu0 0.0
    %4611 = vmatpush1.msra.mxu0 %v2371
    %4612 = vmatprep.subr.mxu0 0.0
    %4613 = vmatpush1.msra.mxu0 %v4024
    %4614 = vmatprep.subr.mxu0 0.0
    %4615 = vmatpush1.msra.mxu0 0.0
    %4616 = vmatprep.subr.mxu0 0.0
    %4617 = vmatpush1.msra.mxu0 0.0
    %4618 = vmatprep.subr.mxu0 0.0
    %4619 = vmatpush1.msra.mxu0 0.0
    %4620 = vmatprep.subr.mxu0 0.0
    %4621 = vmatpush1.msra.mxu0 0.0
    %4622 = vmatprep.subr.mxu0 0.0
    %4623 = vmatpush1.msra.mxu0 0.0
    %4624 = vmatprep.subr.mxu0 0.0
    %4625 = vmatpush1.msra.mxu0 0.0
    %4626 = vmatprep.subr.mxu0 0.0
    %4627 = vmatpush1.msra.mxu0 0.0
    %4628 = vmatprep.subr.mxu0 0.0
    %4629 = vmatpush1.msra.mxu0 0.0
    %4630 = vmatprep.subr.mxu0 0.0
    %4631 = vmatpush1.msra.mxu0 0.0
    %4632 = vmatprep.subr.mxu0 0.0
    %4633 = vmatpush1.msra.mxu0 0.0
    %4634 = vmatprep.subr.mxu0 0.0
    %4635 = vmatpush1.msra.mxu0 0.0
    %4636 = vmatprep.subr.mxu0 0.0
    %4637 = vmatpush1.msra.mxu0 0.0
    %4638 = vmatprep.subr.mxu0 0.0
    %4639 = vmatpush1.msra.mxu0 0.0
    %4640 = vmatprep.subr.mxu0 0.0
    %4641 = vmatpush1.msra.mxu0 0.0
    %4642 = vmatprep.subr.mxu0 0.0
    %4643 = vmatpush1.msra.mxu0 0.0
    %4644 = vmatprep.subr.mxu0 0.0
    %4645 = vmatpush1.msra.mxu0 0.0
    %4646 = vmatprep.subr.mxu0 0.0
    %4647 = vmatpush1.msra.mxu0 0.0
    %4648 = vmatprep.subr.mxu0 0.0
    %4649 = vmatpush1.msra.mxu0 0.0
    %4650 = vmatprep.subr.mxu0 0.0
    %4651 = vmatpush1.msra.mxu0 0.0
    %4652 = vmatprep.subr.mxu0 0.0
    %4653 = vmatpush1.msra.mxu0 0.0
    %4654 = vmatprep.subr.mxu0 0.0
    %4655 = vmatpush1.msra.mxu0 0.0
    %4656 = vmatprep.subr.mxu0 0.0
    %4657 = vmatpush1.msra.mxu0 0.0
    %4658 = vmatprep.subr.mxu0 0.0
    %4659 = vmatpush1.msra.mxu0 0.0
    %4660 = vmatprep.subr.mxu0 0.0
    %4661 = vmatpush1.msra.mxu0 0.0
    %4662 = vmatprep.subr.mxu0 0.0
    %4663 = vmatpush1.msra.mxu0 0.0
    %4664 = vmatprep.subr.mxu0 0.0
    %4665 = vmatpush1.msra.mxu0 0.0
    %4666 = vmatprep.subr.mxu0 0.0
    %4667 = vmatpush1.msra.mxu0 0.0
    %4668 = vmatprep.subr.mxu0 0.0
    %4669 = vmatpush1.msra.mxu0 0.0
    %4670 = vmatprep.subr.mxu0 0.0
    %4671 = vmatpush1.msra.mxu0 0.0
    %4672 = vmatprep.subr.mxu0 0.0
    %4673 = vmatpush1.msra.mxu0 0.0
    %4674 = vmatprep.mubr.f32.mxu0 0.0
    %4675 = vmatmul.mubr.f32.gmra.mrb[0].mxu0 %v4608
    %v4676 = vpop.f32.mrb[0].mxu0
    %v4677 = vadd.f32 0.0, %v4676
    %v4678 = vpop.f32.mrb[0].mxu0
    %4679 = vdwg.mxu0
    %v4680 = vadd.f32 %v1260, %v3561
    %v4681 = vadd.f32 %v1330, %v3637
    %v4682 = vadd.f32 %v1400, %v3713
    %v4683 = vadd.f32 %v1470, %v3789
    %v4684 = vadd.f32 %v1540, %v3865
    %v4685 = vadd.f32 %v1610, %v3941
    %v4686 = vadd.f32 %v1680, %v4017
    %v4687 = vadd.f32 %v1750, %v4093
    %v4688 = vadd.f32 %v1820, %v4166
    %v4689 = vadd.f32 %v1890, %v4239
    %v4690 = vadd.f32 %v1960, %v4312
    %v4691 = vadd.f32 %v2030, %v4385
    %v4692 = vadd.f32 %v2100, %v4458
    %v4693 = vadd.f32 %v2170, %v4531
    %v4694 = vadd.f32 %v2240, %v4604
    %v4695 = vadd.f32 %v2310, %v4677
    %v4696 = vld [vmem:[%s13] sm:$0x1]
    %v4697 = vlaneseq
    %v4698 = vshrl.u32 %v4697, 7
    %v4699 = vsub.s32 0, %v4698
    %v4700 = vrot.slane %v4696, %v4699
    %v4701 = vadd.f32 %v153, %v4700
    %v4702 = vadd.f32 %v158, %v4700
    %v4704 = vsel %vm468, %v4701, 0
    %v4707 = vsel %vm468, %v247, 0
    %4709 = vmatprep.subr.mxu0 0.0
    %4710 = vmatpush1.xpose.msra.mxu0 %v4707
    %4711 = vmatprep.subr.mxu0 0.0
    %4712 = vmatpush1.xpose.msra.mxu0 0.0
    %4713 = vmatprep.subr.mxu0 0.0
    %4714 = vmatpush1.xpose.msra.mxu0 0.0
    %4715 = vmatprep.subr.mxu0 0.0
    %4716 = vmatpush1.xpose.msra.mxu0 0.0
    %4717 = vmatprep.subr.mxu0 0.0
    %4718 = vmatpush1.xpose.msra.mxu0 0.0
    %4719 = vmatprep.subr.mxu0 0.0
    %4720 = vmatpush1.xpose.msra.mxu0 0.0
    %4721 = vmatprep.subr.mxu0 0.0
    %4722 = vmatpush1.xpose.msra.mxu0 0.0
    %4723 = vmatprep.subr.mxu0 0.0
    %4724 = vmatpush1.xpose.msra.mxu0 0.0
    %4725 = vmatprep.subr.mxu0 0.0
    %4726 = vmatpush1.xpose.msra.mxu0 0.0
    %4727 = vmatprep.subr.mxu0 0.0
    %4728 = vmatpush1.xpose.msra.mxu0 0.0
    %4729 = vmatprep.subr.mxu0 0.0
    %4730 = vmatpush1.xpose.msra.mxu0 0.0
    %4731 = vmatprep.subr.mxu0 0.0
    %4732 = vmatpush1.xpose.msra.mxu0 0.0
    %4733 = vmatprep.subr.mxu0 0.0
    %4734 = vmatpush1.xpose.msra.mxu0 0.0
    %4735 = vmatprep.subr.mxu0 0.0
    %4736 = vmatpush1.xpose.msra.mxu0 0.0
    %4737 = vmatprep.subr.mxu0 0.0
    %4738 = vmatpush1.xpose.msra.mxu0 0.0
    %4739 = vmatprep.subr.mxu0 0.0
    %4740 = vmatpush1.xpose.msra.mxu0 0.0
    %4741 = vmatprep.subr.mxu0 0.0
    %4742 = vmatpush1.xpose.msra.mxu0 0.0
    %4743 = vmatprep.subr.mxu0 0.0
    %4744 = vmatpush1.xpose.msra.mxu0 0.0
    %4745 = vmatprep.subr.mxu0 0.0
    %4746 = vmatpush1.xpose.msra.mxu0 0.0
    %4747 = vmatprep.subr.mxu0 0.0
    %4748 = vmatpush1.xpose.msra.mxu0 0.0
    %4749 = vmatprep.subr.mxu0 0.0
    %4750 = vmatpush1.xpose.msra.mxu0 0.0
    %4751 = vmatprep.subr.mxu0 0.0
    %4752 = vmatpush1.xpose.msra.mxu0 0.0
    %4753 = vmatprep.subr.mxu0 0.0
    %4754 = vmatpush1.xpose.msra.mxu0 0.0
    %4755 = vmatprep.subr.mxu0 0.0
    %4756 = vmatpush1.xpose.msra.mxu0 0.0
    %4757 = vmatprep.subr.mxu0 0.0
    %4758 = vmatpush1.xpose.msra.mxu0 0.0
    %4759 = vmatprep.subr.mxu0 0.0
    %4760 = vmatpush1.xpose.msra.mxu0 0.0
    %4761 = vmatprep.subr.mxu0 0.0
    %4762 = vmatpush1.xpose.msra.mxu0 0.0
    %4763 = vmatprep.subr.mxu0 0.0
    %4764 = vmatpush1.xpose.msra.mxu0 0.0
    %4765 = vmatprep.subr.mxu0 0.0
    %4766 = vmatpush1.xpose.msra.mxu0 0.0
    %4767 = vmatprep.subr.mxu0 0.0
    %4768 = vmatpush1.xpose.msra.mxu0 0.0
    %4769 = vmatprep.subr.mxu0 0.0
    %4770 = vmatpush1.xpose.msra.mxu0 0.0
    %4771 = vmatprep.subr.mxu0 0.0
    %4772 = vmatpush1.xpose.msra.mxu0 0.0
    %4773 = vmatprep.mubr.f32.mxu0 0.0
    %4774 = vmatmul.mubr.f32.gmra.mrb[0].mxu0 %v4704
    %v4775 = vpop.f32.mrb[0].mxu0
    %v4776 = vadd.f32 0.0, %v4775
    %v4777 = vpop.f32.mrb[0].mxu0
    %4778 = vdwg.mxu0
    %v4780 = vsel %vm468, %v4702, 0
    %v4783 = vsel %vm468, %v252, 0
    %4785 = vmatprep.subr.mxu0 0.0
    %4786 = vmatpush1.xpose.msra.mxu0 %v4783
    %4787 = vmatprep.subr.mxu0 0.0
    %4788 = vmatpush1.xpose.msra.mxu0 0.0
    %4789 = vmatprep.subr.mxu0 0.0
    %4790 = vmatpush1.xpose.msra.mxu0 0.0
    %4791 = vmatprep.subr.mxu0 0.0
    %4792 = vmatpush1.xpose.msra.mxu0 0.0
    %4793 = vmatprep.subr.mxu0 0.0
    %4794 = vmatpush1.xpose.msra.mxu0 0.0
    %4795 = vmatprep.subr.mxu0 0.0
    %4796 = vmatpush1.xpose.msra.mxu0 0.0
    %4797 = vmatprep.subr.mxu0 0.0
    %4798 = vmatpush1.xpose.msra.mxu0 0.0
    %4799 = vmatprep.subr.mxu0 0.0
    %4800 = vmatpush1.xpose.msra.mxu0 0.0
    %4801 = vmatprep.subr.mxu0 0.0
    %4802 = vmatpush1.xpose.msra.mxu0 0.0
    %4803 = vmatprep.subr.mxu0 0.0
    %4804 = vmatpush1.xpose.msra.mxu0 0.0
    %4805 = vmatprep.subr.mxu0 0.0
    %4806 = vmatpush1.xpose.msra.mxu0 0.0
    %4807 = vmatprep.subr.mxu0 0.0
    %4808 = vmatpush1.xpose.msra.mxu0 0.0
    %4809 = vmatprep.subr.mxu0 0.0
    %4810 = vmatpush1.xpose.msra.mxu0 0.0
    %4811 = vmatprep.subr.mxu0 0.0
    %4812 = vmatpush1.xpose.msra.mxu0 0.0
    %4813 = vmatprep.subr.mxu0 0.0
    %4814 = vmatpush1.xpose.msra.mxu0 0.0
    %4815 = vmatprep.subr.mxu0 0.0
    %4816 = vmatpush1.xpose.msra.mxu0 0.0
    %4817 = vmatprep.subr.mxu0 0.0
    %4818 = vmatpush1.xpose.msra.mxu0 0.0
    %4819 = vmatprep.subr.mxu0 0.0
    %4820 = vmatpush1.xpose.msra.mxu0 0.0
    %4821 = vmatprep.subr.mxu0 0.0
    %4822 = vmatpush1.xpose.msra.mxu0 0.0
    %4823 = vmatprep.subr.mxu0 0.0
    %4824 = vmatpush1.xpose.msra.mxu0 0.0
    %4825 = vmatprep.subr.mxu0 0.0
    %4826 = vmatpush1.xpose.msra.mxu0 0.0
    %4827 = vmatprep.subr.mxu0 0.0
    %4828 = vmatpush1.xpose.msra.mxu0 0.0
    %4829 = vmatprep.subr.mxu0 0.0
    %4830 = vmatpush1.xpose.msra.mxu0 0.0
    %4831 = vmatprep.subr.mxu0 0.0
    %4832 = vmatpush1.xpose.msra.mxu0 0.0
    %4833 = vmatprep.subr.mxu0 0.0
    %4834 = vmatpush1.xpose.msra.mxu0 0.0
    %4835 = vmatprep.subr.mxu0 0.0
    %4836 = vmatpush1.xpose.msra.mxu0 0.0
    %4837 = vmatprep.subr.mxu0 0.0
    %4838 = vmatpush1.xpose.msra.mxu0 0.0
    %4839 = vmatprep.subr.mxu0 0.0
    %4840 = vmatpush1.xpose.msra.mxu0 0.0
    %4841 = vmatprep.subr.mxu0 0.0
    %4842 = vmatpush1.xpose.msra.mxu0 0.0
    %4843 = vmatprep.subr.mxu0 0.0
    %4844 = vmatpush1.xpose.msra.mxu0 0.0
    %4845 = vmatprep.subr.mxu0 0.0
    %4846 = vmatpush1.xpose.msra.mxu0 0.0
    %4847 = vmatprep.subr.mxu0 0.0
    %4848 = vmatpush1.xpose.msra.mxu0 0.0
    %4849 = vmatprep.mubr.f32.mxu0 0.0
    %4850 = vmatmul.mubr.f32.gmra.mrb[0].mxu0 %v4780
    %v4851 = vpop.f32.mrb[0].mxu0
    %v4852 = vadd.f32 0.0, %v4851
    %v4853 = vpop.f32.mrb[0].mxu0
    %4854 = vdwg.mxu0
    %v4871 = vrot.slane %v4681, 7
    %vm4872 = vcmask 1041409
    %v4873 = vsel %vm4872, %v4871, %v4680
    %v4874 = vrot.slane %v4682, 6
    %vm4875 = vcmask 1042434
    %v4876 = vsel %vm4875, %v4874, %v4873
    %v4877 = vrot.slane %v4683, 5
    %vm4878 = vcmask 1043459
    %v4879 = vsel %vm4878, %v4877, %v4876
    %v4880 = vrot.slane %v4684, 4
    %vm4881 = vcmask 1044484
    %v4882 = vsel %vm4881, %v4880, %v4879
    %v4883 = vrot.slane %v4685, 3
    %vm4884 = vcmask 1045509
    %v4885 = vsel %vm4884, %v4883, %v4882
    %v4886 = vrot.slane %v4686, 2
    %vm4887 = vcmask 1046534
    %v4888 = vsel %vm4887, %v4886, %v4885
    %v4889 = vrot.slane %v4687, 1
    %vm4890 = vcmask 1047559
    %v4891 = vsel %vm4890, %v4889, %v4888
    %v4892 = vrot.slane %v4689, 7
    %v4893 = vsel %vm4872, %v4892, %v4688
    %v4894 = vrot.slane %v4690, 6
    %v4895 = vsel %vm4875, %v4894, %v4893
    %v4896 = vrot.slane %v4691, 5
    %v4897 = vsel %vm4878, %v4896, %v4895
    %v4898 = vrot.slane %v4692, 4
    %v4899 = vsel %vm4881, %v4898, %v4897
    %v4900 = vrot.slane %v4693, 3
    %v4901 = vsel %vm4884, %v4900, %v4899
    %v4902 = vrot.slane %v4694, 2
    %v4903 = vsel %vm4887, %v4902, %v4901
    %v4904 = vrot.slane %v4695, 1
    %v4905 = vsel %vm4890, %v4904, %v4903
    %v4908 = vadd.f32 %v4776, %v4891
    %v4909 = vadd.f32 %v4852, %v4905
    %v4910 = vsel %vm468, %v4908, -inf
    %4911 = vmax.xlane.f32.xlu0 %v4910
    %v4912 = vpop.xlane.xlu0 %4911
    %v4913 = vsel %vm468, %v4909, -inf
    %4914 = vmax.xlane.f32.xlu0 %v4913
    %v4915 = vpop.xlane.xlu0 %4914
    %v4916 = vsub.f32 %v4908, %v4912
    %v4917 = vsub.f32 %v4909, %v4915
    %v4918 = vmul.f32 %v4916, 1.442695
    %v4919 = vpow.pop %v4918
    %v4920 = vmul.f32 %v4917, 1.442695
    %v4921 = vpow.pop %v4920
    %v4922 = vsel %vm468, %v4919, 0.0
    %4923 = vadd.xlane.f32.xlu0 %v4922
    %v4924 = vpop.xlane.xlu0 %4923
    %v4925 = vsel %vm468, %v4921, 0.0
    %4926 = vadd.xlane.f32.xlu0 %v4925
    %v4927 = vpop.xlane.xlu0 %4926
    %v4928 = vrcp.pop %v4924
    %v4929 = vrcp.pop %v4927
    %v4930 = vmul.f32 %v4919, %v4928
    %v4931 = vmul.f32 %v4921, %v4929
    %v4933 = vsel %vm468, %v4930, 0
    %4935 = vmatprep.subr.mxu0 0.0
    %4936 = vmatpush1.msra.mxu0 %v341
    %4937 = vmatprep.subr.mxu0 0.0
    %4938 = vmatpush1.msra.mxu0 0.0
    %4939 = vmatprep.subr.mxu0 0.0
    %4940 = vmatpush1.msra.mxu0 0.0
    %4941 = vmatprep.subr.mxu0 0.0
    %4942 = vmatpush1.msra.mxu0 0.0
    %4943 = vmatprep.subr.mxu0 0.0
    %4944 = vmatpush1.msra.mxu0 0.0
    %4945 = vmatprep.subr.mxu0 0.0
    %4946 = vmatpush1.msra.mxu0 0.0
    %4947 = vmatprep.subr.mxu0 0.0
    %4948 = vmatpush1.msra.mxu0 0.0
    %4949 = vmatprep.subr.mxu0 0.0
    %4950 = vmatpush1.msra.mxu0 0.0
    %4951 = vmatprep.subr.mxu0 0.0
    %4952 = vmatpush1.msra.mxu0 0.0
    %4953 = vmatprep.subr.mxu0 0.0
    %4954 = vmatpush1.msra.mxu0 0.0
    %4955 = vmatprep.subr.mxu0 0.0
    %4956 = vmatpush1.msra.mxu0 0.0
    %4957 = vmatprep.subr.mxu0 0.0
    %4958 = vmatpush1.msra.mxu0 0.0
    %4959 = vmatprep.subr.mxu0 0.0
    %4960 = vmatpush1.msra.mxu0 0.0
    %4961 = vmatprep.subr.mxu0 0.0
    %4962 = vmatpush1.msra.mxu0 0.0
    %4963 = vmatprep.subr.mxu0 0.0
    %4964 = vmatpush1.msra.mxu0 0.0
    %4965 = vmatprep.subr.mxu0 0.0
    %4966 = vmatpush1.msra.mxu0 0.0
    %4967 = vmatprep.subr.mxu0 0.0
    %4968 = vmatpush1.msra.mxu0 0.0
    %4969 = vmatprep.subr.mxu0 0.0
    %4970 = vmatpush1.msra.mxu0 0.0
    %4971 = vmatprep.subr.mxu0 0.0
    %4972 = vmatpush1.msra.mxu0 0.0
    %4973 = vmatprep.subr.mxu0 0.0
    %4974 = vmatpush1.msra.mxu0 0.0
    %4975 = vmatprep.subr.mxu0 0.0
    %4976 = vmatpush1.msra.mxu0 0.0
    %4977 = vmatprep.subr.mxu0 0.0
    %4978 = vmatpush1.msra.mxu0 0.0
    %4979 = vmatprep.subr.mxu0 0.0
    %4980 = vmatpush1.msra.mxu0 0.0
    %4981 = vmatprep.subr.mxu0 0.0
    %4982 = vmatpush1.msra.mxu0 0.0
    %4983 = vmatprep.subr.mxu0 0.0
    %4984 = vmatpush1.msra.mxu0 0.0
    %4985 = vmatprep.subr.mxu0 0.0
    %4986 = vmatpush1.msra.mxu0 0.0
    %4987 = vmatprep.subr.mxu0 0.0
    %4988 = vmatpush1.msra.mxu0 0.0
    %4989 = vmatprep.subr.mxu0 0.0
    %4990 = vmatpush1.msra.mxu0 0.0
    %4991 = vmatprep.subr.mxu0 0.0
    %4992 = vmatpush1.msra.mxu0 0.0
    %4993 = vmatprep.subr.mxu0 0.0
    %4994 = vmatpush1.msra.mxu0 0.0
    %4995 = vmatprep.subr.mxu0 0.0
    %4996 = vmatpush1.msra.mxu0 0.0
    %4997 = vmatprep.subr.mxu0 0.0
    %4998 = vmatpush1.msra.mxu0 0.0
    %4999 = vmatprep.mubr.f32.mxu0 0.0
    %5000 = vmatmul.mubr.f32.gmra.mrb[0].mxu0 %v4933
    %v5001 = vpop.f32.mrb[0].mxu0
    %v5002 = vadd.f32 0.0, %v5001
    %v5003 = vpop.f32.mrb[0].mxu0
    %5004 = vdwg.mxu0
    %v5006 = vsel %vm468, %v4931, 0
    %5008 = vmatprep.subr.mxu0 0.0
    %5009 = vmatpush1.msra.mxu0 %v346
    %5010 = vmatprep.subr.mxu0 0.0
    %5011 = vmatpush1.msra.mxu0 0.0
    %5012 = vmatprep.subr.mxu0 0.0
    %5013 = vmatpush1.msra.mxu0 0.0
    %5014 = vmatprep.subr.mxu0 0.0
    %5015 = vmatpush1.msra.mxu0 0.0
    %5016 = vmatprep.subr.mxu0 0.0
    %5017 = vmatpush1.msra.mxu0 0.0
    %5018 = vmatprep.subr.mxu0 0.0
    %5019 = vmatpush1.msra.mxu0 0.0
    %5020 = vmatprep.subr.mxu0 0.0
    %5021 = vmatpush1.msra.mxu0 0.0
    %5022 = vmatprep.subr.mxu0 0.0
    %5023 = vmatpush1.msra.mxu0 0.0
    %5024 = vmatprep.subr.mxu0 0.0
    %5025 = vmatpush1.msra.mxu0 0.0
    %5026 = vmatprep.subr.mxu0 0.0
    %5027 = vmatpush1.msra.mxu0 0.0
    %5028 = vmatprep.subr.mxu0 0.0
    %5029 = vmatpush1.msra.mxu0 0.0
    %5030 = vmatprep.subr.mxu0 0.0
    %5031 = vmatpush1.msra.mxu0 0.0
    %5032 = vmatprep.subr.mxu0 0.0
    %5033 = vmatpush1.msra.mxu0 0.0
    %5034 = vmatprep.subr.mxu0 0.0
    %5035 = vmatpush1.msra.mxu0 0.0
    %5036 = vmatprep.subr.mxu0 0.0
    %5037 = vmatpush1.msra.mxu0 0.0
    %5038 = vmatprep.subr.mxu0 0.0
    %5039 = vmatpush1.msra.mxu0 0.0
    %5040 = vmatprep.subr.mxu0 0.0
    %5041 = vmatpush1.msra.mxu0 0.0
    %5042 = vmatprep.subr.mxu0 0.0
    %5043 = vmatpush1.msra.mxu0 0.0
    %5044 = vmatprep.subr.mxu0 0.0
    %5045 = vmatpush1.msra.mxu0 0.0
    %5046 = vmatprep.subr.mxu0 0.0
    %5047 = vmatpush1.msra.mxu0 0.0
    %5048 = vmatprep.subr.mxu0 0.0
    %5049 = vmatpush1.msra.mxu0 0.0
    %5050 = vmatprep.subr.mxu0 0.0
    %5051 = vmatpush1.msra.mxu0 0.0
    %5052 = vmatprep.subr.mxu0 0.0
    %5053 = vmatpush1.msra.mxu0 0.0
    %5054 = vmatprep.subr.mxu0 0.0
    %5055 = vmatpush1.msra.mxu0 0.0
    %5056 = vmatprep.subr.mxu0 0.0
    %5057 = vmatpush1.msra.mxu0 0.0
    %5058 = vmatprep.subr.mxu0 0.0
    %5059 = vmatpush1.msra.mxu0 0.0
    %5060 = vmatprep.subr.mxu0 0.0
    %5061 = vmatpush1.msra.mxu0 0.0
    %5062 = vmatprep.subr.mxu0 0.0
    %5063 = vmatpush1.msra.mxu0 0.0
    %5064 = vmatprep.subr.mxu0 0.0
    %5065 = vmatpush1.msra.mxu0 0.0
    %5066 = vmatprep.subr.mxu0 0.0
    %5067 = vmatpush1.msra.mxu0 0.0
    %5068 = vmatprep.subr.mxu0 0.0
    %5069 = vmatpush1.msra.mxu0 0.0
    %5070 = vmatprep.subr.mxu0 0.0
    %5071 = vmatpush1.msra.mxu0 0.0
    %5072 = vmatprep.mubr.f32.mxu0 0.0
    %5073 = vmatmul.mubr.f32.gmra.mrb[0].mxu0 %v5006
    %v5074 = vpop.f32.mrb[0].mxu0
    %v5075 = vadd.f32 0.0, %v5074
    %v5076 = vpop.f32.mrb[0].mxu0
    %5077 = vdwg.mxu0
    %5078 = vst.msk [vmem:[#allocation2] sm:$0xff] %vm468, %v5002
    %5079 = vst.msk [vmem:[#allocation2 + $0x8] sm:$0xff] %vm468, %v5075
    %v5080 = vld [vmem:[%s13 + $0x1] sm:$0x1]
    %v5081 = vlaneseq
    %v5082 = vshrl.u32 %v5081, 7
    %v5083 = vsub.s32 0, %v5082
    %v5084 = vrot.slane %v5080, %v5083
    %5086 = vrot.lane.b32.xlu0 %v5084, 8
    %v5087 = vpop.permute.xlu0 %5086
    %v5089 = vadd.f32 %v153, %v5087
    %v5090 = vadd.f32 %v158, %v5087
    %5092 = vrot.lane.b32.xlu0 %v5089, 120
    %v5093 = vpop.permute.xlu0 %5092
    %5094 = vrot.lane.b32.xlu0 %v247, 120
    %v5095 = vpop.permute.xlu0 %5094
    %v5096 = vsel %vm468, %v5093, 0
    %v5098 = vsel %vm468, %v5095, 0
    %5100 = vmatprep.subr.mxu0 0.0
    %5101 = vmatpush1.xpose.msra.mxu0 %v5098
    %5102 = vmatprep.subr.mxu0 0.0
    %5103 = vmatpush1.xpose.msra.mxu0 0.0
    %5104 = vmatprep.subr.mxu0 0.0
    %5105 = vmatpush1.xpose.msra.mxu0 0.0
    %5106 = vmatprep.subr.mxu0 0.0
    %5107 = vmatpush1.xpose.msra.mxu0 0.0
    %5108 = vmatprep.subr.mxu0 0.0
    %5109 = vmatpush1.xpose.msra.mxu0 0.0
    %5110 = vmatprep.subr.mxu0 0.0
    %5111 = vmatpush1.xpose.msra.mxu0 0.0
    %5112 = vmatprep.subr.mxu0 0.0
    %5113 = vmatpush1.xpose.msra.mxu0 0.0
    %5114 = vmatprep.subr.mxu0 0.0
    %5115 = vmatpush1.xpose.msra.mxu0 0.0
    %5116 = vmatprep.subr.mxu0 0.0
    %5117 = vmatpush1.xpose.msra.mxu0 0.0
    %5118 = vmatprep.subr.mxu0 0.0
    %5119 = vmatpush1.xpose.msra.mxu0 0.0
    %5120 = vmatprep.subr.mxu0 0.0
    %5121 = vmatpush1.xpose.msra.mxu0 0.0
    %5122 = vmatprep.subr.mxu0 0.0
    %5123 = vmatpush1.xpose.msra.mxu0 0.0
    %5124 = vmatprep.subr.mxu0 0.0
    %5125 = vmatpush1.xpose.msra.mxu0 0.0
    %5126 = vmatprep.subr.mxu0 0.0
    %5127 = vmatpush1.xpose.msra.mxu0 0.0
    %5128 = vmatprep.subr.mxu0 0.0
    %5129 = vmatpush1.xpose.msra.mxu0 0.0
    %5130 = vmatprep.subr.mxu0 0.0
    %5131 = vmatpush1.xpose.msra.mxu0 0.0
    %5132 = vmatprep.subr.mxu0 0.0
    %5133 = vmatpush1.xpose.msra.mxu0 0.0
    %5134 = vmatprep.subr.mxu0 0.0
    %5135 = vmatpush1.xpose.msra.mxu0 0.0
    %5136 = vmatprep.subr.mxu0 0.0
    %5137 = vmatpush1.xpose.msra.mxu0 0.0
    %5138 = vmatprep.subr.mxu0 0.0
    %5139 = vmatpush1.xpose.msra.mxu0 0.0
    %5140 = vmatprep.subr.mxu0 0.0
    %5141 = vmatpush1.xpose.msra.mxu0 0.0
    %5142 = vmatprep.subr.mxu0 0.0
    %5143 = vmatpush1.xpose.msra.mxu0 0.0
    %5144 = vmatprep.subr.mxu0 0.0
    %5145 = vmatpush1.xpose.msra.mxu0 0.0
    %5146 = vmatprep.subr.mxu0 0.0
    %5147 = vmatpush1.xpose.msra.mxu0 0.0
    %5148 = vmatprep.subr.mxu0 0.0
    %5149 = vmatpush1.xpose.msra.mxu0 0.0
    %5150 = vmatprep.subr.mxu0 0.0
    %5151 = vmatpush1.xpose.msra.mxu0 0.0
    %5152 = vmatprep.subr.mxu0 0.0
    %5153 = vmatpush1.xpose.msra.mxu0 0.0
    %5154 = vmatprep.subr.mxu0 0.0
    %5155 = vmatpush1.xpose.msra.mxu0 0.0
    %5156 = vmatprep.subr.mxu0 0.0
    %5157 = vmatpush1.xpose.msra.mxu0 0.0
    %5158 = vmatprep.subr.mxu0 0.0
    %5159 = vmatpush1.xpose.msra.mxu0 0.0
    %5160 = vmatprep.subr.mxu0 0.0
    %5161 = vmatpush1.xpose.msra.mxu0 0.0
    %5162 = vmatprep.subr.mxu0 0.0
    %5163 = vmatpush1.xpose.msra.mxu0 0.0
    %5164 = vmatprep.mubr.f32.mxu0 0.0
    %5165 = vmatmul.mubr.f32.gmra.mrb[0].mxu0 %v5096
    %v5166 = vpop.f32.mrb[0].mxu0
    %v5167 = vadd.f32 0.0, %v5166
    %v5168 = vpop.f32.mrb[0].mxu0
    %5169 = vdwg.mxu0
    %5171 = vrot.lane.b32.xlu0 %v5090, 120
    %v5172 = vpop.permute.xlu0 %5171
    %5173 = vrot.lane.b32.xlu0 %v252, 120
    %v5174 = vpop.permute.xlu0 %5173
    %v5175 = vsel %vm468, %v5172, 0
    %v5177 = vsel %vm468, %v5174, 0
    %5179 = vmatprep.subr.mxu0 0.0
    %5180 = vmatpush1.xpose.msra.mxu0 %v5177
    %5181 = vmatprep.subr.mxu0 0.0
    %5182 = vmatpush1.xpose.msra.mxu0 0.0
    %5183 = vmatprep.subr.mxu0 0.0
    %5184 = vmatpush1.xpose.msra.mxu0 0.0
    %5185 = vmatprep.subr.mxu0 0.0
    %5186 = vmatpush1.xpose.msra.mxu0 0.0
    %5187 = vmatprep.subr.mxu0 0.0
    %5188 = vmatpush1.xpose.msra.mxu0 0.0
    %5189 = vmatprep.subr.mxu0 0.0
    %5190 = vmatpush1.xpose.msra.mxu0 0.0
    %5191 = vmatprep.subr.mxu0 0.0
    %5192 = vmatpush1.xpose.msra.mxu0 0.0
    %5193 = vmatprep.subr.mxu0 0.0
    %5194 = vmatpush1.xpose.msra.mxu0 0.0
    %5195 = vmatprep.subr.mxu0 0.0
    %5196 = vmatpush1.xpose.msra.mxu0 0.0
    %5197 = vmatprep.subr.mxu0 0.0
    %5198 = vmatpush1.xpose.msra.mxu0 0.0
    %5199 = vmatprep.subr.mxu0 0.0
    %5200 = vmatpush1.xpose.msra.mxu0 0.0
    %5201 = vmatprep.subr.mxu0 0.0
    %5202 = vmatpush1.xpose.msra.mxu0 0.0
    %5203 = vmatprep.subr.mxu0 0.0
    %5204 = vmatpush1.xpose.msra.mxu0 0.0
    %5205 = vmatprep.subr.mxu0 0.0
    %5206 = vmatpush1.xpose.msra.mxu0 0.0
    %5207 = vmatprep.subr.mxu0 0.0
    %5208 = vmatpush1.xpose.msra.mxu0 0.0
    %5209 = vmatprep.subr.mxu0 0.0
    %5210 = vmatpush1.xpose.msra.mxu0 0.0
    %5211 = vmatprep.subr.mxu0 0.0
    %5212 = vmatpush1.xpose.msra.mxu0 0.0
    %5213 = vmatprep.subr.mxu0 0.0
    %5214 = vmatpush1.xpose.msra.mxu0 0.0
    %5215 = vmatprep.subr.mxu0 0.0
    %5216 = vmatpush1.xpose.msra.mxu0 0.0
    %5217 = vmatprep.subr.mxu0 0.0
    %5218 = vmatpush1.xpose.msra.mxu0 0.0
    %5219 = vmatprep.subr.mxu0 0.0
    %5220 = vmatpush1.xpose.msra.mxu0 0.0
    %5221 = vmatprep.subr.mxu0 0.0
    %5222 = vmatpush1.xpose.msra.mxu0 0.0
    %5223 = vmatprep.subr.mxu0 0.0
    %5224 = vmatpush1.xpose.msra.mxu0 0.0
    %5225 = vmatprep.subr.mxu0 0.0
    %5226 = vmatpush1.xpose.msra.mxu0 0.0
    %5227 = vmatprep.subr.mxu0 0.0
    %5228 = vmatpush1.xpose.msra.mxu0 0.0
    %5229 = vmatprep.subr.mxu0 0.0
    %5230 = vmatpush1.xpose.msra.mxu0 0.0
    %5231 = vmatprep.subr.mxu0 0.0
    %5232 = vmatpush1.xpose.msra.mxu0 0.0
    %5233 = vmatprep.subr.mxu0 0.0
    %5234 = vmatpush1.xpose.msra.mxu0 0.0
    %5235 = vmatprep.subr.mxu0 0.0
    %5236 = vmatpush1.xpose.msra.mxu0 0.0
    %5237 = vmatprep.subr.mxu0 0.0
    %5238 = vmatpush1.xpose.msra.mxu0 0.0
    %5239 = vmatprep.subr.mxu0 0.0
    %5240 = vmatpush1.xpose.msra.mxu0 0.0
    %5241 = vmatprep.subr.mxu0 0.0
    %5242 = vmatpush1.xpose.msra.mxu0 0.0
    %5243 = vmatprep.mubr.f32.mxu0 0.0
    %5244 = vmatmul.mubr.f32.gmra.mrb[0].mxu0 %v5175
    %v5245 = vpop.f32.mrb[0].mxu0
    %v5246 = vadd.f32 0.0, %v5245
    %v5247 = vpop.f32.mrb[0].mxu0
    %5248 = vdwg.mxu0
    %v5249 = vrot.slane %v4680, 1
    %v5250 = vsel %vm4872, %v4681, %v5249
    %v5251 = vrot.slane %v4682, 7
    %v5252 = vsel %vm4875, %v5251, %v5250
    %v5253 = vrot.slane %v4683, 6
    %v5254 = vsel %vm4878, %v5253, %v5252
    %v5255 = vrot.slane %v4684, 5
    %v5256 = vsel %vm4881, %v5255, %v5254
    %v5257 = vrot.slane %v4685, 4
    %v5258 = vsel %vm4884, %v5257, %v5256
    %v5259 = vrot.slane %v4686, 3
    %v5260 = vsel %vm4887, %v5259, %v5258
    %v5261 = vrot.slane %v4687, 2
    %v5262 = vsel %vm4890, %v5261, %v5260
    %v5263 = vrot.slane %v4688, 1
    %v5264 = vsel %vm4872, %v4689, %v5263
    %v5265 = vrot.slane %v4690, 7
    %v5266 = vsel %vm4875, %v5265, %v5264
    %v5267 = vrot.slane %v4691, 6
    %v5268 = vsel %vm4878, %v5267, %v5266
    %v5269 = vrot.slane %v4692, 5
    %v5270 = vsel %vm4881, %v5269, %v5268
    %v5271 = vrot.slane %v4693, 4
    %v5272 = vsel %vm4884, %v5271, %v5270
    %v5273 = vrot.slane %v4694, 3
    %v5274 = vsel %vm4887, %v5273, %v5272
    %v5275 = vrot.slane %v4695, 2
    %v5276 = vsel %vm4890, %v5275, %v5274
    %v5279 = vadd.f32 %v5167, %v5262
    %v5280 = vadd.f32 %v5246, %v5276
    %v5281 = vsel %vm468, %v5279, -inf
    %5282 = vmax.xlane.f32.xlu0 %v5281
    %v5283 = vpop.xlane.xlu0 %5282
    %v5284 = vsel %vm468, %v5280, -inf
    %5285 = vmax.xlane.f32.xlu0 %v5284
    %v5286 = vpop.xlane.xlu0 %5285
    %v5287 = vsub.f32 %v5279, %v5283
    %v5288 = vsub.f32 %v5280, %v5286
    %v5289 = vmul.f32 %v5287, 1.442695
    %v5290 = vpow.pop %v5289
    %v5291 = vmul.f32 %v5288, 1.442695
    %v5292 = vpow.pop %v5291
    %v5293 = vsel %vm468, %v5290, 0.0
    %5294 = vadd.xlane.f32.xlu0 %v5293
    %v5295 = vpop.xlane.xlu0 %5294
    %v5296 = vsel %vm468, %v5292, 0.0
    %5297 = vadd.xlane.f32.xlu0 %v5296
    %v5298 = vpop.xlane.xlu0 %5297
    %v5299 = vrcp.pop %v5295
    %v5300 = vrcp.pop %v5298
    %v5301 = vmul.f32 %v5290, %v5299
    %v5302 = vmul.f32 %v5292, %v5300
    %5304 = vrot.lane.b32.xlu0 %v341, 120
    %v5305 = vpop.permute.xlu0 %5304
    %v5308 = vsel %vm468, %v5301, 0
    %5310 = vmatprep.subr.mxu0 0.0
    %5311 = vmatpush1.msra.mxu0 %v5305
    %5312 = vmatprep.subr.mxu0 0.0
    %5313 = vmatpush1.msra.mxu0 0.0
    %5314 = vmatprep.subr.mxu0 0.0
    %5315 = vmatpush1.msra.mxu0 0.0
    %5316 = vmatprep.subr.mxu0 0.0
    %5317 = vmatpush1.msra.mxu0 0.0
    %5318 = vmatprep.subr.mxu0 0.0
    %5319 = vmatpush1.msra.mxu0 0.0
    %5320 = vmatprep.subr.mxu0 0.0
    %5321 = vmatpush1.msra.mxu0 0.0
    %5322 = vmatprep.subr.mxu0 0.0
    %5323 = vmatpush1.msra.mxu0 0.0
    %5324 = vmatprep.subr.mxu0 0.0
    %5325 = vmatpush1.msra.mxu0 0.0
    %5326 = vmatprep.subr.mxu0 0.0
    %5327 = vmatpush1.msra.mxu0 0.0
    %5328 = vmatprep.subr.mxu0 0.0
    %5329 = vmatpush1.msra.mxu0 0.0
    %5330 = vmatprep.subr.mxu0 0.0
    %5331 = vmatpush1.msra.mxu0 0.0
    %5332 = vmatprep.subr.mxu0 0.0
    %5333 = vmatpush1.msra.mxu0 0.0
    %5334 = vmatprep.subr.mxu0 0.0
    %5335 = vmatpush1.msra.mxu0 0.0
    %5336 = vmatprep.subr.mxu0 0.0
    %5337 = vmatpush1.msra.mxu0 0.0
    %5338 = vmatprep.subr.mxu0 0.0
    %5339 = vmatpush1.msra.mxu0 0.0
    %5340 = vmatprep.subr.mxu0 0.0
    %5341 = vmatpush1.msra.mxu0 0.0
    %5342 = vmatprep.subr.mxu0 0.0
    %5343 = vmatpush1.msra.mxu0 0.0
    %5344 = vmatprep.subr.mxu0 0.0
    %5345 = vmatpush1.msra.mxu0 0.0
    %5346 = vmatprep.subr.mxu0 0.0
    %5347 = vmatpush1.msra.mxu0 0.0
    %5348 = vmatprep.subr.mxu0 0.0
    %5349 = vmatpush1.msra.mxu0 0.0
    %5350 = vmatprep.subr.mxu0 0.0
    %5351 = vmatpush1.msra.mxu0 0.0
    %5352 = vmatprep.subr.mxu0 0.0
    %5353 = vmatpush1.msra.mxu0 0.0
    %5354 = vmatprep.subr.mxu0 0.0
    %5355 = vmatpush1.msra.mxu0 0.0
    %5356 = vmatprep.subr.mxu0 0.0
    %5357 = vmatpush1.msra.mxu0 0.0
    %5358 = vmatprep.subr.mxu0 0.0
    %5359 = vmatpush1.msra.mxu0 0.0
    %5360 = vmatprep.subr.mxu0 0.0
    %5361 = vmatpush1.msra.mxu0 0.0
    %5362 = vmatprep.subr.mxu0 0.0
    %5363 = vmatpush1.msra.mxu0 0.0
    %5364 = vmatprep.subr.mxu0 0.0
    %5365 = vmatpush1.msra.mxu0 0.0
    %5366 = vmatprep.subr.mxu0 0.0
    %5367 = vmatpush1.msra.mxu0 0.0
    %5368 = vmatprep.subr.mxu0 0.0
    %5369 = vmatpush1.msra.mxu0 0.0
    %5370 = vmatprep.subr.mxu0 0.0
    %5371 = vmatpush1.msra.mxu0 0.0
    %5372 = vmatprep.subr.mxu0 0.0
    %5373 = vmatpush1.msra.mxu0 0.0
    %5374 = vmatprep.mubr.f32.mxu0 0.0
    %5375 = vmatmul.mubr.f32.gmra.mrb[0].mxu0 %v5308
    %v5376 = vpop.f32.mrb[0].mxu0
    %v5377 = vadd.f32 0.0, %v5376
    %v5378 = vpop.f32.mrb[0].mxu0
    %5379 = vdwg.mxu0
    %5381 = vrot.lane.b32.xlu0 %v346, 120
    %v5382 = vpop.permute.xlu0 %5381
    %v5385 = vsel %vm468, %v5302, 0
    %5387 = vmatprep.subr.mxu0 0.0
    %5388 = vmatpush1.msra.mxu0 %v5382
    %5389 = vmatprep.subr.mxu0 0.0
    %5390 = vmatpush1.msra.mxu0 0.0
    %5391 = vmatprep.subr.mxu0 0.0
    %5392 = vmatpush1.msra.mxu0 0.0
    %5393 = vmatprep.subr.mxu0 0.0
    %5394 = vmatpush1.msra.mxu0 0.0
    %5395 = vmatprep.subr.mxu0 0.0
    %5396 = vmatpush1.msra.mxu0 0.0
    %5397 = vmatprep.subr.mxu0 0.0
    %5398 = vmatpush1.msra.mxu0 0.0
    %5399 = vmatprep.subr.mxu0 0.0
    %5400 = vmatpush1.msra.mxu0 0.0
    %5401 = vmatprep.subr.mxu0 0.0
    %5402 = vmatpush1.msra.mxu0 0.0
    %5403 = vmatprep.subr.mxu0 0.0
    %5404 = vmatpush1.msra.mxu0 0.0
    %5405 = vmatprep.subr.mxu0 0.0
    %5406 = vmatpush1.msra.mxu0 0.0
    %5407 = vmatprep.subr.mxu0 0.0
    %5408 = vmatpush1.msra.mxu0 0.0
    %5409 = vmatprep.subr.mxu0 0.0
    %5410 = vmatpush1.msra.mxu0 0.0
    %5411 = vmatprep.subr.mxu0 0.0
    %5412 = vmatpush1.msra.mxu0 0.0
    %5413 = vmatprep.subr.mxu0 0.0
    %5414 = vmatpush1.msra.mxu0 0.0
    %5415 = vmatprep.subr.mxu0 0.0
    %5416 = vmatpush1.msra.mxu0 0.0
    %5417 = vmatprep.subr.mxu0 0.0
    %5418 = vmatpush1.msra.mxu0 0.0
    %5419 = vmatprep.subr.mxu0 0.0
    %5420 = vmatpush1.msra.mxu0 0.0
    %5421 = vmatprep.subr.mxu0 0.0
    %5422 = vmatpush1.msra.mxu0 0.0
    %5423 = vmatprep.subr.mxu0 0.0
    %5424 = vmatpush1.msra.mxu0 0.0
    %5425 = vmatprep.subr.mxu0 0.0
    %5426 = vmatpush1.msra.mxu0 0.0
    %5427 = vmatprep.subr.mxu0 0.0
    %5428 = vmatpush1.msra.mxu0 0.0
    %5429 = vmatprep.subr.mxu0 0.0
    %5430 = vmatpush1.msra.mxu0 0.0
    %5431 = vmatprep.subr.mxu0 0.0
    %5432 = vmatpush1.msra.mxu0 0.0
    %5433 = vmatprep.subr.mxu0 0.0
    %5434 = vmatpush1.msra.mxu0 0.0
    %5435 = vmatprep.subr.mxu0 0.0
    %5436 = vmatpush1.msra.mxu0 0.0
    %5437 = vmatprep.subr.mxu0 0.0
    %5438 = vmatpush1.msra.mxu0 0.0
    %5439 = vmatprep.subr.mxu0 0.0
    %5440 = vmatpush1.msra.mxu0 0.0
    %5441 = vmatprep.subr.mxu0 0.0
    %5442 = vmatpush1.msra.mxu0 0.0
    %5443 = vmatprep.subr.mxu0 0.0
    %5444 = vmatpush1.msra.mxu0 0.0
    %5445 = vmatprep.subr.mxu0 0.0
    %5446 = vmatpush1.msra.mxu0 0.0
    %5447 = vmatprep.subr.mxu0 0.0
    %5448 = vmatpush1.msra.mxu0 0.0
    %5449 = vmatprep.subr.mxu0 0.0
    %5450 = vmatpush1.msra.mxu0 0.0
    %5451 = vmatprep.mubr.f32.mxu0 0.0
    %5452 = vmatmul.mubr.f32.gmra.mrb[0].mxu0 %v5385
    %v5453 = vpop.f32.mrb[0].mxu0
    %v5454 = vadd.f32 0.0, %v5453
    %v5455 = vpop.f32.mrb[0].mxu0
    %5456 = vdwg.mxu0
    %5459 = vrot.lane.b32.xlu0 %v5377, 8
    %v5460 = vpop.permute.xlu0 %5459
    %5461 = vrot.lane.b32.xlu0 %v5454, 8
    %v5462 = vpop.permute.xlu0 %5461
    %vm5465 = vcmask 130112
    %5466 = vst.msk [vmem:[#allocation2] sm:$0xff] %vm5465, %v5460
    %5467 = vst.msk [vmem:[#allocation2 + $0x8] sm:$0xff] %vm5465, %v5462
    %v5468 = vld [vmem:[%s13 + $0x2] sm:$0x1]
    %v5469 = vlaneseq
    %v5470 = vshrl.u32 %v5469, 7
    %v5471 = vsub.s32 0, %v5470
    %v5472 = vrot.slane %v5468, %v5471
    %5474 = vrot.lane.b32.xlu0 %v5472, 16
    %v5475 = vpop.permute.xlu0 %5474
    %v5477 = vadd.f32 %v153, %v5475
    %v5478 = vadd.f32 %v158, %v5475
    %5480 = vrot.lane.b32.xlu0 %v5477, 112
    %v5481 = vpop.permute.xlu0 %5480
    %5482 = vrot.lane.b32.xlu0 %v247, 112
    %v5483 = vpop.permute.xlu0 %5482
    %v5484 = vsel %vm468, %v5481, 0
    %v5486 = vsel %vm468, %v5483, 0
    %5488 = vmatprep.subr.mxu0 0.0
    %5489 = vmatpush1.xpose.msra.mxu0 %v5486
    %5490 = vmatprep.subr.mxu0 0.0
    %5491 = vmatpush1.xpose.msra.mxu0 0.0
    %5492 = vmatprep.subr.mxu0 0.0
    %5493 = vmatpush1.xpose.msra.mxu0 0.0
    %5494 = vmatprep.subr.mxu0 0.0
    %5495 = vmatpush1.xpose.msra.mxu0 0.0
    %5496 = vmatprep.subr.mxu0 0.0
    %5497 = vmatpush1.xpose.msra.mxu0 0.0
    %5498 = vmatprep.subr.mxu0 0.0
    %5499 = vmatpush1.xpose.msra.mxu0 0.0
    %5500 = vmatprep.subr.mxu0 0.0
    %5501 = vmatpush1.xpose.msra.mxu0 0.0
    %5502 = vmatprep.subr.mxu0 0.0
    %5503 = vmatpush1.xpose.msra.mxu0 0.0
    %5504 = vmatprep.subr.mxu0 0.0
    %5505 = vmatpush1.xpose.msra.mxu0 0.0
    %5506 = vmatprep.subr.mxu0 0.0
    %5507 = vmatpush1.xpose.msra.mxu0 0.0
    %5508 = vmatprep.subr.mxu0 0.0
    %5509 = vmatpush1.xpose.msra.mxu0 0.0
    %5510 = vmatprep.subr.mxu0 0.0
    %5511 = vmatpush1.xpose.msra.mxu0 0.0
    %5512 = vmatprep.subr.mxu0 0.0
    %5513 = vmatpush1.xpose.msra.mxu0 0.0
    %5514 = vmatprep.subr.mxu0 0.0
    %5515 = vmatpush1.xpose.msra.mxu0 0.0
    %5516 = vmatprep.subr.mxu0 0.0
    %5517 = vmatpush1.xpose.msra.mxu0 0.0
    %5518 = vmatprep.subr.mxu0 0.0
    %5519 = vmatpush1.xpose.msra.mxu0 0.0
    %5520 = vmatprep.subr.mxu0 0.0
    %5521 = vmatpush1.xpose.msra.mxu0 0.0
    %5522 = vmatprep.subr.mxu0 0.0
    %5523 = vmatpush1.xpose.msra.mxu0 0.0
    %5524 = vmatprep.subr.mxu0 0.0
    %5525 = vmatpush1.xpose.msra.mxu0 0.0
    %5526 = vmatprep.subr.mxu0 0.0
    %5527 = vmatpush1.xpose.msra.mxu0 0.0
    %5528 = vmatprep.subr.mxu0 0.0
    %5529 = vmatpush1.xpose.msra.mxu0 0.0
    %5530 = vmatprep.subr.mxu0 0.0
    %5531 = vmatpush1.xpose.msra.mxu0 0.0
    %5532 = vmatprep.subr.mxu0 0.0
    %5533 = vmatpush1.xpose.msra.mxu0 0.0
    %5534 = vmatprep.subr.mxu0 0.0
    %5535 = vmatpush1.xpose.msra.mxu0 0.0
    %5536 = vmatprep.subr.mxu0 0.0
    %5537 = vmatpush1.xpose.msra.mxu0 0.0
    %5538 = vmatprep.subr.mxu0 0.0
    %5539 = vmatpush1.xpose.msra.mxu0 0.0
    %5540 = vmatprep.subr.mxu0 0.0
    %5541 = vmatpush1.xpose.msra.mxu0 0.0
    %5542 = vmatprep.subr.mxu0 0.0
    %5543 = vmatpush1.xpose.msra.mxu0 0.0
    %5544 = vmatprep.subr.mxu0 0.0
    %5545 = vmatpush1.xpose.msra.mxu0 0.0
    %5546 = vmatprep.subr.mxu0 0.0
    %5547 = vmatpush1.xpose.msra.mxu0 0.0
    %5548 = vmatprep.subr.mxu0 0.0
    %5549 = vmatpush1.xpose.msra.mxu0 0.0
    %5550 = vmatprep.subr.mxu0 0.0
    %5551 = vmatpush1.xpose.msra.mxu0 0.0
    %5552 = vmatprep.mubr.f32.mxu0 0.0
    %5553 = vmatmul.mubr.f32.gmra.mrb[0].mxu0 %v5484
    %v5554 = vpop.f32.mrb[0].mxu0
    %v5555 = vadd.f32 0.0, %v5554
    %v5556 = vpop.f32.mrb[0].mxu0
    %5557 = vdwg.mxu0
    %5559 = vrot.lane.b32.xlu0 %v5478, 112
    %v5560 = vpop.permute.xlu0 %5559
    %5561 = vrot.lane.b32.xlu0 %v252, 112
    %v5562 = vpop.permute.xlu0 %5561
    %v5563 = vsel %vm468, %v5560, 0
    %v5565 = vsel %vm468, %v5562, 0
    %5567 = vmatprep.subr.mxu0 0.0
    %5568 = vmatpush1.xpose.msra.mxu0 %v5565
    %5569 = vmatprep.subr.mxu0 0.0
    %5570 = vmatpush1.xpose.msra.mxu0 0.0
    %5571 = vmatprep.subr.mxu0 0.0
    %5572 = vmatpush1.xpose.msra.mxu0 0.0
    %5573 = vmatprep.subr.mxu0 0.0
    %5574 = vmatpush1.xpose.msra.mxu0 0.0
    %5575 = vmatprep.subr.mxu0 0.0
    %5576 = vmatpush1.xpose.msra.mxu0 0.0
    %5577 = vmatprep.subr.mxu0 0.0
    %5578 = vmatpush1.xpose.msra.mxu0 0.0
    %5579 = vmatprep.subr.mxu0 0.0
    %5580 = vmatpush1.xpose.msra.mxu0 0.0
    %5581 = vmatprep.subr.mxu0 0.0
    %5582 = vmatpush1.xpose.msra.mxu0 0.0
    %5583 = vmatprep.subr.mxu0 0.0
    %5584 = vmatpush1.xpose.msra.mxu0 0.0
    %5585 = vmatprep.subr.mxu0 0.0
    %5586 = vmatpush1.xpose.msra.mxu0 0.0
    %5587 = vmatprep.subr.mxu0 0.0
    %5588 = vmatpush1.xpose.msra.mxu0 0.0
    %5589 = vmatprep.subr.mxu0 0.0
    %5590 = vmatpush1.xpose.msra.mxu0 0.0
    %5591 = vmatprep.subr.mxu0 0.0
    %5592 = vmatpush1.xpose.msra.mxu0 0.0
    %5593 = vmatprep.subr.mxu0 0.0
    %5594 = vmatpush1.xpose.msra.mxu0 0.0
    %5595 = vmatprep.subr.mxu0 0.0
    %5596 = vmatpush1.xpose.msra.mxu0 0.0
    %5597 = vmatprep.subr.mxu0 0.0
    %5598 = vmatpush1.xpose.msra.mxu0 0.0
    %5599 = vmatprep.subr.mxu0 0.0
    %5600 = vmatpush1.xpose.msra.mxu0 0.0
    %5601 = vmatprep.subr.mxu0 0.0
    %5602 = vmatpush1.xpose.msra.mxu0 0.0
    %5603 = vmatprep.subr.mxu0 0.0
    %5604 = vmatpush1.xpose.msra.mxu0 0.0
    %5605 = vmatprep.subr.mxu0 0.0
    %5606 = vmatpush1.xpose.msra.mxu0 0.0
    %5607 = vmatprep.subr.mxu0 0.0
    %5608 = vmatpush1.xpose.msra.mxu0 0.0
    %5609 = vmatprep.subr.mxu0 0.0
    %5610 = vmatpush1.xpose.msra.mxu0 0.0
    %5611 = vmatprep.subr.mxu0 0.0
    %5612 = vmatpush1.xpose.msra.mxu0 0.0
    %5613 = vmatprep.subr.mxu0 0.0
    %5614 = vmatpush1.xpose.msra.mxu0 0.0
    %5615 = vmatprep.subr.mxu0 0.0
    %5616 = vmatpush1.xpose.msra.mxu0 0.0
    %5617 = vmatprep.subr.mxu0 0.0
    %5618 = vmatpush1.xpose.msra.mxu0 0.0
    %5619 = vmatprep.subr.mxu0 0.0
    %5620 = vmatpush1.xpose.msra.mxu0 0.0
    %5621 = vmatprep.subr.mxu0 0.0
    %5622 = vmatpush1.xpose.msra.mxu0 0.0
    %5623 = vmatprep.subr.mxu0 0.0
    %5624 = vmatpush1.xpose.msra.mxu0 0.0
    %5625 = vmatprep.subr.mxu0 0.0
    %5626 = vmatpush1.xpose.msra.mxu0 0.0
    %5627 = vmatprep.subr.mxu0 0.0
    %5628 = vmatpush1.xpose.msra.mxu0 0.0
    %5629 = vmatprep.subr.mxu0 0.0
    %5630 = vmatpush1.xpose.msra.mxu0 0.0
    %5631 = vmatprep.mubr.f32.mxu0 0.0
    %5632 = vmatmul.mubr.f32.gmra.mrb[0].mxu0 %v5563
    %v5633 = vpop.f32.mrb[0].mxu0
    %v5634 = vadd.f32 0.0, %v5633
    %v5635 = vpop.f32.mrb[0].mxu0
    %5636 = vdwg.mxu0
    %v5637 = vrot.slane %v4680, 2
    %v5638 = vrot.slane %v4681, 1
    %v5639 = vsel %vm4872, %v5638, %v5637
    %v5640 = vsel %vm4875, %v4682, %v5639
    %v5641 = vrot.slane %v4683, 7
    %v5642 = vsel %vm4878, %v5641, %v5640
    %v5643 = vrot.slane %v4684, 6
    %v5644 = vsel %vm4881, %v5643, %v5642
    %v5645 = vrot.slane %v4685, 5
    %v5646 = vsel %vm4884, %v5645, %v5644
    %v5647 = vrot.slane %v4686, 4
    %v5648 = vsel %vm4887, %v5647, %v5646
    %v5649 = vrot.slane %v4687, 3
    %v5650 = vsel %vm4890, %v5649, %v5648
    %v5651 = vrot.slane %v4688, 2
    %v5652 = vrot.slane %v4689, 1
    %v5653 = vsel %vm4872, %v5652, %v5651
    %v5654 = vsel %vm4875, %v4690, %v5653
    %v5655 = vrot.slane %v4691, 7
    %v5656 = vsel %vm4878, %v5655, %v5654
    %v5657 = vrot.slane %v4692, 6
    %v5658 = vsel %vm4881, %v5657, %v5656
    %v5659 = vrot.slane %v4693, 5
    %v5660 = vsel %vm4884, %v5659, %v5658
    %v5661 = vrot.slane %v4694, 4
    %v5662 = vsel %vm4887, %v5661, %v5660
    %v5663 = vrot.slane %v4695, 3
    %v5664 = vsel %vm4890, %v5663, %v5662
    %v5667 = vadd.f32 %v5555, %v5650
    %v5668 = vadd.f32 %v5634, %v5664
    %v5669 = vsel %vm468, %v5667, -inf
    %5670 = vmax.xlane.f32.xlu0 %v5669
    %v5671 = vpop.xlane.xlu0 %5670
    %v5672 = vsel %vm468, %v5668, -inf
    %5673 = vmax.xlane.f32.xlu0 %v5672
    %v5674 = vpop.xlane.xlu0 %5673
    %v5675 = vsub.f32 %v5667, %v5671
    %v5676 = vsub.f32 %v5668, %v5674
    %v5677 = vmul.f32 %v5675, 1.442695
    %v5678 = vpow.pop %v5677
    %v5679 = vmul.f32 %v5676, 1.442695
    %v5680 = vpow.pop %v5679
    %v5681 = vsel %vm468, %v5678, 0.0
    %5682 = vadd.xlane.f32.xlu0 %v5681
    %v5683 = vpop.xlane.xlu0 %5682
    %v5684 = vsel %vm468, %v5680, 0.0
    %5685 = vadd.xlane.f32.xlu0 %v5684
    %v5686 = vpop.xlane.xlu0 %5685
    %v5687 = vrcp.pop %v5683
    %v5688 = vrcp.pop %v5686
    %v5689 = vmul.f32 %v5678, %v5687
    %v5690 = vmul.f32 %v5680, %v5688
    %5691 = vrot.lane.b32.xlu0 %v341, 112
    %v5692 = vpop.permute.xlu0 %5691
    %v5695 = vsel %vm468, %v5689, 0
    %5697 = vmatprep.subr.mxu0 0.0
    %5698 = vmatpush1.msra.mxu0 %v5692
    %5699 = vmatprep.subr.mxu0 0.0
    %5700 = vmatpush1.msra.mxu0 0.0
    %5701 = vmatprep.subr.mxu0 0.0
    %5702 = vmatpush1.msra.mxu0 0.0
    %5703 = vmatprep.subr.mxu0 0.0
    %5704 = vmatpush1.msra.mxu0 0.0
    %5705 = vmatprep.subr.mxu0 0.0
    %5706 = vmatpush1.msra.mxu0 0.0
    %5707 = vmatprep.subr.mxu0 0.0
    %5708 = vmatpush1.msra.mxu0 0.0
    %5709 = vmatprep.subr.mxu0 0.0
    %5710 = vmatpush1.msra.mxu0 0.0
    %5711 = vmatprep.subr.mxu0 0.0
    %5712 = vmatpush1.msra.mxu0 0.0
    %5713 = vmatprep.subr.mxu0 0.0
    %5714 = vmatpush1.msra.mxu0 0.0
    %5715 = vmatprep.subr.mxu0 0.0
    %5716 = vmatpush1.msra.mxu0 0.0
    %5717 = vmatprep.subr.mxu0 0.0
    %5718 = vmatpush1.msra.mxu0 0.0
    %5719 = vmatprep.subr.mxu0 0.0
    %5720 = vmatpush1.msra.mxu0 0.0
    %5721 = vmatprep.subr.mxu0 0.0
    %5722 = vmatpush1.msra.mxu0 0.0
    %5723 = vmatprep.subr.mxu0 0.0
    %5724 = vmatpush1.msra.mxu0 0.0
    %5725 = vmatprep.subr.mxu0 0.0
    %5726 = vmatpush1.msra.mxu0 0.0
    %5727 = vmatprep.subr.mxu0 0.0
    %5728 = vmatpush1.msra.mxu0 0.0
    %5729 = vmatprep.subr.mxu0 0.0
    %5730 = vmatpush1.msra.mxu0 0.0
    %5731 = vmatprep.subr.mxu0 0.0
    %5732 = vmatpush1.msra.mxu0 0.0
    %5733 = vmatprep.subr.mxu0 0.0
    %5734 = vmatpush1.msra.mxu0 0.0
    %5735 = vmatprep.subr.mxu0 0.0
    %5736 = vmatpush1.msra.mxu0 0.0
    %5737 = vmatprep.subr.mxu0 0.0
    %5738 = vmatpush1.msra.mxu0 0.0
    %5739 = vmatprep.subr.mxu0 0.0
    %5740 = vmatpush1.msra.mxu0 0.0
    %5741 = vmatprep.subr.mxu0 0.0
    %5742 = vmatpush1.msra.mxu0 0.0
    %5743 = vmatprep.subr.mxu0 0.0
    %5744 = vmatpush1.msra.mxu0 0.0
    %5745 = vmatprep.subr.mxu0 0.0
    %5746 = vmatpush1.msra.mxu0 0.0
    %5747 = vmatprep.subr.mxu0 0.0
    %5748 = vmatpush1.msra.mxu0 0.0
    %5749 = vmatprep.subr.mxu0 0.0
    %5750 = vmatpush1.msra.mxu0 0.0
    %5751 = vmatprep.subr.mxu0 0.0
    %5752 = vmatpush1.msra.mxu0 0.0
    %5753 = vmatprep.subr.mxu0 0.0
    %5754 = vmatpush1.msra.mxu0 0.0
    %5755 = vmatprep.subr.mxu0 0.0
    %5756 = vmatpush1.msra.mxu0 0.0
    %5757 = vmatprep.subr.mxu0 0.0
    %5758 = vmatpush1.msra.mxu0 0.0
    %5759 = vmatprep.subr.mxu0 0.0
    %5760 = vmatpush1.msra.mxu0 0.0
    %5761 = vmatprep.mubr.f32.mxu0 0.0
    %5762 = vmatmul.mubr.f32.gmra.mrb[0].mxu0 %v5695
    %v5763 = vpop.f32.mrb[0].mxu0
    %v5764 = vadd.f32 0.0, %v5763
    %v5765 = vpop.f32.mrb[0].mxu0
    %5766 = vdwg.mxu0
    %5767 = vrot.lane.b32.xlu0 %v346, 112
    %v5768 = vpop.permute.xlu0 %5767
    %v5771 = vsel %vm468, %v5690, 0
    %5773 = vmatprep.subr.mxu0 0.0
    %5774 = vmatpush1.msra.mxu0 %v5768
    %5775 = vmatprep.subr.mxu0 0.0
    %5776 = vmatpush1.msra.mxu0 0.0
    %5777 = vmatprep.subr.mxu0 0.0
    %5778 = vmatpush1.msra.mxu0 0.0
    %5779 = vmatprep.subr.mxu0 0.0
    %5780 = vmatpush1.msra.mxu0 0.0
    %5781 = vmatprep.subr.mxu0 0.0
    %5782 = vmatpush1.msra.mxu0 0.0
    %5783 = vmatprep.subr.mxu0 0.0
    %5784 = vmatpush1.msra.mxu0 0.0
    %5785 = vmatprep.subr.mxu0 0.0
    %5786 = vmatpush1.msra.mxu0 0.0
    %5787 = vmatprep.subr.mxu0 0.0
    %5788 = vmatpush1.msra.mxu0 0.0
    %5789 = vmatprep.subr.mxu0 0.0
    %5790 = vmatpush1.msra.mxu0 0.0
    %5791 = vmatprep.subr.mxu0 0.0
    %5792 = vmatpush1.msra.mxu0 0.0
    %5793 = vmatprep.subr.mxu0 0.0
    %5794 = vmatpush1.msra.mxu0 0.0
    %5795 = vmatprep.subr.mxu0 0.0
    %5796 = vmatpush1.msra.mxu0 0.0
    %5797 = vmatprep.subr.mxu0 0.0
    %5798 = vmatpush1.msra.mxu0 0.0
    %5799 = vmatprep.subr.mxu0 0.0
    %5800 = vmatpush1.msra.mxu0 0.0
    %5801 = vmatprep.subr.mxu0 0.0
    %5802 = vmatpush1.msra.mxu0 0.0
    %5803 = vmatprep.subr.mxu0 0.0
    %5804 = vmatpush1.msra.mxu0 0.0
    %5805 = vmatprep.subr.mxu0 0.0
    %5806 = vmatpush1.msra.mxu0 0.0
    %5807 = vmatprep.subr.mxu0 0.0
    %5808 = vmatpush1.msra.mxu0 0.0
    %5809 = vmatprep.subr.mxu0 0.0
    %5810 = vmatpush1.msra.mxu0 0.0
    %5811 = vmatprep.subr.mxu0 0.0
    %5812 = vmatpush1.msra.mxu0 0.0
    %5813 = vmatprep.subr.mxu0 0.0
    %5814 = vmatpush1.msra.mxu0 0.0
    %5815 = vmatprep.subr.mxu0 0.0
    %5816 = vmatpush1.msra.mxu0 0.0
    %5817 = vmatprep.subr.mxu0 0.0
    %5818 = vmatpush1.msra.mxu0 0.0
    %5819 = vmatprep.subr.mxu0 0.0
    %5820 = vmatpush1.msra.mxu0 0.0
    %5821 = vmatprep.subr.mxu0 0.0
    %5822 = vmatpush1.msra.mxu0 0.0
    %5823 = vmatprep.subr.mxu0 0.0
    %5824 = vmatpush1.msra.mxu0 0.0
    %5825 = vmatprep.subr.mxu0 0.0
    %5826 = vmatpush1.msra.mxu0 0.0
    %5827 = vmatprep.subr.mxu0 0.0
    %5828 = vmatpush1.msra.mxu0 0.0
    %5829 = vmatprep.subr.mxu0 0.0
    %5830 = vmatpush1.msra.mxu0 0.0
    %5831 = vmatprep.subr.mxu0 0.0
    %5832 = vmatpush1.msra.mxu0 0.0
    %5833 = vmatprep.subr.mxu0 0.0
    %5834 = vmatpush1.msra.mxu0 0.0
    %5835 = vmatprep.subr.mxu0 0.0
    %5836 = vmatpush1.msra.mxu0 0.0
    %5837 = vmatprep.mubr.f32.mxu0 0.0
    %5838 = vmatmul.mubr.f32.gmra.mrb[0].mxu0 %v5771
    %v5839 = vpop.f32.mrb[0].mxu0
    %v5840 = vadd.f32 0.0, %v5839
    %v5841 = vpop.f32.mrb[0].mxu0
    %5842 = vdwg.mxu0
    %5845 = vrot.lane.b32.xlu0 %v5764, 16
    %v5846 = vpop.permute.xlu0 %5845
    %5847 = vrot.lane.b32.xlu0 %v5840, 16
    %v5848 = vpop.permute.xlu0 %5847
    %vm5851 = vcmask 195712
    %5852 = vst.msk [vmem:[#allocation2] sm:$0xff] %vm5851, %v5846
    %5853 = vst.msk [vmem:[#allocation2 + $0x8] sm:$0xff] %vm5851, %v5848
    %v5854 = vld [vmem:[%s13 + $0x3] sm:$0x1]
    %v5855 = vlaneseq
    %v5856 = vshrl.u32 %v5855, 7
    %v5857 = vsub.s32 0, %v5856
    %v5858 = vrot.slane %v5854, %v5857
    %5860 = vrot.lane.b32.xlu0 %v5858, 24
    %v5861 = vpop.permute.xlu0 %5860
    %v5863 = vadd.f32 %v153, %v5861
    %v5864 = vadd.f32 %v158, %v5861
    %5866 = vrot.lane.b32.xlu0 %v5863, 104
    %v5867 = vpop.permute.xlu0 %5866
    %5868 = vrot.lane.b32.xlu0 %v247, 104
    %v5869 = vpop.permute.xlu0 %5868
    %v5870 = vsel %vm468, %v5867, 0
    %v5872 = vsel %vm468, %v5869, 0
    %5874 = vmatprep.subr.mxu0 0.0
    %5875 = vmatpush1.xpose.msra.mxu0 %v5872
    %5876 = vmatprep.subr.mxu0 0.0
    %5877 = vmatpush1.xpose.msra.mxu0 0.0
    %5878 = vmatprep.subr.mxu0 0.0
    %5879 = vmatpush1.xpose.msra.mxu0 0.0
    %5880 = vmatprep.subr.mxu0 0.0
    %5881 = vmatpush1.xpose.msra.mxu0 0.0
    %5882 = vmatprep.subr.mxu0 0.0
    %5883 = vmatpush1.xpose.msra.mxu0 0.0
    %5884 = vmatprep.subr.mxu0 0.0
    %5885 = vmatpush1.xpose.msra.mxu0 0.0
    %5886 = vmatprep.subr.mxu0 0.0
    %5887 = vmatpush1.xpose.msra.mxu0 0.0
    %5888 = vmatprep.subr.mxu0 0.0
    %5889 = vmatpush1.xpose.msra.mxu0 0.0
    %5890 = vmatprep.subr.mxu0 0.0
    %5891 = vmatpush1.xpose.msra.mxu0 0.0
    %5892 = vmatprep.subr.mxu0 0.0
    %5893 = vmatpush1.xpose.msra.mxu0 0.0
    %5894 = vmatprep.subr.mxu0 0.0
    %5895 = vmatpush1.xpose.msra.mxu0 0.0
    %5896 = vmatprep.subr.mxu0 0.0
    %5897 = vmatpush1.xpose.msra.mxu0 0.0
    %5898 = vmatprep.subr.mxu0 0.0
    %5899 = vmatpush1.xpose.msra.mxu0 0.0
    %5900 = vmatprep.subr.mxu0 0.0
    %5901 = vmatpush1.xpose.msra.mxu0 0.0
    %5902 = vmatprep.subr.mxu0 0.0
    %5903 = vmatpush1.xpose.msra.mxu0 0.0
    %5904 = vmatprep.subr.mxu0 0.0
    %5905 = vmatpush1.xpose.msra.mxu0 0.0
    %5906 = vmatprep.subr.mxu0 0.0
    %5907 = vmatpush1.xpose.msra.mxu0 0.0
    %5908 = vmatprep.subr.mxu0 0.0
    %5909 = vmatpush1.xpose.msra.mxu0 0.0
    %5910 = vmatprep.subr.mxu0 0.0
    %5911 = vmatpush1.xpose.msra.mxu0 0.0
    %5912 = vmatprep.subr.mxu0 0.0
    %5913 = vmatpush1.xpose.msra.mxu0 0.0
    %5914 = vmatprep.subr.mxu0 0.0
    %5915 = vmatpush1.xpose.msra.mxu0 0.0
    %5916 = vmatprep.subr.mxu0 0.0
    %5917 = vmatpush1.xpose.msra.mxu0 0.0
    %5918 = vmatprep.subr.mxu0 0.0
    %5919 = vmatpush1.xpose.msra.mxu0 0.0
    %5920 = vmatprep.subr.mxu0 0.0
    %5921 = vmatpush1.xpose.msra.mxu0 0.0
    %5922 = vmatprep.subr.mxu0 0.0
    %5923 = vmatpush1.xpose.msra.mxu0 0.0
    %5924 = vmatprep.subr.mxu0 0.0
    %5925 = vmatpush1.xpose.msra.mxu0 0.0
    %5926 = vmatprep.subr.mxu0 0.0
    %5927 = vmatpush1.xpose.msra.mxu0 0.0
    %5928 = vmatprep.subr.mxu0 0.0
    %5929 = vmatpush1.xpose.msra.mxu0 0.0
    %5930 = vmatprep.subr.mxu0 0.0
    %5931 = vmatpush1.xpose.msra.mxu0 0.0
    %5932 = vmatprep.subr.mxu0 0.0
    %5933 = vmatpush1.xpose.msra.mxu0 0.0
    %5934 = vmatprep.subr.mxu0 0.0
    %5935 = vmatpush1.xpose.msra.mxu0 0.0
    %5936 = vmatprep.subr.mxu0 0.0
    %5937 = vmatpush1.xpose.msra.mxu0 0.0
    %5938 = vmatprep.mubr.f32.mxu0 0.0
    %5939 = vmatmul.mubr.f32.gmra.mrb[0].mxu0 %v5870
    %v5940 = vpop.f32.mrb[0].mxu0
    %v5941 = vadd.f32 0.0, %v5940
    %v5942 = vpop.f32.mrb[0].mxu0
    %5943 = vdwg.mxu0
    %5945 = vrot.lane.b32.xlu0 %v5864, 104
    %v5946 = vpop.permute.xlu0 %5945
    %5947 = vrot.lane.b32.xlu0 %v252, 104
    %v5948 = vpop.permute.xlu0 %5947
    %v5949 = vsel %vm468, %v5946, 0
    %v5951 = vsel %vm468, %v5948, 0
    %5953 = vmatprep.subr.mxu0 0.0
    %5954 = vmatpush1.xpose.msra.mxu0 %v5951
    %5955 = vmatprep.subr.mxu0 0.0
    %5956 = vmatpush1.xpose.msra.mxu0 0.0
    %5957 = vmatprep.subr.mxu0 0.0
    %5958 = vmatpush1.xpose.msra.mxu0 0.0
    %5959 = vmatprep.subr.mxu0 0.0
    %5960 = vmatpush1.xpose.msra.mxu0 0.0
    %5961 = vmatprep.subr.mxu0 0.0
    %5962 = vmatpush1.xpose.msra.mxu0 0.0
    %5963 = vmatprep.subr.mxu0 0.0
    %5964 = vmatpush1.xpose.msra.mxu0 0.0
    %5965 = vmatprep.subr.mxu0 0.0
    %5966 = vmatpush1.xpose.msra.mxu0 0.0
    %5967 = vmatprep.subr.mxu0 0.0
    %5968 = vmatpush1.xpose.msra.mxu0 0.0
    %5969 = vmatprep.subr.mxu0 0.0
    %5970 = vmatpush1.xpose.msra.mxu0 0.0
    %5971 = vmatprep.subr.mxu0 0.0
    %5972 = vmatpush1.xpose.msra.mxu0 0.0
    %5973 = vmatprep.subr.mxu0 0.0
    %5974 = vmatpush1.xpose.msra.mxu0 0.0
    %5975 = vmatprep.subr.mxu0 0.0
    %5976 = vmatpush1.xpose.msra.mxu0 0.0
    %5977 = vmatprep.subr.mxu0 0.0
    %5978 = vmatpush1.xpose.msra.mxu0 0.0
    %5979 = vmatprep.subr.mxu0 0.0
    %5980 = vmatpush1.xpose.msra.mxu0 0.0
    %5981 = vmatprep.subr.mxu0 0.0
    %5982 = vmatpush1.xpose.msra.mxu0 0.0
    %5983 = vmatprep.subr.mxu0 0.0
    %5984 = vmatpush1.xpose.msra.mxu0 0.0
    %5985 = vmatprep.subr.mxu0 0.0
    %5986 = vmatpush1.xpose.msra.mxu0 0.0
    %5987 = vmatprep.subr.mxu0 0.0
    %5988 = vmatpush1.xpose.msra.mxu0 0.0
    %5989 = vmatprep.subr.mxu0 0.0
    %5990 = vmatpush1.xpose.msra.mxu0 0.0
    %5991 = vmatprep.subr.mxu0 0.0
    %5992 = vmatpush1.xpose.msra.mxu0 0.0
    %5993 = vmatprep.subr.mxu0 0.0
    %5994 = vmatpush1.xpose.msra.mxu0 0.0
    %5995 = vmatprep.subr.mxu0 0.0
    %5996 = vmatpush1.xpose.msra.mxu0 0.0
    %5997 = vmatprep.subr.mxu0 0.0
    %5998 = vmatpush1.xpose.msra.mxu0 0.0
    %5999 = vmatprep.subr.mxu0 0.0
    %6000 = vmatpush1.xpose.msra.mxu0 0.0
    %6001 = vmatprep.subr.mxu0 0.0
    %6002 = vmatpush1.xpose.msra.mxu0 0.0
    %6003 = vmatprep.subr.mxu0 0.0
    %6004 = vmatpush1.xpose.msra.mxu0 0.0
    %6005 = vmatprep.subr.mxu0 0.0
    %6006 = vmatpush1.xpose.msra.mxu0 0.0
    %6007 = vmatprep.subr.mxu0 0.0
    %6008 = vmatpush1.xpose.msra.mxu0 0.0
    %6009 = vmatprep.subr.mxu0 0.0
    %6010 = vmatpush1.xpose.msra.mxu0 0.0
    %6011 = vmatprep.subr.mxu0 0.0
    %6012 = vmatpush1.xpose.msra.mxu0 0.0
    %6013 = vmatprep.subr.mxu0 0.0
    %6014 = vmatpush1.xpose.msra.mxu0 0.0
    %6015 = vmatprep.subr.mxu0 0.0
    %6016 = vmatpush1.xpose.msra.mxu0 0.0
    %6017 = vmatprep.mubr.f32.mxu0 0.0
    %6018 = vmatmul.mubr.f32.gmra.mrb[0].mxu0 %v5949
    %v6019 = vpop.f32.mrb[0].mxu0
    %v6020 = vadd.f32 0.0, %v6019
    %v6021 = vpop.f32.mrb[0].mxu0
    %6022 = vdwg.mxu0
    %v6023 = vrot.slane %v4680, 3
    %v6024 = vrot.slane %v4681, 2
    %v6025 = vsel %vm4872, %v6024, %v6023
    %v6026 = vrot.slane %v4682, 1
    %v6027 = vsel %vm4875, %v6026, %v6025
    %v6028 = vsel %vm4878, %v4683, %v6027
    %v6029 = vrot.slane %v4684, 7
    %v6030 = vsel %vm4881, %v6029, %v6028
    %v6031 = vrot.slane %v4685, 6
    %v6032 = vsel %vm4884, %v6031, %v6030
    %v6033 = vrot.slane %v4686, 5
    %v6034 = vsel %vm4887, %v6033, %v6032
    %v6035 = vrot.slane %v4687, 4
    %v6036 = vsel %vm4890, %v6035, %v6034
    %v6037 = vrot.slane %v4688, 3
    %v6038 = vrot.slane %v4689, 2
    %v6039 = vsel %vm4872, %v6038, %v6037
    %v6040 = vrot.slane %v4690, 1
    %v6041 = vsel %vm4875, %v6040, %v6039
    %v6042 = vsel %vm4878, %v4691, %v6041
    %v6043 = vrot.slane %v4692, 7
    %v6044 = vsel %vm4881, %v6043, %v6042
    %v6045 = vrot.slane %v4693, 6
    %v6046 = vsel %vm4884, %v6045, %v6044
    %v6047 = vrot.slane %v4694, 5
    %v6048 = vsel %vm4887, %v6047, %v6046
    %v6049 = vrot.slane %v4695, 4
    %v6050 = vsel %vm4890, %v6049, %v6048
    %v6053 = vadd.f32 %v5941, %v6036
    %v6054 = vadd.f32 %v6020, %v6050
    %v6055 = vsel %vm468, %v6053, -inf
    %6056 = vmax.xlane.f32.xlu0 %v6055
    %v6057 = vpop.xlane.xlu0 %6056
    %v6058 = vsel %vm468, %v6054, -inf
    %6059 = vmax.xlane.f32.xlu0 %v6058
    %v6060 = vpop.xlane.xlu0 %6059
    %v6061 = vsub.f32 %v6053, %v6057
    %v6062 = vsub.f32 %v6054, %v6060
    %v6063 = vmul.f32 %v6061, 1.442695
    %v6064 = vpow.pop %v6063
    %v6065 = vmul.f32 %v6062, 1.442695
    %v6066 = vpow.pop %v6065
    %v6067 = vsel %vm468, %v6064, 0.0
    %6068 = vadd.xlane.f32.xlu0 %v6067
    %v6069 = vpop.xlane.xlu0 %6068
    %v6070 = vsel %vm468, %v6066, 0.0
    %6071 = vadd.xlane.f32.xlu0 %v6070
    %v6072 = vpop.xlane.xlu0 %6071
    %v6073 = vrcp.pop %v6069
    %v6074 = vrcp.pop %v6072
    %v6075 = vmul.f32 %v6064, %v6073
    %v6076 = vmul.f32 %v6066, %v6074
    %6077 = vrot.lane.b32.xlu0 %v341, 104
    %v6078 = vpop.permute.xlu0 %6077
    %v6081 = vsel %vm468, %v6075, 0
    %6083 = vmatprep.subr.mxu0 0.0
    %6084 = vmatpush1.msra.mxu0 %v6078
    %6085 = vmatprep.subr.mxu0 0.0
    %6086 = vmatpush1.msra.mxu0 0.0
    %6087 = vmatprep.subr.mxu0 0.0
    %6088 = vmatpush1.msra.mxu0 0.0
    %6089 = vmatprep.subr.mxu0 0.0
    %6090 = vmatpush1.msra.mxu0 0.0
    %6091 = vmatprep.subr.mxu0 0.0
    %6092 = vmatpush1.msra.mxu0 0.0
    %6093 = vmatprep.subr.mxu0 0.0
    %6094 = vmatpush1.msra.mxu0 0.0
    %6095 = vmatprep.subr.mxu0 0.0
    %6096 = vmatpush1.msra.mxu0 0.0
    %6097 = vmatprep.subr.mxu0 0.0
    %6098 = vmatpush1.msra.mxu0 0.0
    %6099 = vmatprep.subr.mxu0 0.0
    %6100 = vmatpush1.msra.mxu0 0.0
    %6101 = vmatprep.subr.mxu0 0.0
    %6102 = vmatpush1.msra.mxu0 0.0
    %6103 = vmatprep.subr.mxu0 0.0
    %6104 = vmatpush1.msra.mxu0 0.0
    %6105 = vmatprep.subr.mxu0 0.0
    %6106 = vmatpush1.msra.mxu0 0.0
    %6107 = vmatprep.subr.mxu0 0.0
    %6108 = vmatpush1.msra.mxu0 0.0
    %6109 = vmatprep.subr.mxu0 0.0
    %6110 = vmatpush1.msra.mxu0 0.0
    %6111 = vmatprep.subr.mxu0 0.0
    %6112 = vmatpush1.msra.mxu0 0.0
    %6113 = vmatprep.subr.mxu0 0.0
    %6114 = vmatpush1.msra.mxu0 0.0
    %6115 = vmatprep.subr.mxu0 0.0
    %6116 = vmatpush1.msra.mxu0 0.0
    %6117 = vmatprep.subr.mxu0 0.0
    %6118 = vmatpush1.msra.mxu0 0.0
    %6119 = vmatprep.subr.mxu0 0.0
    %6120 = vmatpush1.msra.mxu0 0.0
    %6121 = vmatprep.subr.mxu0 0.0
    %6122 = vmatpush1.msra.mxu0 0.0
    %6123 = vmatprep.subr.mxu0 0.0
    %6124 = vmatpush1.msra.mxu0 0.0
    %6125 = vmatprep.subr.mxu0 0.0
    %6126 = vmatpush1.msra.mxu0 0.0
    %6127 = vmatprep.subr.mxu0 0.0
    %6128 = vmatpush1.msra.mxu0 0.0
    %6129 = vmatprep.subr.mxu0 0.0
    %6130 = vmatpush1.msra.mxu0 0.0
    %6131 = vmatprep.subr.mxu0 0.0
    %6132 = vmatpush1.msra.mxu0 0.0
    %6133 = vmatprep.subr.mxu0 0.0
    %6134 = vmatpush1.msra.mxu0 0.0
    %6135 = vmatprep.subr.mxu0 0.0
    %6136 = vmatpush1.msra.mxu0 0.0
    %6137 = vmatprep.subr.mxu0 0.0
    %6138 = vmatpush1.msra.mxu0 0.0
    %6139 = vmatprep.subr.mxu0 0.0
    %6140 = vmatpush1.msra.mxu0 0.0
    %6141 = vmatprep.subr.mxu0 0.0
    %6142 = vmatpush1.msra.mxu0 0.0
    %6143 = vmatprep.subr.mxu0 0.0
    %6144 = vmatpush1.msra.mxu0 0.0
    %6145 = vmatprep.subr.mxu0 0.0
    %6146 = vmatpush1.msra.mxu0 0.0
    %6147 = vmatprep.mubr.f32.mxu0 0.0
    %6148 = vmatmul.mubr.f32.gmra.mrb[0].mxu0 %v6081
    %v6149 = vpop.f32.mrb[0].mxu0
    %v6150 = vadd.f32 0.0, %v6149
    %v6151 = vpop.f32.mrb[0].mxu0
    %6152 = vdwg.mxu0
    %6153 = vrot.lane.b32.xlu0 %v346, 104
    %v6154 = vpop.permute.xlu0 %6153
    %v6157 = vsel %vm468, %v6076, 0
    %6159 = vmatprep.subr.mxu0 0.0
    %6160 = vmatpush1.msra.mxu0 %v6154
    %6161 = vmatprep.subr.mxu0 0.0
    %6162 = vmatpush1.msra.mxu0 0.0
    %6163 = vmatprep.subr.mxu0 0.0
    %6164 = vmatpush1.msra.mxu0 0.0
    %6165 = vmatprep.subr.mxu0 0.0
    %6166 = vmatpush1.msra.mxu0 0.0
    %6167 = vmatprep.subr.mxu0 0.0
    %6168 = vmatpush1.msra.mxu0 0.0
    %6169 = vmatprep.subr.mxu0 0.0
    %6170 = vmatpush1.msra.mxu0 0.0
    %6171 = vmatprep.subr.mxu0 0.0
    %6172 = vmatpush1.msra.mxu0 0.0
    %6173 = vmatprep.subr.mxu0 0.0
    %6174 = vmatpush1.msra.mxu0 0.0
    %6175 = vmatprep.subr.mxu0 0.0
    %6176 = vmatpush1.msra.mxu0 0.0
    %6177 = vmatprep.subr.mxu0 0.0
    %6178 = vmatpush1.msra.mxu0 0.0
    %6179 = vmatprep.subr.mxu0 0.0
    %6180 = vmatpush1.msra.mxu0 0.0
    %6181 = vmatprep.subr.mxu0 0.0
    %6182 = vmatpush1.msra.mxu0 0.0
    %6183 = vmatprep.subr.mxu0 0.0
    %6184 = vmatpush1.msra.mxu0 0.0
    %6185 = vmatprep.subr.mxu0 0.0
    %6186 = vmatpush1.msra.mxu0 0.0
    %6187 = vmatprep.subr.mxu0 0.0
    %6188 = vmatpush1.msra.mxu0 0.0
    %6189 = vmatprep.subr.mxu0 0.0
    %6190 = vmatpush1.msra.mxu0 0.0
    %6191 = vmatprep.subr.mxu0 0.0
    %6192 = vmatpush1.msra.mxu0 0.0
    %6193 = vmatprep.subr.mxu0 0.0
    %6194 = vmatpush1.msra.mxu0 0.0
    %6195 = vmatprep.subr.mxu0 0.0
    %6196 = vmatpush1.msra.mxu0 0.0
    %6197 = vmatprep.subr.mxu0 0.0
    %6198 = vmatpush1.msra.mxu0 0.0
    %6199 = vmatprep.subr.mxu0 0.0
    %6200 = vmatpush1.msra.mxu0 0.0
    %6201 = vmatprep.subr.mxu0 0.0
    %6202 = vmatpush1.msra.mxu0 0.0
    %6203 = vmatprep.subr.mxu0 0.0
    %6204 = vmatpush1.msra.mxu0 0.0
    %6205 = vmatprep.subr.mxu0 0.0
    %6206 = vmatpush1.msra.mxu0 0.0
    %6207 = vmatprep.subr.mxu0 0.0
    %6208 = vmatpush1.msra.mxu0 0.0
    %6209 = vmatprep.subr.mxu0 0.0
    %6210 = vmatpush1.msra.mxu0 0.0
    %6211 = vmatprep.subr.mxu0 0.0
    %6212 = vmatpush1.msra.mxu0 0.0
    %6213 = vmatprep.subr.mxu0 0.0
    %6214 = vmatpush1.msra.mxu0 0.0
    %6215 = vmatprep.subr.mxu0 0.0
    %6216 = vmatpush1.msra.mxu0 0.0
    %6217 = vmatprep.subr.mxu0 0.0
    %6218 = vmatpush1.msra.mxu0 0.0
    %6219 = vmatprep.subr.mxu0 0.0
    %6220 = vmatpush1.msra.mxu0 0.0
    %6221 = vmatprep.subr.mxu0 0.0
    %6222 = vmatpush1.msra.mxu0 0.0
    %6223 = vmatprep.mubr.f32.mxu0 0.0
    %6224 = vmatmul.mubr.f32.gmra.mrb[0].mxu0 %v6157
    %v6225 = vpop.f32.mrb[0].mxu0
    %v6226 = vadd.f32 0.0, %v6225
    %v6227 = vpop.f32.mrb[0].mxu0
    %6228 = vdwg.mxu0
    %6231 = vrot.lane.b32.xlu0 %v6150, 24
    %v6232 = vpop.permute.xlu0 %6231
    %6233 = vrot.lane.b32.xlu0 %v6226, 24
    %v6234 = vpop.permute.xlu0 %6233
    %vm6237 = vcmask 261312
    %6238 = vst.msk [vmem:[#allocation2] sm:$0xff] %vm6237, %v6232
    %6239 = vst.msk [vmem:[#allocation2 + $0x8] sm:$0xff] %vm6237, %v6234
    %v6240 = vld [vmem:[#allocation2] sm:$0xff]
    %v6241 = vld [vmem:[#allocation2 + $0x8] sm:$0xff]
    %v6242 = vld [vmem:[%s18] sm:$0xff]
    %v6243 = vld [vmem:[%s18 + $0x8] sm:$0xff]
    %v6244 = vld [vmem:[%s18 + $0x10] sm:$0xff]
    %v6245 = vld [vmem:[%s18 + $0x18] sm:$0xff]
    %v6246 = vld [vmem:[%s19] sm:$0x1]
    %v6248 = vlaneseq
    %v6249 = vshrl.u32 %v6248, 7
    %v6250 = vsub.s32 0, %v6249
    %v6251 = vrot.slane %v6246, %v6250
    %v6254 = vsel %vm79, %v6240, 0
    %v6257 = vsel %vm79, %v6241, 0
    %6259 = vmatprep.subr.mxu0 0.0
    %6260 = vmatpush1.msra.mxu0 %v6242
    %6261 = vmatprep.subr.mxu0 0.0
    %6262 = vmatpush1.msra.mxu0 %v6243
    %6263 = vmatprep.subr.mxu0 0.0
    %6264 = vmatpush1.msra.mxu0 %v6244
    %6265 = vmatprep.subr.mxu0 0.0
    %6266 = vmatpush1.msra.mxu0 %v6245
    %6267 = vmatprep.subr.mxu0 0.0
    %6268 = vmatpush1.msra.mxu0 0.0
    %6269 = vmatprep.subr.mxu0 0.0
    %6270 = vmatpush1.msra.mxu0 0.0
    %6271 = vmatprep.subr.mxu0 0.0
    %6272 = vmatpush1.msra.mxu0 0.0
    %6273 = vmatprep.subr.mxu0 0.0
    %6274 = vmatpush1.msra.mxu0 0.0
    %6275 = vmatprep.subr.mxu0 0.0
    %6276 = vmatpush1.msra.mxu0 0.0
    %6277 = vmatprep.subr.mxu0 0.0
    %6278 = vmatpush1.msra.mxu0 0.0
    %6279 = vmatprep.subr.mxu0 0.0
    %6280 = vmatpush1.msra.mxu0 0.0
    %6281 = vmatprep.subr.mxu0 0.0
    %6282 = vmatpush1.msra.mxu0 0.0
    %6283 = vmatprep.subr.mxu0 0.0
    %6284 = vmatpush1.msra.mxu0 0.0
    %6285 = vmatprep.subr.mxu0 0.0
    %6286 = vmatpush1.msra.mxu0 0.0
    %6287 = vmatprep.subr.mxu0 0.0
    %6288 = vmatpush1.msra.mxu0 0.0
    %6289 = vmatprep.subr.mxu0 0.0
    %6290 = vmatpush1.msra.mxu0 0.0
    %6291 = vmatprep.subr.mxu0 0.0
    %6292 = vmatpush1.msra.mxu0 0.0
    %6293 = vmatprep.subr.mxu0 0.0
    %6294 = vmatpush1.msra.mxu0 0.0
    %6295 = vmatprep.subr.mxu0 0.0
    %6296 = vmatpush1.msra.mxu0 0.0
    %6297 = vmatprep.subr.mxu0 0.0
    %6298 = vmatpush1.msra.mxu0 0.0
    %6299 = vmatprep.subr.mxu0 0.0
    %6300 = vmatpush1.msra.mxu0 0.0
    %6301 = vmatprep.subr.mxu0 0.0
    %6302 = vmatpush1.msra.mxu0 0.0
    %6303 = vmatprep.subr.mxu0 0.0
    %6304 = vmatpush1.msra.mxu0 0.0
    %6305 = vmatprep.subr.mxu0 0.0
    %6306 = vmatpush1.msra.mxu0 0.0
    %6307 = vmatprep.subr.mxu0 0.0
    %6308 = vmatpush1.msra.mxu0 0.0
    %6309 = vmatprep.subr.mxu0 0.0
    %6310 = vmatpush1.msra.mxu0 0.0
    %6311 = vmatprep.subr.mxu0 0.0
    %6312 = vmatpush1.msra.mxu0 0.0
    %6313 = vmatprep.subr.mxu0 0.0
    %6314 = vmatpush1.msra.mxu0 0.0
    %6315 = vmatprep.subr.mxu0 0.0
    %6316 = vmatpush1.msra.mxu0 0.0
    %6317 = vmatprep.subr.mxu0 0.0
    %6318 = vmatpush1.msra.mxu0 0.0
    %6319 = vmatprep.subr.mxu0 0.0
    %6320 = vmatpush1.msra.mxu0 0.0
    %6321 = vmatprep.subr.mxu0 0.0
    %6322 = vmatpush1.msra.mxu0 0.0
    %6323 = vmatprep.mubr.f32.mxu0 0.0
    %6324 = vmatmul.mubr.f32.gmra.mrb[0].mxu0 %v6254
    %v6325 = vpop.f32.mrb[0].mxu0
    %v6326 = vadd.f32 %v6251, %v6325
    %v6327 = vpop.f32.mrb[0].mxu0
    %6328 = vmatprep.mubr.f32.mxu0 0.0
    %6329 = vmatmul.mubr.f32.gmra.mrb[0].mxu0 %v6257
    %v6330 = vpop.f32.mrb[0].mxu0
    %v6331 = vadd.f32 %v6251, %v6330
    %v6332 = vpop.f32.mrb[0].mxu0
    %6333 = vdwg.mxu0
    %6334 = vst.msk [vmem:[#allocation3] sm:$0xff] %vm79, %v6326
    %6335 = vst.msk [vmem:[#allocation3 + $0x8] sm:$0xff] %vm79, %v6331
    // Predicated region
    $region82: #{tpu_custom_call.1} parent=1 // pred_check
      _
    $region83: #{tpu_custom_call.1} parent=1 // pred_check_branch
      %6337 = sbr.rel (0) target = $region85
    $region84: #{tpu_custom_call.1} parent=1 // pred_region
      %s6339 = ssub.s32 256, 256
      %6340 = vsyncadd [#allocation4], %s6339
      %s6341 = sshll.u32 [#allocation3], 4
      %s6342 = int_to_ptr.vmem [resolvable:$true] %s6341
      %6347 = dma.vmem_to_hbm [thread:$0]  %s6342, 256, %s20, [#allocation4], 128, 128, 8
    $region85: #{tpu_custom_call.1} parent=1 // pred_fallthru
      _
    // Predicated region
    $region86: #{tpu_custom_call.1} parent=1 // pred_check
      _
    $region87: #{tpu_custom_call.1} parent=1 // pred_check_branch
      %6349 = sbr.rel (0) target = $region89
    $region88: #{tpu_custom_call.1} parent=1 // pred_region
      %6350 = dma.done [#allocation4], 256
    $region89: #{tpu_custom_call.1} parent=1 // pred_fallthru
      _
    %6351 = vsyncpa [#allocation4], 1

</llo_original>
